<compile_context>
chip_gen: v7x
topology: tpu7x:2x2x1
jax: 0.10.0
libtpu: 0.0.40
codegen_flags: <defaults>
</compile_context>

<pallas_src>
import jax
import jax.numpy as jnp
from jax.experimental import pallas as pl
from jax.experimental.pallas import tpu as pltpu

NEG_SLOPE = 0.01  # PyTorch LeakyReLU default


def _leaky_relu(x):
    return jnp.where(x > 0, x, NEG_SLOPE * x)


def _sigmoid(x):
    # Numerically-safe logistic (never exponentiates a positive value); exact division.
    z = jnp.exp(-jnp.abs(x))
    p = 1.0 / (1.0 + z)
    return jnp.where(x >= 0, p, 1.0 - p)


def _make_kernel(act_dtype):
    def kernel(x_ref,                                   # (M, F)  M = G * N_pad node rows
               w1_ref, b1_ref, w2_ref, b2_ref, w3_ref, b3_ref,
               w4_ref, b4_ref, w5_ref, b5_ref, w6_ref, b6_ref,
               seg_ref,                                 # (M, G)  0/1 node->graph matrix
               segt_ref,                                # (G, M)  its transpose
               enc_ref,                                 # (1, G, F) pooled encodings
               att_ref):                                # (1, 1, M) per-node attention (lane-dense)
        x = x_ref[...]                                  # (M, F) f32

        def dense_act(h, w_ref, b_ref):
            # bf16 x bf16 MXU matmul, f32 accumulation; bias add in f32;
            # LeakyReLU + next-layer input in act_dtype (bf16 on v6e/v7x).
            y = jnp.dot(h.astype(jnp.bfloat16), w_ref[...],
                        preferred_element_type=jnp.float32)
            return _leaky_relu((y + b_ref[...]).astype(act_dtype))

        # gate MLP (BatchNorm folded into w1/b1 and w2/b2; 3F zero-padded to 128)
        h = dense_act(x, w1_ref, b1_ref)                # (M, 128)
        h = dense_act(h, w2_ref, b2_ref)                # (M, 1024)
        h = dense_act(h, w3_ref, b3_ref)                # (M, 128)
        h = dense_act(h, w4_ref, b4_ref)                # (M, 128)
        h = dense_act(h, w5_ref, b5_ref)                # (M, 128)

        # Gate head as a lane-dense row: (1,128) . (M,128)^T -> (1, M).
        logit = jax.lax.dot_general(
            w6_ref[...], h.astype(jnp.float32),
            dimension_numbers=(((1,), (1,)), ((), ())),
            preferred_element_type=jnp.float32) + b6_ref[...]           # (1, M)
        gate = _sigmoid(logit)                                          # in (0, 1)

        # Per-graph softmax over nodes.  gate in (0,1), so exp() needs no max-shift.
        e = jnp.exp(gate)                                               # (1, M), values in (1, e)
        denom_g = jnp.dot(e, seg_ref[...],
                          preferred_element_type=jnp.float32)           # (1, G) per-graph sums
        denom = jnp.dot(denom_g, segt_ref[...],
                        preferred_element_type=jnp.float32)             # (1, M) back to nodes
        # Padded-node columns have an all-zero segment row -> denom 0; clamp so the
        # reciprocal stays finite (real denominators are sums of exp(gate) > 1).
        att = e * pl.reciprocal(jnp.maximum(denom, 1.0), approx=True)   # (1, M)
        att_ref[0] = att                                                # full-lane store

        # Pooling: enc[g, :] = sum_{nodes n of graph g} att[n] * x[n, :] as one matmul.
        a = segt_ref[...] * att                                         # (G, M), masked rows
        enc_ref[0] = jnp.dot(a, x, preferred_element_type=jnp.float32)  # (G, F)

    return kernel


def _round_up(x, m):
    return ((x + m - 1) // m) * m


def _num_tensorcores():
    """Best-effort TensorCores-per-chip count (v7x: 2, v5e/v6e: 1)."""
    try:
        info = pltpu.get_tpu_info()
        for attr in ("tensorcore_count", "num_tensorcores", "num_cores", "core_count"):
            v = getattr(info, attr, None)
            if isinstance(v, int) and v > 0:
                return min(v, 2)
    except Exception:
        pass
    return 1


def _pick_graphs_per_step(B, N_pad, target_rows, num_tensorcores):
    """Graphs per grid step: maximize M = G*N_pad rows (amortize per-step overhead),
    but keep >= num_tensorcores steps so v7x megacore gets one step per core."""
    g_rows = max(1, _round_up(target_rows, N_pad) // N_pad)
    g_cores = max(1, -(-B // max(1, num_tensorcores)))
    return max(1, min(B, g_rows, g_cores))


def _prepare_params(params):
    """Fold BatchNorm1d (eval) into the preceding Linears, zero-pad the 3F hidden
    width to a multiple of 128, and cast the matmul weights to bf16."""
    (w1, b1, s1, h1, w2, b2, s2, h2, w3, b3, w4, b4, w5, b5, w6, b6) = params
    w1f, b1f = w1 * s1, b1 * s1 + h1
    w2f, b2f = w2 * s2, b2 * s2 + h2
    H1 = w1f.shape[1]
    H1p = _round_up(H1, 128)
    if H1p != H1:
        # Exact: leaky_relu(0) = 0 and the matching zero rows of w2 contribute 0.
        w1f = jnp.pad(w1f, ((0, 0), (0, H1p - H1)))
        b1f = jnp.pad(b1f, ((0, 0), (0, H1p - H1)))
        w2f = jnp.pad(w2f, ((0, H1p - H1), (0, 0)))
    bf = lambda a: a.astype(jnp.bfloat16)
    w6row = w6.reshape(1, -1).astype(jnp.float32)      # (1, 128) gate head, kept f32
    b6f = b6.reshape(1, 1).astype(jnp.float32)
    return [bf(w1f), b1f.astype(jnp.float32), bf(w2f), b2f.astype(jnp.float32),
            bf(w3), b3.astype(jnp.float32), bf(w4), b4.astype(jnp.float32),
            bf(w5), b5.astype(jnp.float32), w6row, b6f]


def _segment_matrices(G, N_pad, n_valid):
    """0/1 segment matrices S (M, G) and S^T (G, M); zero rows mask padded nodes."""
    node = jnp.arange(G * N_pad)
    graph_of = node // N_pad
    valid = (node % N_pad) < n_valid
    s = ((graph_of[:, None] == jnp.arange(G)[None, :]) & valid[:, None])
    s = s.astype(jnp.float32)
    return s, s.T


def molecular_pooling(x, params, *, graphs_per_step=None, act_dtype=jnp.bfloat16,
                      target_rows=512, num_tensorcores=None):
    """x: (B, N, F) float node features (B graphs of N nodes each).
    Returns (encoding (B, F), atom_weights (B, N, 1))."""
    B, N, F = x.shape
    x = x.astype(jnp.float32)
    N_pad = _round_up(N, 8)                            # keep sublane tiling free
    cores = _num_tensorcores() if num_tensorcores is None else num_tensorcores
    G = graphs_per_step or _pick_graphs_per_step(B, N_pad, target_rows, cores)
    B_pad = _round_up(B, G)
    steps = B_pad // G
    M = G * N_pad

    if B_pad != B or N_pad != N:
        x = jnp.pad(x, ((0, B_pad - B), (0, N_pad - N), (0, 0)))
    x2d = x.reshape(B_pad * N_pad, F)                  # host-side; kernel never reshapes

    kparams = _prepare_params(params)
    seg, seg_t = _segment_matrices(G, N_pad, N)

    const = lambda a: pl.BlockSpec(a.shape, lambda b: (0, 0))   # weights stay resident
    in_specs = ([pl.BlockSpec((M, F), lambda b: (b, 0))]
                + [const(p) for p in kparams]
                + [const(seg), const(seg_t)])
    out_specs = [pl.BlockSpec((1, G, F), lambda b: (b, 0, 0)),
                 pl.BlockSpec((1, 1, M), lambda b: (b, 0, 0))]
    out_shape = [jax.ShapeDtypeStruct((steps, G, F), jnp.float32),
                 jax.ShapeDtypeStruct((steps, 1, M), jnp.float32)]

    enc, att = pl.pallas_call(
        _make_kernel(act_dtype),
        grid=(steps,),
        in_specs=in_specs,
        out_specs=out_specs,
        out_shape=out_shape,
        compiler_params=pltpu.CompilerParams(dimension_semantics=("parallel",)),
    )(x2d, *kparams, seg, seg_t)

    enc = enc.reshape(B_pad, F)[:B]
    att = att.reshape(B_pad, N_pad)[:B, :N, None]
    return enc, att


def make_params(key, num_features):
    """Deterministic synthetic weights matching the gate_nn layer shapes."""
    F = num_features
    dims = [(F, 3 * F), (3 * F, 1024), (1024, 128), (128, 128), (128, 128), (128, 1)]
    keys = jax.random.split(key, 32)
    ki = iter(range(32))

    def lin(din, dout):
        w = jax.random.normal(keys[next(ki)], (din, dout), jnp.float32) * (1.0 / jnp.sqrt(din))
        b = jax.random.normal(keys[next(ki)], (1, dout), jnp.float32) * 0.01
        return w, b

    def bn(d):
        gamma = 1.0 + 0.1 * jax.random.normal(keys[next(ki)], (1, d), jnp.float32)
        beta = 0.1 * jax.random.normal(keys[next(ki)], (1, d), jnp.float32)
        mean = 0.1 * jax.random.normal(keys[next(ki)], (1, d), jnp.float32)
        var = 0.5 + jax.random.uniform(keys[next(ki)], (1, d), jnp.float32)
        eps = 1e-5
        scale = gamma / jnp.sqrt(var + eps)
        shift = beta - mean * scale
        return scale, shift

    w1, b1 = lin(*dims[0]); s1, h1 = bn(dims[0][1])
    w2, b2 = lin(*dims[1]); s2, h2 = bn(dims[1][1])
    w3, b3 = lin(*dims[2])
    w4, b4 = lin(*dims[3])
    w5, b5 = lin(*dims[4])
    w6, b6 = lin(*dims[5])
    return [w1, b1, s1, h1, w2, b2, s2, h2, w3, b3, w4, b4, w5, b5, w6, b6]


def ref_forward(x, params):
    """Pure-JAX f32 reference (unfolded BatchNorm, plain softmax)."""
    (w1, b1, s1, h1, w2, b2, s2, h2, w3, b3, w4, b4, w5, b5, w6, b6) = params
    B, N, F = x.shape
    h = x.reshape(B * N, F)
    h = _leaky_relu((h @ w1 + b1) * s1 + h1)
    h = _leaky_relu((h @ w2 + b2) * s2 + h2)
    h = _leaky_relu(h @ w3 + b3)
    h = _leaky_relu(h @ w4 + b4)
    h = _leaky_relu(h @ w5 + b5)
    gate = jax.nn.sigmoid(h @ w6 + b6).reshape(B, N, 1)
    att = jax.nn.softmax(gate, axis=1)
    enc = jnp.sum(att * x, axis=1)
    return enc, att


if __name__ == "__main__":
    # 32 graphs of 8 nodes with 32 features -> one grid step of M = 256 MXU rows on
    # single-TC chips (v5e/v6e), or 2 parallel steps of M = 128 if 2 TCs (v7x) detected.
    B, N, F = 32, 8, 32
    key = jax.random.PRNGKey(0)
    kx, kp = jax.random.split(key)
    x = jax.random.normal(kx, (B, N, F), jnp.float32)
    params = make_params(kp, F)

    enc, att = molecular_pooling(x, params)
    enc = jax.block_until_ready(enc)
    att = jax.block_until_ready(att)

    enc_ref, att_ref = ref_forward(x, params)
    assert enc.shape == (B, F) and att.shape == (B, N, 1)
    assert jnp.allclose(enc, enc_ref, rtol=2e-2, atol=2e-2), \
        float(jnp.max(jnp.abs(enc - enc_ref)))
    assert jnp.allclose(att, att_ref, rtol=2e-2, atol=2e-2), \
        float(jnp.max(jnp.abs(att - att_ref)))

    print("KERNEL_OK")
</pallas_src>

<mosaic_0001>
module attributes {stable_mosaic.version = 11 : i64} {
  func.func @kernel(%arg0: i32, %arg1: memref<256x32xf32, #tpu.memory_space<vmem>>, %arg2: memref<32x128xbf16, #tpu.memory_space<vmem>>, %arg3: memref<1x128xf32, #tpu.memory_space<vmem>>, %arg4: memref<128x1024xbf16, #tpu.memory_space<vmem>>, %arg5: memref<1x1024xf32, #tpu.memory_space<vmem>>, %arg6: memref<1024x128xbf16, #tpu.memory_space<vmem>>, %arg7: memref<1x128xf32, #tpu.memory_space<vmem>>, %arg8: memref<128x128xbf16, #tpu.memory_space<vmem>>, %arg9: memref<1x128xf32, #tpu.memory_space<vmem>>, %arg10: memref<128x128xbf16, #tpu.memory_space<vmem>>, %arg11: memref<1x128xf32, #tpu.memory_space<vmem>>, %arg12: memref<1x128xf32, #tpu.memory_space<vmem>>, %arg13: memref<1x1xf32, #tpu.memory_space<vmem>>, %arg14: memref<256x32xf32, #tpu.memory_space<vmem>>, %arg15: memref<32x256xf32, #tpu.memory_space<vmem>>, %arg16: memref<1x32x32xf32, #tpu.memory_space<vmem>>, %arg17: memref<1x1x256xf32, #tpu.memory_space<vmem>>) attributes {dimension_semantics = [#tpu.dimension_semantics<parallel>], iteration_bounds = array<i64: 1>, scalar_prefetch = 0 : i64, scratch_operands = 0 : i64, tpu.core_type = #tpu.core_type<tc>, window_params = [{transform_indices = @transform_0, window_bounds = array<i64: 256, 32>}, {pipeline_mode = #tpu.pipeline_mode<synchronous>, transform_indices = @transform_1, window_bounds = array<i64: 32, 128>}, {pipeline_mode = #tpu.pipeline_mode<synchronous>, transform_indices = @transform_2, window_bounds = array<i64: 1, 128>}, {pipeline_mode = #tpu.pipeline_mode<synchronous>, transform_indices = @transform_3, window_bounds = array<i64: 128, 1024>}, {pipeline_mode = #tpu.pipeline_mode<synchronous>, transform_indices = @transform_4, window_bounds = array<i64: 1, 1024>}, {pipeline_mode = #tpu.pipeline_mode<synchronous>, transform_indices = @transform_5, window_bounds = array<i64: 1024, 128>}, {pipeline_mode = #tpu.pipeline_mode<synchronous>, transform_indices = @transform_6, window_bounds = array<i64: 1, 128>}, {pipeline_mode = #tpu.pipeline_mode<synchronous>, transform_indices = @transform_7, window_bounds = array<i64: 128, 128>}, {pipeline_mode = #tpu.pipeline_mode<synchronous>, transform_indices = @transform_8, window_bounds = array<i64: 1, 128>}, {pipeline_mode = #tpu.pipeline_mode<synchronous>, transform_indices = @transform_9, window_bounds = array<i64: 128, 128>}, {pipeline_mode = #tpu.pipeline_mode<synchronous>, transform_indices = @transform_10, window_bounds = array<i64: 1, 128>}, {pipeline_mode = #tpu.pipeline_mode<synchronous>, transform_indices = @transform_11, window_bounds = array<i64: 1, 128>}, {pipeline_mode = #tpu.pipeline_mode<synchronous>, transform_indices = @transform_12, window_bounds = array<i64: 1, 1>}, {pipeline_mode = #tpu.pipeline_mode<synchronous>, transform_indices = @transform_13, window_bounds = array<i64: 256, 32>}, {pipeline_mode = #tpu.pipeline_mode<synchronous>, transform_indices = @transform_14, window_bounds = array<i64: 32, 256>}, {transform_indices = @transform_15, window_bounds = array<i64: 1, 32, 32>}, {transform_indices = @transform_16, window_bounds = array<i64: 1, 1, 256>}]} {
    %c0 = arith.constant 0 : index
    %c0_0 = arith.constant 0 : index
    %0 = vector.load %arg1[%c0, %c0_0] : memref<256x32xf32, #tpu.memory_space<vmem>>, vector<256x32xf32>
    %1 = arith.truncf %0 : vector<256x32xf32> to vector<256x32xbf16>
    %c0_1 = arith.constant 0 : index
    %c0_2 = arith.constant 0 : index
    %2 = vector.load %arg2[%c0_1, %c0_2] : memref<32x128xbf16, #tpu.memory_space<vmem>>, vector<32x128xbf16>
    %cst = arith.constant dense<0.000000e+00> : vector<256x128xf32>
    %3 = tpu.matmul %1, %2, %cst {dimension_numbers = #tpu.dot_dimension_numbers<[1], [0], [0], [1], [0, 0, 1, 1], [], []>} : vector<256x32xbf16>, vector<32x128xbf16>, vector<256x128xf32> -> vector<256x128xf32>
    %c0_3 = arith.constant 0 : index
    %c0_4 = arith.constant 0 : index
    %4 = vector.load %arg3[%c0_3, %c0_4] : memref<1x128xf32, #tpu.memory_space<vmem>>, vector<1x128xf32>
    %5 = vector.broadcast %4 : vector<1x128xf32> to vector<256x128xf32>
    %6 = arith.addf %3, %5 : vector<256x128xf32>
    %7 = arith.truncf %6 : vector<256x128xf32> to vector<256x128xbf16>
    %cst_5 = arith.constant 0.000000e+00 : bf16
    %8 = vector.broadcast %cst_5 : bf16 to vector<256x128xbf16>
    %9 = arith.cmpf ogt, %7, %8 : vector<256x128xbf16>
    %cst_6 = arith.constant 1.000980e-02 : bf16
    %10 = vector.broadcast %cst_6 : bf16 to vector<256x128xbf16>
    %11 = arith.mulf %10, %7 : vector<256x128xbf16>
    %12 = arith.select %9, %7, %11 : vector<256x128xi1>, vector<256x128xbf16>
    %c0_7 = arith.constant 0 : index
    %c0_8 = arith.constant 0 : index
    %13 = vector.load %arg4[%c0_7, %c0_8] : memref<128x1024xbf16, #tpu.memory_space<vmem>>, vector<128x1024xbf16>
    %cst_9 = arith.constant dense<0.000000e+00> : vector<256x1024xf32>
    %14 = tpu.matmul %12, %13, %cst_9 {dimension_numbers = #tpu.dot_dimension_numbers<[1], [0], [0], [1], [0, 0, 1, 1], [], []>} : vector<256x128xbf16>, vector<128x1024xbf16>, vector<256x1024xf32> -> vector<256x1024xf32>
    %c0_10 = arith.constant 0 : index
    %c0_11 = arith.constant 0 : index
    %15 = vector.load %arg5[%c0_10, %c0_11] : memref<1x1024xf32, #tpu.memory_space<vmem>>, vector<1x1024xf32>
    %16 = vector.broadcast %15 : vector<1x1024xf32> to vector<256x1024xf32>
    %17 = arith.addf %14, %16 : vector<256x1024xf32>
    %18 = arith.truncf %17 : vector<256x1024xf32> to vector<256x1024xbf16>
    %cst_12 = arith.constant 0.000000e+00 : bf16
    %19 = vector.broadcast %cst_12 : bf16 to vector<256x1024xbf16>
    %20 = arith.cmpf ogt, %18, %19 : vector<256x1024xbf16>
    %cst_13 = arith.constant 1.000980e-02 : bf16
    %21 = vector.broadcast %cst_13 : bf16 to vector<256x1024xbf16>
    %22 = arith.mulf %21, %18 : vector<256x1024xbf16>
    %23 = arith.select %20, %18, %22 : vector<256x1024xi1>, vector<256x1024xbf16>
    %c0_14 = arith.constant 0 : index
    %c0_15 = arith.constant 0 : index
    %24 = vector.load %arg6[%c0_14, %c0_15] : memref<1024x128xbf16, #tpu.memory_space<vmem>>, vector<1024x128xbf16>
    %cst_16 = arith.constant dense<0.000000e+00> : vector<256x128xf32>
    %25 = tpu.matmul %23, %24, %cst_16 {dimension_numbers = #tpu.dot_dimension_numbers<[1], [0], [0], [1], [0, 0, 1, 1], [], []>} : vector<256x1024xbf16>, vector<1024x128xbf16>, vector<256x128xf32> -> vector<256x128xf32>
    %c0_17 = arith.constant 0 : index
    %c0_18 = arith.constant 0 : index
    %26 = vector.load %arg7[%c0_17, %c0_18] : memref<1x128xf32, #tpu.memory_space<vmem>>, vector<1x128xf32>
    %27 = vector.broadcast %26 : vector<1x128xf32> to vector<256x128xf32>
    %28 = arith.addf %25, %27 : vector<256x128xf32>
    %29 = arith.truncf %28 : vector<256x128xf32> to vector<256x128xbf16>
    %cst_19 = arith.constant 0.000000e+00 : bf16
    %30 = vector.broadcast %cst_19 : bf16 to vector<256x128xbf16>
    %31 = arith.cmpf ogt, %29, %30 : vector<256x128xbf16>
    %cst_20 = arith.constant 1.000980e-02 : bf16
    %32 = vector.broadcast %cst_20 : bf16 to vector<256x128xbf16>
    %33 = arith.mulf %32, %29 : vector<256x128xbf16>
    %34 = arith.select %31, %29, %33 : vector<256x128xi1>, vector<256x128xbf16>
    %c0_21 = arith.constant 0 : index
    %c0_22 = arith.constant 0 : index
    %35 = vector.load %arg8[%c0_21, %c0_22] : memref<128x128xbf16, #tpu.memory_space<vmem>>, vector<128x128xbf16>
    %cst_23 = arith.constant dense<0.000000e+00> : vector<256x128xf32>
    %36 = tpu.matmul %34, %35, %cst_23 {dimension_numbers = #tpu.dot_dimension_numbers<[1], [0], [0], [1], [0, 0, 1, 1], [], []>} : vector<256x128xbf16>, vector<128x128xbf16>, vector<256x128xf32> -> vector<256x128xf32>
    %c0_24 = arith.constant 0 : index
    %c0_25 = arith.constant 0 : index
    %37 = vector.load %arg9[%c0_24, %c0_25] : memref<1x128xf32, #tpu.memory_space<vmem>>, vector<1x128xf32>
    %38 = vector.broadcast %37 : vector<1x128xf32> to vector<256x128xf32>
    %39 = arith.addf %36, %38 : vector<256x128xf32>
    %40 = arith.truncf %39 : vector<256x128xf32> to vector<256x128xbf16>
    %cst_26 = arith.constant 0.000000e+00 : bf16
    %41 = vector.broadcast %cst_26 : bf16 to vector<256x128xbf16>
    %42 = arith.cmpf ogt, %40, %41 : vector<256x128xbf16>
    %cst_27 = arith.constant 1.000980e-02 : bf16
    %43 = vector.broadcast %cst_27 : bf16 to vector<256x128xbf16>
    %44 = arith.mulf %43, %40 : vector<256x128xbf16>
    %45 = arith.select %42, %40, %44 : vector<256x128xi1>, vector<256x128xbf16>
    %c0_28 = arith.constant 0 : index
    %c0_29 = arith.constant 0 : index
    %46 = vector.load %arg10[%c0_28, %c0_29] : memref<128x128xbf16, #tpu.memory_space<vmem>>, vector<128x128xbf16>
    %cst_30 = arith.constant dense<0.000000e+00> : vector<256x128xf32>
    %47 = tpu.matmul %45, %46, %cst_30 {dimension_numbers = #tpu.dot_dimension_numbers<[1], [0], [0], [1], [0, 0, 1, 1], [], []>} : vector<256x128xbf16>, vector<128x128xbf16>, vector<256x128xf32> -> vector<256x128xf32>
    %c0_31 = arith.constant 0 : index
    %c0_32 = arith.constant 0 : index
    %48 = vector.load %arg11[%c0_31, %c0_32] : memref<1x128xf32, #tpu.memory_space<vmem>>, vector<1x128xf32>
    %49 = vector.broadcast %48 : vector<1x128xf32> to vector<256x128xf32>
    %50 = arith.addf %47, %49 : vector<256x128xf32>
    %51 = arith.truncf %50 : vector<256x128xf32> to vector<256x128xbf16>
    %cst_33 = arith.constant 0.000000e+00 : bf16
    %52 = vector.broadcast %cst_33 : bf16 to vector<256x128xbf16>
    %53 = arith.cmpf ogt, %51, %52 : vector<256x128xbf16>
    %cst_34 = arith.constant 1.000980e-02 : bf16
    %54 = vector.broadcast %cst_34 : bf16 to vector<256x128xbf16>
    %55 = arith.mulf %54, %51 : vector<256x128xbf16>
    %56 = arith.select %53, %51, %55 : vector<256x128xi1>, vector<256x128xbf16>
    %c0_35 = arith.constant 0 : index
    %c0_36 = arith.constant 0 : index
    %57 = vector.load %arg12[%c0_35, %c0_36] : memref<1x128xf32, #tpu.memory_space<vmem>>, vector<1x128xf32>
    %58 = arith.extf %56 : vector<256x128xbf16> to vector<256x128xf32>
    %cst_37 = arith.constant dense<0.000000e+00> : vector<1x256xf32>
    %59 = tpu.matmul %57, %58, %cst_37 {dimension_numbers = #tpu.dot_dimension_numbers<[1], [1], [0], [0], [0, 0, 1, 0], [], []>} : vector<1x128xf32>, vector<256x128xf32>, vector<1x256xf32> -> vector<1x256xf32>
    %c0_38 = arith.constant 0 : index
    %c0_39 = arith.constant 0 : index
    %60 = vector.load %arg13[%c0_38, %c0_39] : memref<1x1xf32, #tpu.memory_space<vmem>>, vector<1x1xf32>
    %61 = vector.broadcast %60 : vector<1x1xf32> to vector<1x256xf32>
    %62 = arith.addf %59, %61 : vector<1x256xf32>
    %63 = math.absf %62 : vector<1x256xf32>
    %cst_40 = arith.constant 0.000000e+00 : f32
    %64 = vector.broadcast %cst_40 : f32 to vector<1x256xf32>
    %65 = arith.subf %64, %63 : vector<1x256xf32>
    %66 = math.exp %65 : vector<1x256xf32>
    %cst_41 = arith.constant 1.000000e+00 : f32
    %67 = vector.broadcast %cst_41 : f32 to vector<1x256xf32>
    %68 = arith.addf %67, %66 : vector<1x256xf32>
    %cst_42 = arith.constant 1.000000e+00 : f32
    %69 = vector.broadcast %cst_42 : f32 to vector<1x256xf32>
    %70 = arith.divf %69, %68 : vector<1x256xf32>
    %cst_43 = arith.constant 0.000000e+00 : f32
    %71 = vector.broadcast %cst_43 : f32 to vector<1x256xf32>
    %72 = arith.cmpf oge, %62, %71 : vector<1x256xf32>
    %cst_44 = arith.constant 1.000000e+00 : f32
    %73 = vector.broadcast %cst_44 : f32 to vector<1x256xf32>
    %74 = arith.subf %73, %70 : vector<1x256xf32>
    %75 = arith.select %72, %70, %74 : vector<1x256xi1>, vector<1x256xf32>
    %76 = math.exp %75 : vector<1x256xf32>
    %c0_45 = arith.constant 0 : index
    %c0_46 = arith.constant 0 : index
    %77 = vector.load %arg14[%c0_45, %c0_46] : memref<256x32xf32, #tpu.memory_space<vmem>>, vector<256x32xf32>
    %cst_47 = arith.constant dense<0.000000e+00> : vector<1x32xf32>
    %78 = tpu.matmul %76, %77, %cst_47 {dimension_numbers = #tpu.dot_dimension_numbers<[1], [0], [0], [1], [0, 0, 1, 1], [], []>} : vector<1x256xf32>, vector<256x32xf32>, vector<1x32xf32> -> vector<1x32xf32>
    %c0_48 = arith.constant 0 : index
    %c0_49 = arith.constant 0 : index
    %79 = vector.load %arg15[%c0_48, %c0_49] : memref<32x256xf32, #tpu.memory_space<vmem>>, vector<32x256xf32>
    %cst_50 = arith.constant dense<0.000000e+00> : vector<1x256xf32>
    %80 = tpu.matmul %78, %79, %cst_50 {dimension_numbers = #tpu.dot_dimension_numbers<[1], [0], [0], [1], [0, 0, 1, 1], [], []>} : vector<1x32xf32>, vector<32x256xf32>, vector<1x256xf32> -> vector<1x256xf32>
    %cst_51 = arith.constant 1.000000e+00 : f32
    %81 = vector.broadcast %cst_51 : f32 to vector<1x256xf32>
    %82 = arith.maximumf %80, %81 : vector<1x256xf32>
    %83 = tpu.reciprocal %82 {approx = true} : vector<1x256xf32> -> vector<1x256xf32>
    %84 = arith.mulf %76, %83 : vector<1x256xf32>
    %c0_52 = arith.constant 0 : index
    %c0_53 = arith.constant 0 : index
    %c0_54 = arith.constant 0 : index
    %85 = vector.load %arg17[%c0_52, %c0_53, %c0_54] : memref<1x1x256xf32, #tpu.memory_space<vmem>>, vector<1x1x256xf32>
    %86 = vector.shape_cast %85 : vector<1x1x256xf32> to vector<1x256xf32>
    %87 = vector.shape_cast %84 : vector<1x256xf32> to vector<1x1x256xf32>
    tpu.vector_store %arg17[%c0_52, %c0_53, %c0_54], %87 {strides = array<i32>} : memref<1x1x256xf32, #tpu.memory_space<vmem>>, vector<1x1x256xf32>,
    %c0_55 = arith.constant 0 : index
    %c0_56 = arith.constant 0 : index
    %88 = vector.load %arg15[%c0_55, %c0_56] : memref<32x256xf32, #tpu.memory_space<vmem>>, vector<32x256xf32>
    %89 = vector.broadcast %84 : vector<1x256xf32> to vector<32x256xf32>
    %90 = arith.mulf %88, %89 : vector<32x256xf32>
    %cst_57 = arith.constant dense<0.000000e+00> : vector<32x32xf32>
    %91 = tpu.matmul %90, %0, %cst_57 {dimension_numbers = #tpu.dot_dimension_numbers<[1], [0], [0], [1], [0, 0, 1, 1], [], []>} : vector<32x256xf32>, vector<256x32xf32>, vector<32x32xf32> -> vector<32x32xf32>
    %c0_58 = arith.constant 0 : index
    %c0_59 = arith.constant 0 : index
    %c0_60 = arith.constant 0 : index
    %92 = vector.load %arg16[%c0_58, %c0_59, %c0_60] : memref<1x32x32xf32, #tpu.memory_space<vmem>>, vector<1x32x32xf32>
    %93 = vector.shape_cast %92 : vector<1x32x32xf32> to vector<32x32xf32>
    %94 = vector.shape_cast %91 : vector<32x32xf32> to vector<1x32x32xf32>
    tpu.vector_store %arg16[%c0_58, %c0_59, %c0_60], %94 {strides = array<i32>} : memref<1x32x32xf32, #tpu.memory_space<vmem>>, vector<1x32x32xf32>,
    return
  }
  func.func @transform_0(%arg0: i32) -> (i32, i32) {
    %c0_i32 = arith.constant 0 : i32
    %c0_i32_0 = arith.constant 0 : i32
    return %arg0, %c0_i32 : i32, i32
  }
  func.func @transform_1(%arg0: i32) -> (i32, i32) {
    %c0_i32 = arith.constant 0 : i32
    %c0_i32_0 = arith.constant 0 : i32
    %c0_i32_1 = arith.constant 0 : i32
    return %c0_i32, %c0_i32_0 : i32, i32
  }
  func.func @transform_2(%arg0: i32) -> (i32, i32) {
    %c0_i32 = arith.constant 0 : i32
    %c0_i32_0 = arith.constant 0 : i32
    %c0_i32_1 = arith.constant 0 : i32
    return %c0_i32, %c0_i32_0 : i32, i32
  }
  func.func @transform_3(%arg0: i32) -> (i32, i32) {
    %c0_i32 = arith.constant 0 : i32
    %c0_i32_0 = arith.constant 0 : i32
    %c0_i32_1 = arith.constant 0 : i32
    return %c0_i32, %c0_i32_0 : i32, i32
  }
  func.func @transform_4(%arg0: i32) -> (i32, i32) {
    %c0_i32 = arith.constant 0 : i32
    %c0_i32_0 = arith.constant 0 : i32
    %c0_i32_1 = arith.constant 0 : i32
    return %c0_i32, %c0_i32_0 : i32, i32
  }
  func.func @transform_5(%arg0: i32) -> (i32, i32) {
    %c0_i32 = arith.constant 0 : i32
    %c0_i32_0 = arith.constant 0 : i32
    %c0_i32_1 = arith.constant 0 : i32
    return %c0_i32, %c0_i32_0 : i32, i32
  }
  func.func @transform_6(%arg0: i32) -> (i32, i32) {
    %c0_i32 = arith.constant 0 : i32
    %c0_i32_0 = arith.constant 0 : i32
    %c0_i32_1 = arith.constant 0 : i32
    return %c0_i32, %c0_i32_0 : i32, i32
  }
  func.func @transform_7(%arg0: i32) -> (i32, i32) {
    %c0_i32 = arith.constant 0 : i32
    %c0_i32_0 = arith.constant 0 : i32
    %c0_i32_1 = arith.constant 0 : i32
    return %c0_i32, %c0_i32_0 : i32, i32
  }
  func.func @transform_8(%arg0: i32) -> (i32, i32) {
    %c0_i32 = arith.constant 0 : i32
    %c0_i32_0 = arith.constant 0 : i32
    %c0_i32_1 = arith.constant 0 : i32
    return %c0_i32, %c0_i32_0 : i32, i32
  }
  func.func @transform_9(%arg0: i32) -> (i32, i32) {
    %c0_i32 = arith.constant 0 : i32
    %c0_i32_0 = arith.constant 0 : i32
    %c0_i32_1 = arith.constant 0 : i32
    return %c0_i32, %c0_i32_0 : i32, i32
  }
  func.func @transform_10(%arg0: i32) -> (i32, i32) {
    %c0_i32 = arith.constant 0 : i32
    %c0_i32_0 = arith.constant 0 : i32
    %c0_i32_1 = arith.constant 0 : i32
    return %c0_i32, %c0_i32_0 : i32, i32
  }
  func.func @transform_11(%arg0: i32) -> (i32, i32) {
    %c0_i32 = arith.constant 0 : i32
    %c0_i32_0 = arith.constant 0 : i32
    %c0_i32_1 = arith.constant 0 : i32
    return %c0_i32, %c0_i32_0 : i32, i32
  }
  func.func @transform_12(%arg0: i32) -> (i32, i32) {
    %c0_i32 = arith.constant 0 : i32
    %c0_i32_0 = arith.constant 0 : i32
    %c0_i32_1 = arith.constant 0 : i32
    return %c0_i32, %c0_i32_0 : i32, i32
  }
  func.func @transform_13(%arg0: i32) -> (i32, i32) {
    %c0_i32 = arith.constant 0 : i32
    %c0_i32_0 = arith.constant 0 : i32
    %c0_i32_1 = arith.constant 0 : i32
    return %c0_i32, %c0_i32_0 : i32, i32
  }
  func.func @transform_14(%arg0: i32) -> (i32, i32) {
    %c0_i32 = arith.constant 0 : i32
    %c0_i32_0 = arith.constant 0 : i32
    %c0_i32_1 = arith.constant 0 : i32
    return %c0_i32, %c0_i32_0 : i32, i32
  }
  func.func @transform_15(%arg0: i32) -> (i32, i32, i32) {
    %c0_i32 = arith.constant 0 : i32
    %c0_i32_0 = arith.constant 0 : i32
    %c0_i32_1 = arith.constant 0 : i32
    return %arg0, %c0_i32, %c0_i32_0 : i32, i32, i32
  }
  func.func @transform_16(%arg0: i32) -> (i32, i32, i32) {
    %c0_i32 = arith.constant 0 : i32
    %c0_i32_0 = arith.constant 0 : i32
    %c0_i32_1 = arith.constant 0 : i32
    return %arg0, %c0_i32, %c0_i32_0 : i32, i32, i32
  }
}

</mosaic_0001>

<llo_original>
// kernel: tpu_custom_call.1
$region0: #{tpu_custom_call.1}
  #allocation0 [shape = 'u32[]', space=smem, size = 0x4, offset = 0x4, fixed_abs, tag = 'smem constant byte address 0x4 - core index']
  #allocation1 [shape = 'u32[144,128]{1,0:T(1,128)}', space=vmem, size = 0x12000, scoped, tag = 'internal scratch']
  #allocation2 [shape = 'f32[1,1]{1,0:T(1,128)S(1)}', space=vmem, size = 0x200, scoped, tag = 'scoped memory for tpu_custom_call.1']
  %s0 = inlined_call_operand.vmem [shape: f32[256,32], index: 0, kind: input, shape index: {}]
  %s1 = inlined_call_operand.vmem [shape: bf16[32,128], index: 1, kind: input, shape index: {}]
  %s2 = inlined_call_operand.vmem [shape: f32[1,128], index: 2, kind: input, shape index: {}]
  %s3 = inlined_call_operand.vmem [shape: bf16[128,1024], index: 3, kind: input, shape index: {}]
  %s4 = inlined_call_operand.hbm [shape: f32[1,1024], index: 4, kind: input, shape index: {}]
  %s5 = inlined_call_operand.hbm [shape: bf16[1024,128], index: 5, kind: input, shape index: {}]
  %s6 = inlined_call_operand.vmem [shape: f32[1,128], index: 6, kind: input, shape index: {}]
  %s7 = inlined_call_operand.vmem [shape: bf16[128,128], index: 7, kind: input, shape index: {}]
  %s8 = inlined_call_operand.vmem [shape: f32[1,128], index: 8, kind: input, shape index: {}]
  %s9 = inlined_call_operand.hbm [shape: bf16[128,128], index: 9, kind: input, shape index: {}]
  %s10 = inlined_call_operand.vmem [shape: f32[1,128], index: 10, kind: input, shape index: {}]
  %s11 = inlined_call_operand.vmem [shape: f32[1,128], index: 11, kind: input, shape index: {}]
  %s12 = inlined_call_operand.<no memory space> [shape: f32[1,1], index: 12, kind: input, shape index: {}]
  %s13 = inlined_call_operand.vmem [shape: f32[256,32], index: 13, kind: input, shape index: {}]
  %s14 = inlined_call_operand.hbm [shape: f32[32,256], index: 14, kind: input, shape index: {}]
  %s15 = inlined_call_operand.hbm [shape: f32[1,32,32], index: 15, kind: output, shape index: {0}]
  %s16 = inlined_call_operand.hbm [shape: f32[1,1,256], index: 16, kind: output, shape index: {1}]
  %17 = xla_tuple %s15, %s16
  %s18 = sld [smem:[#allocation0]]
  $region94: #{tpu_custom_call.1} parent=0
    _
  %s20 = ssub.s32 1, %s18
  %s21 = scalar_select 0, %s20, %s18
  %v22 = vstv %s12
  %23 = vst [vmem:[#allocation2] sm:$0x1] %v22
  $region1: #{tpu_custom_call.1} parent=0
    #allocation3 [shape = 'u8[4096]{0}', space=vmem, size = 0x1000, scoped, tag = 'input window, operand 4, single buffered']
    #allocation4 [shape = 's32[1]{0}', space=sflag, size = 0x4, scoped, tag = 'scoped memory for tpu_custom_call.1']
    #allocation5 [shape = 's32[1]{0}', space=sflag, size = 0x4, scoped, tag = 'scoped memory for tpu_custom_call.1']
    #allocation6 [shape = 'u8[262144]{0}', space=vmem, size = 0x40000, scoped, tag = 'input window, operand 5, single buffered']
    #allocation7 [shape = 's32[1]{0}', space=sflag, size = 0x4, scoped, tag = 'scoped memory for tpu_custom_call.1']
    #allocation8 [shape = 'u8[32768]{0}', space=vmem, size = 0x8000, scoped, tag = 'input window, operand 9, single buffered']
    #allocation9 [shape = 'u8[32768]{0}', space=vmem, size = 0x8000, scoped, tag = 'input window, operand 14, single buffered']
    #allocation10 [shape = 's32[1]{0}', space=sflag, size = 0x4, scoped, tag = 'scoped memory for tpu_custom_call.1']
    #allocation11 [shape = 'u8[16384]{0}', space=vmem, size = 0x4000, scoped, tag = 'output window, operand 0, single buffered']
    #allocation12 [shape = 'u8[1024]{0}', space=vmem, size = 0x400, scoped, tag = 'output window, operand 1, single buffered']
    #allocation13 [shape = 's32[1]{0}', space=sflag, size = 0x4, scoped, tag = 'scoped memory for tpu_custom_call.1']
    %24 = vsyncpa [#allocation4], 0
    %25 = vsyncpa [#allocation7], 0
    %26 = vsyncpa [#allocation10], 0
    %27 = vsyncpa [#allocation5], 0
    %28 = vsyncpa [#allocation13], 0
    // Predicated region
    $region2: #{tpu_custom_call.1} parent=1 // pred_check
      _
    $region3: #{tpu_custom_call.1} parent=1 // pred_check_branch
      %30 = sbr.rel (0) target = $region5
    $region4: #{tpu_custom_call.1} parent=1 // pred_region
      _
    $region5: #{tpu_custom_call.1} parent=1 // pred_fallthru
      _
    // Predicated region
    $region6: #{tpu_custom_call.1} parent=1 // pred_check
      _
    $region7: #{tpu_custom_call.1} parent=1 // pred_check_branch
      %32 = sbr.rel (0) target = $region9
    $region8: #{tpu_custom_call.1} parent=1 // pred_region
      _
    $region9: #{tpu_custom_call.1} parent=1 // pred_fallthru
      _
    // Predicated region
    $region10: #{tpu_custom_call.1} parent=1 // pred_check
      _
    $region11: #{tpu_custom_call.1} parent=1 // pred_check_branch
      %34 = sbr.rel (0) target = $region13
    $region12: #{tpu_custom_call.1} parent=1 // pred_region
      _
    $region13: #{tpu_custom_call.1} parent=1 // pred_fallthru
      _
    // Predicated region
    $region14: #{tpu_custom_call.1} parent=1 // pred_check
      _
    $region15: #{tpu_custom_call.1} parent=1 // pred_check_branch
      %36 = sbr.rel (0) target = $region17
    $region16: #{tpu_custom_call.1} parent=1 // pred_region
      _
    $region17: #{tpu_custom_call.1} parent=1 // pred_fallthru
      _
    // Predicated region
    $region18: #{tpu_custom_call.1} parent=1 // pred_check
      _
    $region19: #{tpu_custom_call.1} parent=1 // pred_check_branch
      %38 = sbr.rel (0) target = $region21
    $region20: #{tpu_custom_call.1} parent=1 // pred_region
      %s40 = ssub.s32 128, 128
      %41 = vsyncadd [#allocation4], %s40
      %s43 = sshll.u32 [#allocation3], 4
      %s44 = int_to_ptr.vmem [resolvable:$true] %s43
      %46 = dma.hbm_to_vmem [thread:$0]  %s4, 128, %s44, [#allocation4]
    $region21: #{tpu_custom_call.1} parent=1 // pred_fallthru
      _
    // Predicated region
    $region22: #{tpu_custom_call.1} parent=1 // pred_check
      _
    $region23: #{tpu_custom_call.1} parent=1 // pred_check_branch
      %48 = sbr.rel (0) target = $region25
    $region24: #{tpu_custom_call.1} parent=1 // pred_region
      %s50 = ssub.s32 8192, 8192
      %51 = vsyncadd [#allocation7], %s50
      %s52 = sshll.u32 [#allocation6], 4
      %s53 = int_to_ptr.vmem [resolvable:$true] %s52
      %58 = dma.hbm_to_vmem [thread:$0]  %s5, 8192, %s53, [#allocation7], 64, 64, 4
    $region25: #{tpu_custom_call.1} parent=1 // pred_fallthru
      _
    // Predicated region
    $region26: #{tpu_custom_call.1} parent=1 // pred_check
      _
    $region27: #{tpu_custom_call.1} parent=1 // pred_check_branch
      %60 = sbr.rel (0) target = $region29
    $region28: #{tpu_custom_call.1} parent=1 // pred_region
      _
    $region29: #{tpu_custom_call.1} parent=1 // pred_fallthru
      _
    // Predicated region
    $region30: #{tpu_custom_call.1} parent=1 // pred_check
      _
    $region31: #{tpu_custom_call.1} parent=1 // pred_check_branch
      %62 = sbr.rel (0) target = $region33
    $region32: #{tpu_custom_call.1} parent=1 // pred_region
      _
    $region33: #{tpu_custom_call.1} parent=1 // pred_fallthru
      _
    // Predicated region
    $region34: #{tpu_custom_call.1} parent=1 // pred_check
      _
    $region35: #{tpu_custom_call.1} parent=1 // pred_check_branch
      %64 = sbr.rel (0) target = $region37
    $region36: #{tpu_custom_call.1} parent=1 // pred_region
      _
    $region37: #{tpu_custom_call.1} parent=1 // pred_fallthru
      _
    // Predicated region
    $region38: #{tpu_custom_call.1} parent=1 // pred_check
      _
    $region39: #{tpu_custom_call.1} parent=1 // pred_check_branch
      %66 = sbr.rel (0) target = $region41
    $region40: #{tpu_custom_call.1} parent=1 // pred_region
      %s68 = ssub.s32 1024, 1024
      %69 = vsyncadd [#allocation7], %s68
      %s70 = sshll.u32 [#allocation8], 4
      %s71 = int_to_ptr.vmem [resolvable:$true] %s70
      %76 = dma.hbm_to_vmem [thread:$0]  %s9, 1024, %s71, [#allocation7], 64, 64, 4
    $region41: #{tpu_custom_call.1} parent=1 // pred_fallthru
      _
    // Predicated region
    $region42: #{tpu_custom_call.1} parent=1 // pred_check
      _
    $region43: #{tpu_custom_call.1} parent=1 // pred_check_branch
      %78 = sbr.rel (0) target = $region45
    $region44: #{tpu_custom_call.1} parent=1 // pred_region
      _
    $region45: #{tpu_custom_call.1} parent=1 // pred_fallthru
      _
    // Predicated region
    $region46: #{tpu_custom_call.1} parent=1 // pred_check
      _
    $region47: #{tpu_custom_call.1} parent=1 // pred_check_branch
      %80 = sbr.rel (0) target = $region49
    $region48: #{tpu_custom_call.1} parent=1 // pred_region
      _
    $region49: #{tpu_custom_call.1} parent=1 // pred_fallthru
      _
    // Predicated region
    $region50: #{tpu_custom_call.1} parent=1 // pred_check
      _
    $region51: #{tpu_custom_call.1} parent=1 // pred_check_branch
      %82 = sbr.rel (0) target = $region53
    $region52: #{tpu_custom_call.1} parent=1 // pred_region
      _
    $region53: #{tpu_custom_call.1} parent=1 // pred_fallthru
      _
    // Predicated region
    $region54: #{tpu_custom_call.1} parent=1 // pred_check
      _
    $region55: #{tpu_custom_call.1} parent=1 // pred_check_branch
      %84 = sbr.rel (0) target = $region57
    $region56: #{tpu_custom_call.1} parent=1 // pred_region
      _
    $region57: #{tpu_custom_call.1} parent=1 // pred_fallthru
      _
    // Predicated region
    $region58: #{tpu_custom_call.1} parent=1 // pred_check
      _
    $region59: #{tpu_custom_call.1} parent=1 // pred_check_branch
      %86 = sbr.rel (0) target = $region61
    $region60: #{tpu_custom_call.1} parent=1 // pred_region
      %s88 = ssub.s32 1024, 1024
      %89 = vsyncadd [#allocation10], %s88
      %s90 = sshll.u32 [#allocation9], 4
      %s91 = int_to_ptr.vmem [resolvable:$true] %s90
      %96 = dma.hbm_to_vmem [thread:$0]  %s14, 1024, %s91, [#allocation10], 256, 256, 16
    $region61: #{tpu_custom_call.1} parent=1 // pred_fallthru
      _
    // Predicated region
    $region62: #{tpu_custom_call.1} parent=1 // pred_check
      _
    $region63: #{tpu_custom_call.1} parent=1 // pred_check_branch
      %98 = sbr.rel (0) target = $region65
    $region64: #{tpu_custom_call.1} parent=1 // pred_region
      %99 = dma.done [#allocation4], 128
    $region65: #{tpu_custom_call.1} parent=1 // pred_fallthru
      _
    // Predicated region
    $region66: #{tpu_custom_call.1} parent=1 // pred_check
      _
    $region67: #{tpu_custom_call.1} parent=1 // pred_check_branch
      %101 = sbr.rel (0) target = $region69
    $region68: #{tpu_custom_call.1} parent=1 // pred_region
      %102 = dma.done [#allocation7], 8192
    $region69: #{tpu_custom_call.1} parent=1 // pred_fallthru
      _
    // Predicated region
    $region70: #{tpu_custom_call.1} parent=1 // pred_check
      _
    $region71: #{tpu_custom_call.1} parent=1 // pred_check_branch
      %104 = sbr.rel (0) target = $region73
    $region72: #{tpu_custom_call.1} parent=1 // pred_region
      %105 = dma.done [#allocation7], 1024
    $region73: #{tpu_custom_call.1} parent=1 // pred_fallthru
      _
    // Predicated region
    $region74: #{tpu_custom_call.1} parent=1 // pred_check
      _
    $region75: #{tpu_custom_call.1} parent=1 // pred_check_branch
      %107 = sbr.rel (0) target = $region77
    $region76: #{tpu_custom_call.1} parent=1 // pred_region
      %108 = dma.done [#allocation10], 1024
    $region77: #{tpu_custom_call.1} parent=1 // pred_fallthru
      _
    %v111 = vld [vmem:[%s0] sm:$0xff]
    %v112 = vld [vmem:[%s0 + $0x8] sm:$0xff]
    %v113 = vld [vmem:[%s0 + $0x10] sm:$0xff]
    %v114 = vld [vmem:[%s0 + $0x18] sm:$0xff]
    %v115 = vld [vmem:[%s0 + $0x20] sm:$0xff]
    %v116 = vld [vmem:[%s0 + $0x28] sm:$0xff]
    %v117 = vld [vmem:[%s0 + $0x30] sm:$0xff]
    %v118 = vld [vmem:[%s0 + $0x38] sm:$0xff]
    %v119 = vld [vmem:[%s0 + $0x40] sm:$0xff]
    %v120 = vld [vmem:[%s0 + $0x48] sm:$0xff]
    %v121 = vld [vmem:[%s0 + $0x50] sm:$0xff]
    %v122 = vld [vmem:[%s0 + $0x58] sm:$0xff]
    %v123 = vld [vmem:[%s0 + $0x60] sm:$0xff]
    %v124 = vld [vmem:[%s0 + $0x68] sm:$0xff]
    %v125 = vld [vmem:[%s0 + $0x70] sm:$0xff]
    %v126 = vld [vmem:[%s0 + $0x78] sm:$0xff]
    %v127 = vld [vmem:[%s0 + $0x80] sm:$0xff]
    %v128 = vld [vmem:[%s0 + $0x88] sm:$0xff]
    %v129 = vld [vmem:[%s0 + $0x90] sm:$0xff]
    %v130 = vld [vmem:[%s0 + $0x98] sm:$0xff]
    %v131 = vld [vmem:[%s0 + $0xa0] sm:$0xff]
    %v132 = vld [vmem:[%s0 + $0xa8] sm:$0xff]
    %v133 = vld [vmem:[%s0 + $0xb0] sm:$0xff]
    %v134 = vld [vmem:[%s0 + $0xb8] sm:$0xff]
    %v135 = vld [vmem:[%s0 + $0xc0] sm:$0xff]
    %v136 = vld [vmem:[%s0 + $0xc8] sm:$0xff]
    %v137 = vld [vmem:[%s0 + $0xd0] sm:$0xff]
    %v138 = vld [vmem:[%s0 + $0xd8] sm:$0xff]
    %v139 = vld [vmem:[%s0 + $0xe0] sm:$0xff]
    %v140 = vld [vmem:[%s0 + $0xe8] sm:$0xff]
    %v141 = vld [vmem:[%s0 + $0xf0] sm:$0xff]
    %v142 = vld [vmem:[%s0 + $0xf8] sm:$0xff]
    %v143 = vpack.c.bf16 %v112, %v111
    %v144 = vpack.c.bf16 %v114, %v113
    %v145 = vpack.c.bf16 %v116, %v115
    %v146 = vpack.c.bf16 %v118, %v117
    %v147 = vpack.c.bf16 %v120, %v119
    %v148 = vpack.c.bf16 %v122, %v121
    %v149 = vpack.c.bf16 %v124, %v123
    %v150 = vpack.c.bf16 %v126, %v125
    %v151 = vpack.c.bf16 %v128, %v127
    %v152 = vpack.c.bf16 %v130, %v129
    %v153 = vpack.c.bf16 %v132, %v131
    %v154 = vpack.c.bf16 %v134, %v133
    %v155 = vpack.c.bf16 %v136, %v135
    %v156 = vpack.c.bf16 %v138, %v137
    %v157 = vpack.c.bf16 %v140, %v139
    %v158 = vpack.c.bf16 %v142, %v141
    %v159 = vld [vmem:[%s1] sm:$0xf]
    %v160 = vld [vmem:[%s1 + $0x4] sm:$0xf]
    %v161 = vld [vmem:[%s1 + $0x8] sm:$0xf]
    %v162 = vld [vmem:[%s1 + $0xc] sm:$0xf]
    %v163 = vld [vmem:[%s2] sm:$0x1]
    %v165 = vlaneseq
    %v166 = vshrl.u32 %v165, 7
    %v167 = vsub.s32 0, %v166
    %v168 = vrot.slane %v163, %v167
    %v174 = vunpack.c.l.b16 %v159
    %v175 = vunpack.c.l.b16 %v160
    %v176 = vunpack.c.l.b16 %v161
    %v177 = vunpack.c.l.b16 %v162
    %v178 = vpack.c.b16 %v175, %v174
    %v179 = vpack.c.b16 %v177, %v176
    %vm182 = vcmask 261120
    %v184 = vsel %vm182, %v143, 0
    %v187 = vsel %vm182, %v144, 0
    %v190 = vsel %vm182, %v145, 0
    %v193 = vsel %vm182, %v146, 0
    %v196 = vsel %vm182, %v147, 0
    %v199 = vsel %vm182, %v148, 0
    %v202 = vsel %vm182, %v149, 0
    %v205 = vsel %vm182, %v150, 0
    %v208 = vsel %vm182, %v151, 0
    %v211 = vsel %vm182, %v152, 0
    %v214 = vsel %vm182, %v153, 0
    %v217 = vsel %vm182, %v154, 0
    %v220 = vsel %vm182, %v155, 0
    %v223 = vsel %vm182, %v156, 0
    %v226 = vsel %vm182, %v157, 0
    %v229 = vsel %vm182, %v158, 0
    %231 = vmatprep.subr.bf16.mxu0 0
    %232 = vmatpush1.bf16.msra.mxu0 %v178
    %233 = vmatprep.subr.bf16.mxu0 0
    %234 = vmatpush1.bf16.msra.mxu0 %v179
    %235 = vmatprep.subr.bf16.mxu0 0
    %236 = vmatpush1.bf16.msra.mxu0 0
    %237 = vmatprep.subr.bf16.mxu0 0
    %238 = vmatpush1.bf16.msra.mxu0 0
    %239 = vmatprep.subr.bf16.mxu0 0
    %240 = vmatpush1.bf16.msra.mxu0 0
    %241 = vmatprep.subr.bf16.mxu0 0
    %242 = vmatpush1.bf16.msra.mxu0 0
    %243 = vmatprep.subr.bf16.mxu0 0
    %244 = vmatpush1.bf16.msra.mxu0 0
    %245 = vmatprep.subr.bf16.mxu0 0
    %246 = vmatpush1.bf16.msra.mxu0 0
    %247 = vmatprep.subr.bf16.mxu0 0
    %248 = vmatpush1.bf16.msra.mxu0 0
    %249 = vmatprep.subr.bf16.mxu0 0
    %250 = vmatpush1.bf16.msra.mxu0 0
    %251 = vmatprep.subr.bf16.mxu0 0
    %252 = vmatpush1.bf16.msra.mxu0 0
    %253 = vmatprep.subr.bf16.mxu0 0
    %254 = vmatpush1.bf16.msra.mxu0 0
    %255 = vmatprep.subr.bf16.mxu0 0
    %256 = vmatpush1.bf16.msra.mxu0 0
    %257 = vmatprep.subr.bf16.mxu0 0
    %258 = vmatpush1.bf16.msra.mxu0 0
    %259 = vmatprep.subr.bf16.mxu0 0
    %260 = vmatpush1.bf16.msra.mxu0 0
    %261 = vmatprep.subr.bf16.mxu0 0
    %262 = vmatpush1.bf16.msra.mxu0 0
    %263 = vmatprep.mubr.bf16.mxu0 0
    %264 = vmatmul.mubr.bf16.gmra.mrb[0].mxu0 %v184
    %v265 = vpop.f32.mrb[0].mxu0
    %v266 = vadd.f32 %v168, %v265
    %v267 = vpop.f32.mrb[0].mxu0
    %v268 = vpop.f32.mrb[0].mxu0
    %v269 = vadd.f32 %v168, %v268
    %v270 = vpop.f32.mrb[0].mxu0
    %271 = vmatprep.mubr.bf16.mxu0 0
    %272 = vmatmul.mubr.bf16.gmra.mrb[0].mxu0 %v187
    %v273 = vpop.f32.mrb[0].mxu0
    %v274 = vadd.f32 %v168, %v273
    %v275 = vpop.f32.mrb[0].mxu0
    %v276 = vpop.f32.mrb[0].mxu0
    %v277 = vadd.f32 %v168, %v276
    %v278 = vpop.f32.mrb[0].mxu0
    %279 = vmatprep.mubr.bf16.mxu0 0
    %280 = vmatmul.mubr.bf16.gmra.mrb[0].mxu0 %v190
    %v281 = vpop.f32.mrb[0].mxu0
    %v282 = vadd.f32 %v168, %v281
    %v283 = vpop.f32.mrb[0].mxu0
    %v284 = vpop.f32.mrb[0].mxu0
    %v285 = vadd.f32 %v168, %v284
    %v286 = vpop.f32.mrb[0].mxu0
    %287 = vmatprep.mubr.bf16.mxu0 0
    %288 = vmatmul.mubr.bf16.gmra.mrb[0].mxu0 %v193
    %v289 = vpop.f32.mrb[0].mxu0
    %v290 = vadd.f32 %v168, %v289
    %v291 = vpop.f32.mrb[0].mxu0
    %v292 = vpop.f32.mrb[0].mxu0
    %v293 = vadd.f32 %v168, %v292
    %v294 = vpop.f32.mrb[0].mxu0
    %295 = vmatprep.mubr.bf16.mxu0 0
    %296 = vmatmul.mubr.bf16.gmra.mrb[0].mxu0 %v196
    %v297 = vpop.f32.mrb[0].mxu0
    %v298 = vadd.f32 %v168, %v297
    %v299 = vpop.f32.mrb[0].mxu0
    %v300 = vpop.f32.mrb[0].mxu0
    %v301 = vadd.f32 %v168, %v300
    %v302 = vpop.f32.mrb[0].mxu0
    %303 = vmatprep.mubr.bf16.mxu0 0
    %304 = vmatmul.mubr.bf16.gmra.mrb[0].mxu0 %v199
    %v305 = vpop.f32.mrb[0].mxu0
    %v306 = vadd.f32 %v168, %v305
    %v307 = vpop.f32.mrb[0].mxu0
    %v308 = vpop.f32.mrb[0].mxu0
    %v309 = vadd.f32 %v168, %v308
    %v310 = vpop.f32.mrb[0].mxu0
    %311 = vmatprep.mubr.bf16.mxu0 0
    %312 = vmatmul.mubr.bf16.gmra.mrb[0].mxu0 %v202
    %v313 = vpop.f32.mrb[0].mxu0
    %v314 = vadd.f32 %v168, %v313
    %v315 = vpop.f32.mrb[0].mxu0
    %v316 = vpop.f32.mrb[0].mxu0
    %v317 = vadd.f32 %v168, %v316
    %v318 = vpop.f32.mrb[0].mxu0
    %319 = vmatprep.mubr.bf16.mxu0 0
    %320 = vmatmul.mubr.bf16.gmra.mrb[0].mxu0 %v205
    %v321 = vpop.f32.mrb[0].mxu0
    %v322 = vadd.f32 %v168, %v321
    %v323 = vpop.f32.mrb[0].mxu0
    %v324 = vpop.f32.mrb[0].mxu0
    %v325 = vadd.f32 %v168, %v324
    %v326 = vpop.f32.mrb[0].mxu0
    %327 = vmatprep.mubr.bf16.mxu0 0
    %328 = vmatmul.mubr.bf16.gmra.mrb[0].mxu0 %v208
    %v329 = vpop.f32.mrb[0].mxu0
    %v330 = vadd.f32 %v168, %v329
    %v331 = vpop.f32.mrb[0].mxu0
    %v332 = vpop.f32.mrb[0].mxu0
    %v333 = vadd.f32 %v168, %v332
    %v334 = vpop.f32.mrb[0].mxu0
    %335 = vmatprep.mubr.bf16.mxu0 0
    %336 = vmatmul.mubr.bf16.gmra.mrb[0].mxu0 %v211
    %v337 = vpop.f32.mrb[0].mxu0
    %v338 = vadd.f32 %v168, %v337
    %v339 = vpop.f32.mrb[0].mxu0
    %v340 = vpop.f32.mrb[0].mxu0
    %v341 = vadd.f32 %v168, %v340
    %v342 = vpop.f32.mrb[0].mxu0
    %343 = vmatprep.mubr.bf16.mxu0 0
    %344 = vmatmul.mubr.bf16.gmra.mrb[0].mxu0 %v214
    %v345 = vpop.f32.mrb[0].mxu0
    %v346 = vadd.f32 %v168, %v345
    %v347 = vpop.f32.mrb[0].mxu0
    %v348 = vpop.f32.mrb[0].mxu0
    %v349 = vadd.f32 %v168, %v348
    %v350 = vpop.f32.mrb[0].mxu0
    %351 = vmatprep.mubr.bf16.mxu0 0
    %352 = vmatmul.mubr.bf16.gmra.mrb[0].mxu0 %v217
    %v353 = vpop.f32.mrb[0].mxu0
    %v354 = vadd.f32 %v168, %v353
    %v355 = vpop.f32.mrb[0].mxu0
    %v356 = vpop.f32.mrb[0].mxu0
    %v357 = vadd.f32 %v168, %v356
    %v358 = vpop.f32.mrb[0].mxu0
    %359 = vmatprep.mubr.bf16.mxu0 0
    %360 = vmatmul.mubr.bf16.gmra.mrb[0].mxu0 %v220
    %v361 = vpop.f32.mrb[0].mxu0
    %v362 = vadd.f32 %v168, %v361
    %v363 = vpop.f32.mrb[0].mxu0
    %v364 = vpop.f32.mrb[0].mxu0
    %v365 = vadd.f32 %v168, %v364
    %v366 = vpop.f32.mrb[0].mxu0
    %367 = vmatprep.mubr.bf16.mxu0 0
    %368 = vmatmul.mubr.bf16.gmra.mrb[0].mxu0 %v223
    %v369 = vpop.f32.mrb[0].mxu0
    %v370 = vadd.f32 %v168, %v369
    %v371 = vpop.f32.mrb[0].mxu0
    %v372 = vpop.f32.mrb[0].mxu0
    %v373 = vadd.f32 %v168, %v372
    %v374 = vpop.f32.mrb[0].mxu0
    %375 = vmatprep.mubr.bf16.mxu0 0
    %376 = vmatmul.mubr.bf16.gmra.mrb[0].mxu0 %v226
    %v377 = vpop.f32.mrb[0].mxu0
    %v378 = vadd.f32 %v168, %v377
    %v379 = vpop.f32.mrb[0].mxu0
    %v380 = vpop.f32.mrb[0].mxu0
    %v381 = vadd.f32 %v168, %v380
    %v382 = vpop.f32.mrb[0].mxu0
    %383 = vmatprep.mubr.bf16.mxu0 0
    %384 = vmatmul.mubr.bf16.gmra.mrb[0].mxu0 %v229
    %v385 = vpop.f32.mrb[0].mxu0
    %v386 = vadd.f32 %v168, %v385
    %v387 = vpop.f32.mrb[0].mxu0
    %v388 = vpop.f32.mrb[0].mxu0
    %v389 = vadd.f32 %v168, %v388
    %v390 = vpop.f32.mrb[0].mxu0
    %391 = vdwg.mxu0
    %v392 = vpack.c.bf16 %v269, %v266
    %v393 = vpack.c.bf16 %v277, %v274
    %v394 = vpack.c.bf16 %v285, %v282
    %v395 = vpack.c.bf16 %v293, %v290
    %v396 = vpack.c.bf16 %v301, %v298
    %v397 = vpack.c.bf16 %v309, %v306
    %v398 = vpack.c.bf16 %v317, %v314
    %v399 = vpack.c.bf16 %v325, %v322
    %v400 = vpack.c.bf16 %v333, %v330
    %v401 = vpack.c.bf16 %v341, %v338
    %v402 = vpack.c.bf16 %v349, %v346
    %v403 = vpack.c.bf16 %v357, %v354
    %v404 = vpack.c.bf16 %v365, %v362
    %v405 = vpack.c.bf16 %v373, %v370
    %v406 = vpack.c.bf16 %v381, %v378
    %v407 = vpack.c.bf16 %v389, %v386
    %vm408 = vcmp.gt.bf16.partialorder %v392, 0
    %vm409 = vcmp.gt.bf16.partialorder %v393, 0
    %vm410 = vcmp.gt.bf16.partialorder %v394, 0
    %vm411 = vcmp.gt.bf16.partialorder %v395, 0
    %vm412 = vcmp.gt.bf16.partialorder %v396, 0
    %vm413 = vcmp.gt.bf16.partialorder %v397, 0
    %vm414 = vcmp.gt.bf16.partialorder %v398, 0
    %vm415 = vcmp.gt.bf16.partialorder %v399, 0
    %vm416 = vcmp.gt.bf16.partialorder %v400, 0
    %vm417 = vcmp.gt.bf16.partialorder %v401, 0
    %vm418 = vcmp.gt.bf16.partialorder %v402, 0
    %vm419 = vcmp.gt.bf16.partialorder %v403, 0
    %vm420 = vcmp.gt.bf16.partialorder %v404, 0
    %vm421 = vcmp.gt.bf16.partialorder %v405, 0
    %vm422 = vcmp.gt.bf16.partialorder %v406, 0
    %vm423 = vcmp.gt.bf16.partialorder %v407, 0
    %v424 = vmul.bf16 %v392, 1009007652
    %v425 = vmul.bf16 %v393, 1009007652
    %v426 = vmul.bf16 %v394, 1009007652
    %v427 = vmul.bf16 %v395, 1009007652
    %v428 = vmul.bf16 %v396, 1009007652
    %v429 = vmul.bf16 %v397, 1009007652
    %v430 = vmul.bf16 %v398, 1009007652
    %v431 = vmul.bf16 %v399, 1009007652
    %v432 = vmul.bf16 %v400, 1009007652
    %v433 = vmul.bf16 %v401, 1009007652
    %v434 = vmul.bf16 %v402, 1009007652
    %v435 = vmul.bf16 %v403, 1009007652
    %v436 = vmul.bf16 %v404, 1009007652
    %v437 = vmul.bf16 %v405, 1009007652
    %v438 = vmul.bf16 %v406, 1009007652
    %v439 = vmul.bf16 %v407, 1009007652
    %v440 = vsel %vm408, %v392, %v424
    %v441 = vsel %vm409, %v393, %v425
    %v442 = vsel %vm410, %v394, %v426
    %v443 = vsel %vm411, %v395, %v427
    %v444 = vsel %vm412, %v396, %v428
    %v445 = vsel %vm413, %v397, %v429
    %v446 = vsel %vm414, %v398, %v430
    %v447 = vsel %vm415, %v399, %v431
    %v448 = vsel %vm416, %v400, %v432
    %v449 = vsel %vm417, %v401, %v433
    %v450 = vsel %vm418, %v402, %v434
    %v451 = vsel %vm419, %v403, %v435
    %v452 = vsel %vm420, %v404, %v436
    %v453 = vsel %vm421, %v405, %v437
    %v454 = vsel %vm422, %v406, %v438
    %v455 = vsel %vm423, %v407, %v439
    %v456 = vld [vmem:[%s3] sm:$0xff]
    %v457 = vld [vmem:[%s3 + $0x8] sm:$0xff]
    %v458 = vld [vmem:[%s3 + $0x10] sm:$0xff]
    %v459 = vld [vmem:[%s3 + $0x18] sm:$0xff]
    %v460 = vld [vmem:[%s3 + $0x20] sm:$0xff]
    %v461 = vld [vmem:[%s3 + $0x28] sm:$0xff]
    %v462 = vld [vmem:[%s3 + $0x30] sm:$0xff]
    %v463 = vld [vmem:[%s3 + $0x38] sm:$0xff]
    %v464 = vld [vmem:[%s3 + $0x40] sm:$0xff]
    %v465 = vld [vmem:[%s3 + $0x48] sm:$0xff]
    %v466 = vld [vmem:[%s3 + $0x50] sm:$0xff]
    %v467 = vld [vmem:[%s3 + $0x58] sm:$0xff]
    %v468 = vld [vmem:[%s3 + $0x60] sm:$0xff]
    %v469 = vld [vmem:[%s3 + $0x68] sm:$0xff]
    %v470 = vld [vmem:[%s3 + $0x70] sm:$0xff]
    %v471 = vld [vmem:[%s3 + $0x78] sm:$0xff]
    %v472 = vld [vmem:[%s3 + $0x80] sm:$0xff]
    %v473 = vld [vmem:[%s3 + $0x88] sm:$0xff]
    %v474 = vld [vmem:[%s3 + $0x90] sm:$0xff]
    %v475 = vld [vmem:[%s3 + $0x98] sm:$0xff]
    %v476 = vld [vmem:[%s3 + $0xa0] sm:$0xff]
    %v477 = vld [vmem:[%s3 + $0xa8] sm:$0xff]
    %v478 = vld [vmem:[%s3 + $0xb0] sm:$0xff]
    %v479 = vld [vmem:[%s3 + $0xb8] sm:$0xff]
    %v480 = vld [vmem:[%s3 + $0xc0] sm:$0xff]
    %v481 = vld [vmem:[%s3 + $0xc8] sm:$0xff]
    %v482 = vld [vmem:[%s3 + $0xd0] sm:$0xff]
    %v483 = vld [vmem:[%s3 + $0xd8] sm:$0xff]
    %v484 = vld [vmem:[%s3 + $0xe0] sm:$0xff]
    %v485 = vld [vmem:[%s3 + $0xe8] sm:$0xff]
    %v486 = vld [vmem:[%s3 + $0xf0] sm:$0xff]
    %v487 = vld [vmem:[%s3 + $0xf8] sm:$0xff]
    %v488 = vld [vmem:[%s3 + $0x100] sm:$0xff]
    %v489 = vld [vmem:[%s3 + $0x108] sm:$0xff]
    %v490 = vld [vmem:[%s3 + $0x110] sm:$0xff]
    %v491 = vld [vmem:[%s3 + $0x118] sm:$0xff]
    %v492 = vld [vmem:[%s3 + $0x120] sm:$0xff]
    %v493 = vld [vmem:[%s3 + $0x128] sm:$0xff]
    %v494 = vld [vmem:[%s3 + $0x130] sm:$0xff]
    %v495 = vld [vmem:[%s3 + $0x138] sm:$0xff]
    %v496 = vld [vmem:[%s3 + $0x140] sm:$0xff]
    %v497 = vld [vmem:[%s3 + $0x148] sm:$0xff]
    %v498 = vld [vmem:[%s3 + $0x150] sm:$0xff]
    %v499 = vld [vmem:[%s3 + $0x158] sm:$0xff]
    %v500 = vld [vmem:[%s3 + $0x160] sm:$0xff]
    %v501 = vld [vmem:[%s3 + $0x168] sm:$0xff]
    %v502 = vld [vmem:[%s3 + $0x170] sm:$0xff]
    %v503 = vld [vmem:[%s3 + $0x178] sm:$0xff]
    %v504 = vld [vmem:[%s3 + $0x180] sm:$0xff]
    %v505 = vld [vmem:[%s3 + $0x188] sm:$0xff]
    %v506 = vld [vmem:[%s3 + $0x190] sm:$0xff]
    %v507 = vld [vmem:[%s3 + $0x198] sm:$0xff]
    %v508 = vld [vmem:[%s3 + $0x1a0] sm:$0xff]
    %v509 = vld [vmem:[%s3 + $0x1a8] sm:$0xff]
    %v510 = vld [vmem:[%s3 + $0x1b0] sm:$0xff]
    %v511 = vld [vmem:[%s3 + $0x1b8] sm:$0xff]
    %v512 = vld [vmem:[%s3 + $0x1c0] sm:$0xff]
    %v513 = vld [vmem:[%s3 + $0x1c8] sm:$0xff]
    %v514 = vld [vmem:[%s3 + $0x1d0] sm:$0xff]
    %v515 = vld [vmem:[%s3 + $0x1d8] sm:$0xff]
    %v516 = vld [vmem:[%s3 + $0x1e0] sm:$0xff]
    %v517 = vld [vmem:[%s3 + $0x1e8] sm:$0xff]
    %v518 = vld [vmem:[%s3 + $0x1f0] sm:$0xff]
    %v519 = vld [vmem:[%s3 + $0x1f8] sm:$0xff]
    %v520 = vld [vmem:[#allocation3] sm:$0xff]
    %v522 = vlaneseq
    %v523 = vshrl.u32 %v522, 7
    %v524 = vsub.s32 0, %v523
    %v525 = vrot.slane %v520, %v524
    %v526 = vlaneseq
    %v527 = vshrl.u32 %v526, 7
    %v528 = vsub.s32 1, %v527
    %v529 = vrot.slane %v520, %v528
    %v530 = vlaneseq
    %v531 = vshrl.u32 %v530, 7
    %v532 = vsub.s32 2, %v531
    %v533 = vrot.slane %v520, %v532
    %v534 = vlaneseq
    %v535 = vshrl.u32 %v534, 7
    %v536 = vsub.s32 3, %v535
    %v537 = vrot.slane %v520, %v536
    %v538 = vlaneseq
    %v539 = vshrl.u32 %v538, 7
    %v540 = vsub.s32 4, %v539
    %v541 = vrot.slane %v520, %v540
    %v542 = vlaneseq
    %v543 = vshrl.u32 %v542, 7
    %v544 = vsub.s32 5, %v543
    %v545 = vrot.slane %v520, %v544
    %v546 = vlaneseq
    %v547 = vshrl.u32 %v546, 7
    %v548 = vsub.s32 6, %v547
    %v549 = vrot.slane %v520, %v548
    %v550 = vlaneseq
    %v551 = vshrl.u32 %v550, 7
    %v552 = vsub.s32 7, %v551
    %v553 = vrot.slane %v520, %v552
    %v626 = vunpack.c.l.b16 %v456
    %v627 = vunpack.c.h.b16 %v456
    %v628 = vunpack.c.l.b16 %v457
    %v629 = vunpack.c.h.b16 %v457
    %v630 = vunpack.c.l.b16 %v458
    %v631 = vunpack.c.h.b16 %v458
    %v632 = vunpack.c.l.b16 %v459
    %v633 = vunpack.c.h.b16 %v459
    %v634 = vunpack.c.l.b16 %v460
    %v635 = vunpack.c.h.b16 %v460
    %v636 = vunpack.c.l.b16 %v461
    %v637 = vunpack.c.h.b16 %v461
    %v638 = vunpack.c.l.b16 %v462
    %v639 = vunpack.c.h.b16 %v462
    %v640 = vunpack.c.l.b16 %v463
    %v641 = vunpack.c.h.b16 %v463
    %v642 = vunpack.c.l.b16 %v464
    %v643 = vunpack.c.h.b16 %v464
    %v644 = vunpack.c.l.b16 %v465
    %v645 = vunpack.c.h.b16 %v465
    %v646 = vunpack.c.l.b16 %v466
    %v647 = vunpack.c.h.b16 %v466
    %v648 = vunpack.c.l.b16 %v467
    %v649 = vunpack.c.h.b16 %v467
    %v650 = vunpack.c.l.b16 %v468
    %v651 = vunpack.c.h.b16 %v468
    %v652 = vunpack.c.l.b16 %v469
    %v653 = vunpack.c.h.b16 %v469
    %v654 = vunpack.c.l.b16 %v470
    %v655 = vunpack.c.h.b16 %v470
    %v656 = vunpack.c.l.b16 %v471
    %v657 = vunpack.c.h.b16 %v471
    %v658 = vunpack.c.l.b16 %v472
    %v659 = vunpack.c.h.b16 %v472
    %v660 = vunpack.c.l.b16 %v473
    %v661 = vunpack.c.h.b16 %v473
    %v662 = vunpack.c.l.b16 %v474
    %v663 = vunpack.c.h.b16 %v474
    %v664 = vunpack.c.l.b16 %v475
    %v665 = vunpack.c.h.b16 %v475
    %v666 = vunpack.c.l.b16 %v476
    %v667 = vunpack.c.h.b16 %v476
    %v668 = vunpack.c.l.b16 %v477
    %v669 = vunpack.c.h.b16 %v477
    %v670 = vunpack.c.l.b16 %v478
    %v671 = vunpack.c.h.b16 %v478
    %v672 = vunpack.c.l.b16 %v479
    %v673 = vunpack.c.h.b16 %v479
    %v674 = vunpack.c.l.b16 %v480
    %v675 = vunpack.c.h.b16 %v480
    %v676 = vunpack.c.l.b16 %v481
    %v677 = vunpack.c.h.b16 %v481
    %v678 = vunpack.c.l.b16 %v482
    %v679 = vunpack.c.h.b16 %v482
    %v680 = vunpack.c.l.b16 %v483
    %v681 = vunpack.c.h.b16 %v483
    %v682 = vunpack.c.l.b16 %v484
    %v683 = vunpack.c.h.b16 %v484
    %v684 = vunpack.c.l.b16 %v485
    %v685 = vunpack.c.h.b16 %v485
    %v686 = vunpack.c.l.b16 %v486
    %v687 = vunpack.c.h.b16 %v486
    %v688 = vunpack.c.l.b16 %v487
    %v689 = vunpack.c.h.b16 %v487
    %v690 = vunpack.c.l.b16 %v488
    %v691 = vunpack.c.h.b16 %v488
    %v692 = vunpack.c.l.b16 %v489
    %v693 = vunpack.c.h.b16 %v489
    %v694 = vunpack.c.l.b16 %v490
    %v695 = vunpack.c.h.b16 %v490
    %v696 = vunpack.c.l.b16 %v491
    %v697 = vunpack.c.h.b16 %v491
    %v698 = vunpack.c.l.b16 %v492
    %v699 = vunpack.c.h.b16 %v492
    %v700 = vunpack.c.l.b16 %v493
    %v701 = vunpack.c.h.b16 %v493
    %v702 = vunpack.c.l.b16 %v494
    %v703 = vunpack.c.h.b16 %v494
    %v704 = vunpack.c.l.b16 %v495
    %v705 = vunpack.c.h.b16 %v495
    %v706 = vunpack.c.l.b16 %v496
    %v707 = vunpack.c.h.b16 %v496
    %v708 = vunpack.c.l.b16 %v497
    %v709 = vunpack.c.h.b16 %v497
    %v710 = vunpack.c.l.b16 %v498
    %v711 = vunpack.c.h.b16 %v498
    %v712 = vunpack.c.l.b16 %v499
    %v713 = vunpack.c.h.b16 %v499
    %v714 = vunpack.c.l.b16 %v500
    %v715 = vunpack.c.h.b16 %v500
    %v716 = vunpack.c.l.b16 %v501
    %v717 = vunpack.c.h.b16 %v501
    %v718 = vunpack.c.l.b16 %v502
    %v719 = vunpack.c.h.b16 %v502
    %v720 = vunpack.c.l.b16 %v503
    %v721 = vunpack.c.h.b16 %v503
    %v722 = vunpack.c.l.b16 %v504
    %v723 = vunpack.c.h.b16 %v504
    %v724 = vunpack.c.l.b16 %v505
    %v725 = vunpack.c.h.b16 %v505
    %v726 = vunpack.c.l.b16 %v506
    %v727 = vunpack.c.h.b16 %v506
    %v728 = vunpack.c.l.b16 %v507
    %v729 = vunpack.c.h.b16 %v507
    %v730 = vunpack.c.l.b16 %v508
    %v731 = vunpack.c.h.b16 %v508
    %v732 = vunpack.c.l.b16 %v509
    %v733 = vunpack.c.h.b16 %v509
    %v734 = vunpack.c.l.b16 %v510
    %v735 = vunpack.c.h.b16 %v510
    %v736 = vunpack.c.l.b16 %v511
    %v737 = vunpack.c.h.b16 %v511
    %v738 = vunpack.c.l.b16 %v512
    %v739 = vunpack.c.h.b16 %v512
    %v740 = vunpack.c.l.b16 %v513
    %v741 = vunpack.c.h.b16 %v513
    %v742 = vunpack.c.l.b16 %v514
    %v743 = vunpack.c.h.b16 %v514
    %v744 = vunpack.c.l.b16 %v515
    %v745 = vunpack.c.h.b16 %v515
    %v746 = vunpack.c.l.b16 %v516
    %v747 = vunpack.c.h.b16 %v516
    %v748 = vunpack.c.l.b16 %v517
    %v749 = vunpack.c.h.b16 %v517
    %v750 = vunpack.c.l.b16 %v518
    %v751 = vunpack.c.h.b16 %v518
    %v752 = vunpack.c.l.b16 %v519
    %v753 = vunpack.c.h.b16 %v519
    %v754 = vpack.c.b16 %v634, %v626
    %v755 = vpack.c.b16 %v635, %v627
    %v756 = vpack.c.b16 %v636, %v628
    %v757 = vpack.c.b16 %v637, %v629
    %v758 = vpack.c.b16 %v638, %v630
    %v759 = vpack.c.b16 %v639, %v631
    %v760 = vpack.c.b16 %v640, %v632
    %v761 = vpack.c.b16 %v641, %v633
    %v762 = vpack.c.b16 %v650, %v642
    %v763 = vpack.c.b16 %v651, %v643
    %v764 = vpack.c.b16 %v652, %v644
    %v765 = vpack.c.b16 %v653, %v645
    %v766 = vpack.c.b16 %v654, %v646
    %v767 = vpack.c.b16 %v655, %v647
    %v768 = vpack.c.b16 %v656, %v648
    %v769 = vpack.c.b16 %v657, %v649
    %v770 = vpack.c.b16 %v666, %v658
    %v771 = vpack.c.b16 %v667, %v659
    %v772 = vpack.c.b16 %v668, %v660
    %v773 = vpack.c.b16 %v669, %v661
    %v774 = vpack.c.b16 %v670, %v662
    %v775 = vpack.c.b16 %v671, %v663
    %v776 = vpack.c.b16 %v672, %v664
    %v777 = vpack.c.b16 %v673, %v665
    %v778 = vpack.c.b16 %v682, %v674
    %v779 = vpack.c.b16 %v683, %v675
    %v780 = vpack.c.b16 %v684, %v676
    %v781 = vpack.c.b16 %v685, %v677
    %v782 = vpack.c.b16 %v686, %v678
    %v783 = vpack.c.b16 %v687, %v679
    %v784 = vpack.c.b16 %v688, %v680
    %v785 = vpack.c.b16 %v689, %v681
    %v786 = vpack.c.b16 %v698, %v690
    %v787 = vpack.c.b16 %v699, %v691
    %v788 = vpack.c.b16 %v700, %v692
    %v789 = vpack.c.b16 %v701, %v693
    %v790 = vpack.c.b16 %v702, %v694
    %v791 = vpack.c.b16 %v703, %v695
    %v792 = vpack.c.b16 %v704, %v696
    %v793 = vpack.c.b16 %v705, %v697
    %v794 = vpack.c.b16 %v714, %v706
    %v795 = vpack.c.b16 %v715, %v707
    %v796 = vpack.c.b16 %v716, %v708
    %v797 = vpack.c.b16 %v717, %v709
    %v798 = vpack.c.b16 %v718, %v710
    %v799 = vpack.c.b16 %v719, %v711
    %v800 = vpack.c.b16 %v720, %v712
    %v801 = vpack.c.b16 %v721, %v713
    %v802 = vpack.c.b16 %v730, %v722
    %v803 = vpack.c.b16 %v731, %v723
    %v804 = vpack.c.b16 %v732, %v724
    %v805 = vpack.c.b16 %v733, %v725
    %v806 = vpack.c.b16 %v734, %v726
    %v807 = vpack.c.b16 %v735, %v727
    %v808 = vpack.c.b16 %v736, %v728
    %v809 = vpack.c.b16 %v737, %v729
    %v810 = vpack.c.b16 %v746, %v738
    %v811 = vpack.c.b16 %v747, %v739
    %v812 = vpack.c.b16 %v748, %v740
    %v813 = vpack.c.b16 %v749, %v741
    %v814 = vpack.c.b16 %v750, %v742
    %v815 = vpack.c.b16 %v751, %v743
    %v816 = vpack.c.b16 %v752, %v744
    %v817 = vpack.c.b16 %v753, %v745
    %882 = vmatprep.subr.bf16.mxu0 %v755
    %883 = vmatpush1.bf16.msra.mxu0 %v754
    %884 = vmatprep.subr.bf16.mxu0 %v763
    %885 = vmatpush1.bf16.msra.mxu0 %v762
    %886 = vmatprep.subr.bf16.mxu0 %v771
    %887 = vmatpush1.bf16.msra.mxu0 %v770
    %888 = vmatprep.subr.bf16.mxu0 %v779
    %889 = vmatpush1.bf16.msra.mxu0 %v778
    %890 = vmatprep.subr.bf16.mxu0 %v787
    %891 = vmatpush1.bf16.msra.mxu0 %v786
    %892 = vmatprep.subr.bf16.mxu0 %v795
    %893 = vmatpush1.bf16.msra.mxu0 %v794
    %894 = vmatprep.subr.bf16.mxu0 %v803
    %895 = vmatpush1.bf16.msra.mxu0 %v802
    %896 = vmatprep.subr.bf16.mxu0 %v811
    %897 = vmatpush1.bf16.msra.mxu0 %v810
    %898 = vmatprep.subr.bf16.mxu0 0
    %899 = vmatpush1.bf16.msra.mxu0 0
    %900 = vmatprep.subr.bf16.mxu0 0
    %901 = vmatpush1.bf16.msra.mxu0 0
    %902 = vmatprep.subr.bf16.mxu0 0
    %903 = vmatpush1.bf16.msra.mxu0 0
    %904 = vmatprep.subr.bf16.mxu0 0
    %905 = vmatpush1.bf16.msra.mxu0 0
    %906 = vmatprep.subr.bf16.mxu0 0
    %907 = vmatpush1.bf16.msra.mxu0 0
    %908 = vmatprep.subr.bf16.mxu0 0
    %909 = vmatpush1.bf16.msra.mxu0 0
    %910 = vmatprep.subr.bf16.mxu0 0
    %911 = vmatpush1.bf16.msra.mxu0 0
    %912 = vmatprep.subr.bf16.mxu0 0
    %913 = vmatpush1.bf16.msra.mxu0 0
    %914 = vmatprep.mubr.bf16.mxu0 0
    %915 = vmatmul.mubr.bf16.gmra.mrb[0].mxu0 %v440
    %v916 = vpop.f32.mrb[0].mxu0
    %v917 = vadd.f32 %v525, %v916
    %v918 = vpop.f32.mrb[0].mxu0
    %v919 = vadd.f32 %v529, %v918
    %v920 = vpop.f32.mrb[0].mxu0
    %v921 = vadd.f32 %v525, %v920
    %v922 = vpop.f32.mrb[0].mxu0
    %v923 = vadd.f32 %v529, %v922
    %924 = vmatprep.mubr.bf16.mxu0 0
    %925 = vmatmul.mubr.bf16.gmra.mrb[0].mxu0 %v441
    %v926 = vpop.f32.mrb[0].mxu0
    %v927 = vadd.f32 %v525, %v926
    %v928 = vpop.f32.mrb[0].mxu0
    %v929 = vadd.f32 %v529, %v928
    %v930 = vpop.f32.mrb[0].mxu0
    %v931 = vadd.f32 %v525, %v930
    %v932 = vpop.f32.mrb[0].mxu0
    %v933 = vadd.f32 %v529, %v932
    %934 = vmatprep.mubr.bf16.mxu0 0
    %935 = vmatmul.mubr.bf16.gmra.mrb[0].mxu0 %v442
    %v936 = vpop.f32.mrb[0].mxu0
    %v937 = vadd.f32 %v525, %v936
    %v938 = vpop.f32.mrb[0].mxu0
    %v939 = vadd.f32 %v529, %v938
    %v940 = vpop.f32.mrb[0].mxu0
    %v941 = vadd.f32 %v525, %v940
    %v942 = vpop.f32.mrb[0].mxu0
    %v943 = vadd.f32 %v529, %v942
    %944 = vmatprep.mubr.bf16.mxu0 0
    %945 = vmatmul.mubr.bf16.gmra.mrb[0].mxu0 %v443
    %v946 = vpop.f32.mrb[0].mxu0
    %v947 = vadd.f32 %v525, %v946
    %v948 = vpop.f32.mrb[0].mxu0
    %v949 = vadd.f32 %v529, %v948
    %v950 = vpop.f32.mrb[0].mxu0
    %v951 = vadd.f32 %v525, %v950
    %v952 = vpop.f32.mrb[0].mxu0
    %v953 = vadd.f32 %v529, %v952
    %954 = vmatprep.mubr.bf16.mxu0 0
    %955 = vmatmul.mubr.bf16.gmra.mrb[0].mxu0 %v444
    %v956 = vpop.f32.mrb[0].mxu0
    %v957 = vadd.f32 %v525, %v956
    %v958 = vpop.f32.mrb[0].mxu0
    %v959 = vadd.f32 %v529, %v958
    %v960 = vpop.f32.mrb[0].mxu0
    %v961 = vadd.f32 %v525, %v960
    %v962 = vpop.f32.mrb[0].mxu0
    %v963 = vadd.f32 %v529, %v962
    %964 = vmatprep.mubr.bf16.mxu0 0
    %965 = vmatmul.mubr.bf16.gmra.mrb[0].mxu0 %v445
    %v966 = vpop.f32.mrb[0].mxu0
    %v967 = vadd.f32 %v525, %v966
    %v968 = vpop.f32.mrb[0].mxu0
    %v969 = vadd.f32 %v529, %v968
    %v970 = vpop.f32.mrb[0].mxu0
    %v971 = vadd.f32 %v525, %v970
    %v972 = vpop.f32.mrb[0].mxu0
    %v973 = vadd.f32 %v529, %v972
    %974 = vmatprep.mubr.bf16.mxu0 0
    %975 = vmatmul.mubr.bf16.gmra.mrb[0].mxu0 %v446
    %v976 = vpop.f32.mrb[0].mxu0
    %v977 = vadd.f32 %v525, %v976
    %v978 = vpop.f32.mrb[0].mxu0
    %v979 = vadd.f32 %v529, %v978
    %v980 = vpop.f32.mrb[0].mxu0
    %v981 = vadd.f32 %v525, %v980
    %v982 = vpop.f32.mrb[0].mxu0
    %v983 = vadd.f32 %v529, %v982
    %984 = vmatprep.mubr.bf16.mxu0 0
    %985 = vmatmul.mubr.bf16.gmra.mrb[0].mxu0 %v447
    %v986 = vpop.f32.mrb[0].mxu0
    %v987 = vadd.f32 %v525, %v986
    %v988 = vpop.f32.mrb[0].mxu0
    %v989 = vadd.f32 %v529, %v988
    %v990 = vpop.f32.mrb[0].mxu0
    %v991 = vadd.f32 %v525, %v990
    %v992 = vpop.f32.mrb[0].mxu0
    %v993 = vadd.f32 %v529, %v992
    %994 = vmatprep.mubr.bf16.mxu0 0
    %995 = vmatmul.mubr.bf16.gmra.mrb[0].mxu0 %v448
    %v996 = vpop.f32.mrb[0].mxu0
    %v997 = vadd.f32 %v525, %v996
    %v998 = vpop.f32.mrb[0].mxu0
    %v999 = vadd.f32 %v529, %v998
    %v1000 = vpop.f32.mrb[0].mxu0
    %v1001 = vadd.f32 %v525, %v1000
    %v1002 = vpop.f32.mrb[0].mxu0
    %v1003 = vadd.f32 %v529, %v1002
    %1004 = vmatprep.mubr.bf16.mxu0 0
    %1005 = vmatmul.mubr.bf16.gmra.mrb[0].mxu0 %v449
    %v1006 = vpop.f32.mrb[0].mxu0
    %v1007 = vadd.f32 %v525, %v1006
    %v1008 = vpop.f32.mrb[0].mxu0
    %v1009 = vadd.f32 %v529, %v1008
    %v1010 = vpop.f32.mrb[0].mxu0
    %v1011 = vadd.f32 %v525, %v1010
    %v1012 = vpop.f32.mrb[0].mxu0
    %v1013 = vadd.f32 %v529, %v1012
    %1014 = vmatprep.mubr.bf16.mxu0 0
    %1015 = vmatmul.mubr.bf16.gmra.mrb[0].mxu0 %v450
    %v1016 = vpop.f32.mrb[0].mxu0
    %v1017 = vadd.f32 %v525, %v1016
    %v1018 = vpop.f32.mrb[0].mxu0
    %v1019 = vadd.f32 %v529, %v1018
    %v1020 = vpop.f32.mrb[0].mxu0
    %v1021 = vadd.f32 %v525, %v1020
    %v1022 = vpop.f32.mrb[0].mxu0
    %v1023 = vadd.f32 %v529, %v1022
    %1024 = vmatprep.mubr.bf16.mxu0 0
    %1025 = vmatmul.mubr.bf16.gmra.mrb[0].mxu0 %v451
    %v1026 = vpop.f32.mrb[0].mxu0
    %v1027 = vadd.f32 %v525, %v1026
    %v1028 = vpop.f32.mrb[0].mxu0
    %v1029 = vadd.f32 %v529, %v1028
    %v1030 = vpop.f32.mrb[0].mxu0
    %v1031 = vadd.f32 %v525, %v1030
    %v1032 = vpop.f32.mrb[0].mxu0
    %v1033 = vadd.f32 %v529, %v1032
    %1034 = vmatprep.mubr.bf16.mxu0 0
    %1035 = vmatmul.mubr.bf16.gmra.mrb[0].mxu0 %v452
    %v1036 = vpop.f32.mrb[0].mxu0
    %v1037 = vadd.f32 %v525, %v1036
    %v1038 = vpop.f32.mrb[0].mxu0
    %v1039 = vadd.f32 %v529, %v1038
    %v1040 = vpop.f32.mrb[0].mxu0
    %v1041 = vadd.f32 %v525, %v1040
    %v1042 = vpop.f32.mrb[0].mxu0
    %v1043 = vadd.f32 %v529, %v1042
    %1044 = vmatprep.mubr.bf16.mxu0 0
    %1045 = vmatmul.mubr.bf16.gmra.mrb[0].mxu0 %v453
    %v1046 = vpop.f32.mrb[0].mxu0
    %v1047 = vadd.f32 %v525, %v1046
    %v1048 = vpop.f32.mrb[0].mxu0
    %v1049 = vadd.f32 %v529, %v1048
    %v1050 = vpop.f32.mrb[0].mxu0
    %v1051 = vadd.f32 %v525, %v1050
    %v1052 = vpop.f32.mrb[0].mxu0
    %v1053 = vadd.f32 %v529, %v1052
    %1054 = vmatprep.mubr.bf16.mxu0 0
    %1055 = vmatmul.mubr.bf16.gmra.mrb[0].mxu0 %v454
    %v1056 = vpop.f32.mrb[0].mxu0
    %v1057 = vadd.f32 %v525, %v1056
    %v1058 = vpop.f32.mrb[0].mxu0
    %v1059 = vadd.f32 %v529, %v1058
    %v1060 = vpop.f32.mrb[0].mxu0
    %v1061 = vadd.f32 %v525, %v1060
    %v1062 = vpop.f32.mrb[0].mxu0
    %v1063 = vadd.f32 %v529, %v1062
    %1064 = vmatprep.mubr.bf16.mxu0 0
    %1065 = vmatmul.mubr.bf16.gmra.mrb[0].mxu0 %v455
    %v1066 = vpop.f32.mrb[0].mxu0
    %v1067 = vadd.f32 %v525, %v1066
    %v1068 = vpop.f32.mrb[0].mxu0
    %v1069 = vadd.f32 %v529, %v1068
    %v1070 = vpop.f32.mrb[0].mxu0
    %v1071 = vadd.f32 %v525, %v1070
    %v1072 = vpop.f32.mrb[0].mxu0
    %v1073 = vadd.f32 %v529, %v1072
    %1074 = vdwg.mxu0
    %1075 = vmatprep.subr.bf16.mxu0 %v757
    %1076 = vmatpush1.bf16.msra.mxu0 %v756
    %1077 = vmatprep.subr.bf16.mxu0 %v765
    %1078 = vmatpush1.bf16.msra.mxu0 %v764
    %1079 = vmatprep.subr.bf16.mxu0 %v773
    %1080 = vmatpush1.bf16.msra.mxu0 %v772
    %1081 = vmatprep.subr.bf16.mxu0 %v781
    %1082 = vmatpush1.bf16.msra.mxu0 %v780
    %1083 = vmatprep.subr.bf16.mxu0 %v789
    %1084 = vmatpush1.bf16.msra.mxu0 %v788
    %1085 = vmatprep.subr.bf16.mxu0 %v797
    %1086 = vmatpush1.bf16.msra.mxu0 %v796
    %1087 = vmatprep.subr.bf16.mxu0 %v805
    %1088 = vmatpush1.bf16.msra.mxu0 %v804
    %1089 = vmatprep.subr.bf16.mxu0 %v813
    %1090 = vmatpush1.bf16.msra.mxu0 %v812
    %1091 = vmatprep.subr.bf16.mxu0 0
    %1092 = vmatpush1.bf16.msra.mxu0 0
    %1093 = vmatprep.subr.bf16.mxu0 0
    %1094 = vmatpush1.bf16.msra.mxu0 0
    %1095 = vmatprep.subr.bf16.mxu0 0
    %1096 = vmatpush1.bf16.msra.mxu0 0
    %1097 = vmatprep.subr.bf16.mxu0 0
    %1098 = vmatpush1.bf16.msra.mxu0 0
    %1099 = vmatprep.subr.bf16.mxu0 0
    %1100 = vmatpush1.bf16.msra.mxu0 0
    %1101 = vmatprep.subr.bf16.mxu0 0
    %1102 = vmatpush1.bf16.msra.mxu0 0
    %1103 = vmatprep.subr.bf16.mxu0 0
    %1104 = vmatpush1.bf16.msra.mxu0 0
    %1105 = vmatprep.subr.bf16.mxu0 0
    %1106 = vmatpush1.bf16.msra.mxu0 0
    %1107 = vmatprep.mubr.bf16.mxu0 0
    %1108 = vmatmul.mubr.bf16.gmra.mrb[0].mxu0 %v440
    %v1109 = vpop.f32.mrb[0].mxu0
    %v1110 = vadd.f32 %v533, %v1109
    %v1111 = vpop.f32.mrb[0].mxu0
    %v1112 = vadd.f32 %v537, %v1111
    %v1113 = vpop.f32.mrb[0].mxu0
    %v1114 = vadd.f32 %v533, %v1113
    %v1115 = vpop.f32.mrb[0].mxu0
    %v1116 = vadd.f32 %v537, %v1115
    %1117 = vmatprep.mubr.bf16.mxu0 0
    %1118 = vmatmul.mubr.bf16.gmra.mrb[0].mxu0 %v441
    %v1119 = vpop.f32.mrb[0].mxu0
    %v1120 = vadd.f32 %v533, %v1119
    %v1121 = vpop.f32.mrb[0].mxu0
    %v1122 = vadd.f32 %v537, %v1121
    %v1123 = vpop.f32.mrb[0].mxu0
    %v1124 = vadd.f32 %v533, %v1123
    %v1125 = vpop.f32.mrb[0].mxu0
    %v1126 = vadd.f32 %v537, %v1125
    %1127 = vmatprep.mubr.bf16.mxu0 0
    %1128 = vmatmul.mubr.bf16.gmra.mrb[0].mxu0 %v442
    %v1129 = vpop.f32.mrb[0].mxu0
    %v1130 = vadd.f32 %v533, %v1129
    %v1131 = vpop.f32.mrb[0].mxu0
    %v1132 = vadd.f32 %v537, %v1131
    %v1133 = vpop.f32.mrb[0].mxu0
    %v1134 = vadd.f32 %v533, %v1133
    %v1135 = vpop.f32.mrb[0].mxu0
    %v1136 = vadd.f32 %v537, %v1135
    %1137 = vmatprep.mubr.bf16.mxu0 0
    %1138 = vmatmul.mubr.bf16.gmra.mrb[0].mxu0 %v443
    %v1139 = vpop.f32.mrb[0].mxu0
    %v1140 = vadd.f32 %v533, %v1139
    %v1141 = vpop.f32.mrb[0].mxu0
    %v1142 = vadd.f32 %v537, %v1141
    %v1143 = vpop.f32.mrb[0].mxu0
    %v1144 = vadd.f32 %v533, %v1143
    %v1145 = vpop.f32.mrb[0].mxu0
    %v1146 = vadd.f32 %v537, %v1145
    %1147 = vmatprep.mubr.bf16.mxu0 0
    %1148 = vmatmul.mubr.bf16.gmra.mrb[0].mxu0 %v444
    %v1149 = vpop.f32.mrb[0].mxu0
    %v1150 = vadd.f32 %v533, %v1149
    %v1151 = vpop.f32.mrb[0].mxu0
    %v1152 = vadd.f32 %v537, %v1151
    %v1153 = vpop.f32.mrb[0].mxu0
    %v1154 = vadd.f32 %v533, %v1153
    %v1155 = vpop.f32.mrb[0].mxu0
    %v1156 = vadd.f32 %v537, %v1155
    %1157 = vmatprep.mubr.bf16.mxu0 0
    %1158 = vmatmul.mubr.bf16.gmra.mrb[0].mxu0 %v445
    %v1159 = vpop.f32.mrb[0].mxu0
    %v1160 = vadd.f32 %v533, %v1159
    %v1161 = vpop.f32.mrb[0].mxu0
    %v1162 = vadd.f32 %v537, %v1161
    %v1163 = vpop.f32.mrb[0].mxu0
    %v1164 = vadd.f32 %v533, %v1163
    %v1165 = vpop.f32.mrb[0].mxu0
    %v1166 = vadd.f32 %v537, %v1165
    %1167 = vmatprep.mubr.bf16.mxu0 0
    %1168 = vmatmul.mubr.bf16.gmra.mrb[0].mxu0 %v446
    %v1169 = vpop.f32.mrb[0].mxu0
    %v1170 = vadd.f32 %v533, %v1169
    %v1171 = vpop.f32.mrb[0].mxu0
    %v1172 = vadd.f32 %v537, %v1171
    %v1173 = vpop.f32.mrb[0].mxu0
    %v1174 = vadd.f32 %v533, %v1173
    %v1175 = vpop.f32.mrb[0].mxu0
    %v1176 = vadd.f32 %v537, %v1175
    %1177 = vmatprep.mubr.bf16.mxu0 0
    %1178 = vmatmul.mubr.bf16.gmra.mrb[0].mxu0 %v447
    %v1179 = vpop.f32.mrb[0].mxu0
    %v1180 = vadd.f32 %v533, %v1179
    %v1181 = vpop.f32.mrb[0].mxu0
    %v1182 = vadd.f32 %v537, %v1181
    %v1183 = vpop.f32.mrb[0].mxu0
    %v1184 = vadd.f32 %v533, %v1183
    %v1185 = vpop.f32.mrb[0].mxu0
    %v1186 = vadd.f32 %v537, %v1185
    %1187 = vmatprep.mubr.bf16.mxu0 0
    %1188 = vmatmul.mubr.bf16.gmra.mrb[0].mxu0 %v448
    %v1189 = vpop.f32.mrb[0].mxu0
    %v1190 = vadd.f32 %v533, %v1189
    %v1191 = vpop.f32.mrb[0].mxu0
    %v1192 = vadd.f32 %v537, %v1191
    %v1193 = vpop.f32.mrb[0].mxu0
    %v1194 = vadd.f32 %v533, %v1193
    %v1195 = vpop.f32.mrb[0].mxu0
    %v1196 = vadd.f32 %v537, %v1195
    %1197 = vmatprep.mubr.bf16.mxu0 0
    %1198 = vmatmul.mubr.bf16.gmra.mrb[0].mxu0 %v449
    %v1199 = vpop.f32.mrb[0].mxu0
    %v1200 = vadd.f32 %v533, %v1199
    %v1201 = vpop.f32.mrb[0].mxu0
    %v1202 = vadd.f32 %v537, %v1201
    %v1203 = vpop.f32.mrb[0].mxu0
    %v1204 = vadd.f32 %v533, %v1203
    %v1205 = vpop.f32.mrb[0].mxu0
    %v1206 = vadd.f32 %v537, %v1205
    %1207 = vmatprep.mubr.bf16.mxu0 0
    %1208 = vmatmul.mubr.bf16.gmra.mrb[0].mxu0 %v450
    %v1209 = vpop.f32.mrb[0].mxu0
    %v1210 = vadd.f32 %v533, %v1209
    %v1211 = vpop.f32.mrb[0].mxu0
    %v1212 = vadd.f32 %v537, %v1211
    %v1213 = vpop.f32.mrb[0].mxu0
    %v1214 = vadd.f32 %v533, %v1213
    %v1215 = vpop.f32.mrb[0].mxu0
    %v1216 = vadd.f32 %v537, %v1215
    %1217 = vmatprep.mubr.bf16.mxu0 0
    %1218 = vmatmul.mubr.bf16.gmra.mrb[0].mxu0 %v451
    %v1219 = vpop.f32.mrb[0].mxu0
    %v1220 = vadd.f32 %v533, %v1219
    %v1221 = vpop.f32.mrb[0].mxu0
    %v1222 = vadd.f32 %v537, %v1221
    %v1223 = vpop.f32.mrb[0].mxu0
    %v1224 = vadd.f32 %v533, %v1223
    %v1225 = vpop.f32.mrb[0].mxu0
    %v1226 = vadd.f32 %v537, %v1225
    %1227 = vmatprep.mubr.bf16.mxu0 0
    %1228 = vmatmul.mubr.bf16.gmra.mrb[0].mxu0 %v452
    %v1229 = vpop.f32.mrb[0].mxu0
    %v1230 = vadd.f32 %v533, %v1229
    %v1231 = vpop.f32.mrb[0].mxu0
    %v1232 = vadd.f32 %v537, %v1231
    %v1233 = vpop.f32.mrb[0].mxu0
    %v1234 = vadd.f32 %v533, %v1233
    %v1235 = vpop.f32.mrb[0].mxu0
    %v1236 = vadd.f32 %v537, %v1235
    %1237 = vmatprep.mubr.bf16.mxu0 0
    %1238 = vmatmul.mubr.bf16.gmra.mrb[0].mxu0 %v453
    %v1239 = vpop.f32.mrb[0].mxu0
    %v1240 = vadd.f32 %v533, %v1239
    %v1241 = vpop.f32.mrb[0].mxu0
    %v1242 = vadd.f32 %v537, %v1241
    %v1243 = vpop.f32.mrb[0].mxu0
    %v1244 = vadd.f32 %v533, %v1243
    %v1245 = vpop.f32.mrb[0].mxu0
    %v1246 = vadd.f32 %v537, %v1245
    %1247 = vmatprep.mubr.bf16.mxu0 0
    %1248 = vmatmul.mubr.bf16.gmra.mrb[0].mxu0 %v454
    %v1249 = vpop.f32.mrb[0].mxu0
    %v1250 = vadd.f32 %v533, %v1249
    %v1251 = vpop.f32.mrb[0].mxu0
    %v1252 = vadd.f32 %v537, %v1251
    %v1253 = vpop.f32.mrb[0].mxu0
    %v1254 = vadd.f32 %v533, %v1253
    %v1255 = vpop.f32.mrb[0].mxu0
    %v1256 = vadd.f32 %v537, %v1255
    %1257 = vmatprep.mubr.bf16.mxu0 0
    %1258 = vmatmul.mubr.bf16.gmra.mrb[0].mxu0 %v455
    %v1259 = vpop.f32.mrb[0].mxu0
    %v1260 = vadd.f32 %v533, %v1259
    %v1261 = vpop.f32.mrb[0].mxu0
    %v1262 = vadd.f32 %v537, %v1261
    %v1263 = vpop.f32.mrb[0].mxu0
    %v1264 = vadd.f32 %v533, %v1263
    %v1265 = vpop.f32.mrb[0].mxu0
    %v1266 = vadd.f32 %v537, %v1265
    %1267 = vdwg.mxu0
    %1268 = vmatprep.subr.bf16.mxu0 %v759
    %1269 = vmatpush1.bf16.msra.mxu0 %v758
    %1270 = vmatprep.subr.bf16.mxu0 %v767
    %1271 = vmatpush1.bf16.msra.mxu0 %v766
    %1272 = vmatprep.subr.bf16.mxu0 %v775
    %1273 = vmatpush1.bf16.msra.mxu0 %v774
    %1274 = vmatprep.subr.bf16.mxu0 %v783
    %1275 = vmatpush1.bf16.msra.mxu0 %v782
    %1276 = vmatprep.subr.bf16.mxu0 %v791
    %1277 = vmatpush1.bf16.msra.mxu0 %v790
    %1278 = vmatprep.subr.bf16.mxu0 %v799
    %1279 = vmatpush1.bf16.msra.mxu0 %v798
    %1280 = vmatprep.subr.bf16.mxu0 %v807
    %1281 = vmatpush1.bf16.msra.mxu0 %v806
    %1282 = vmatprep.subr.bf16.mxu0 %v815
    %1283 = vmatpush1.bf16.msra.mxu0 %v814
    %1284 = vmatprep.subr.bf16.mxu0 0
    %1285 = vmatpush1.bf16.msra.mxu0 0
    %1286 = vmatprep.subr.bf16.mxu0 0
    %1287 = vmatpush1.bf16.msra.mxu0 0
    %1288 = vmatprep.subr.bf16.mxu0 0
    %1289 = vmatpush1.bf16.msra.mxu0 0
    %1290 = vmatprep.subr.bf16.mxu0 0
    %1291 = vmatpush1.bf16.msra.mxu0 0
    %1292 = vmatprep.subr.bf16.mxu0 0
    %1293 = vmatpush1.bf16.msra.mxu0 0
    %1294 = vmatprep.subr.bf16.mxu0 0
    %1295 = vmatpush1.bf16.msra.mxu0 0
    %1296 = vmatprep.subr.bf16.mxu0 0
    %1297 = vmatpush1.bf16.msra.mxu0 0
    %1298 = vmatprep.subr.bf16.mxu0 0
    %1299 = vmatpush1.bf16.msra.mxu0 0
    %1300 = vmatprep.mubr.bf16.mxu0 0
    %1301 = vmatmul.mubr.bf16.gmra.mrb[0].mxu0 %v440
    %v1302 = vpop.f32.mrb[0].mxu0
    %v1303 = vadd.f32 %v541, %v1302
    %v1304 = vpop.f32.mrb[0].mxu0
    %v1305 = vadd.f32 %v545, %v1304
    %v1306 = vpop.f32.mrb[0].mxu0
    %v1307 = vadd.f32 %v541, %v1306
    %v1308 = vpop.f32.mrb[0].mxu0
    %v1309 = vadd.f32 %v545, %v1308
    %1310 = vmatprep.mubr.bf16.mxu0 0
    %1311 = vmatmul.mubr.bf16.gmra.mrb[0].mxu0 %v441
    %v1312 = vpop.f32.mrb[0].mxu0
    %v1313 = vadd.f32 %v541, %v1312
    %v1314 = vpop.f32.mrb[0].mxu0
    %v1315 = vadd.f32 %v545, %v1314
    %v1316 = vpop.f32.mrb[0].mxu0
    %v1317 = vadd.f32 %v541, %v1316
    %v1318 = vpop.f32.mrb[0].mxu0
    %v1319 = vadd.f32 %v545, %v1318
    %1320 = vmatprep.mubr.bf16.mxu0 0
    %1321 = vmatmul.mubr.bf16.gmra.mrb[0].mxu0 %v442
    %v1322 = vpop.f32.mrb[0].mxu0
    %v1323 = vadd.f32 %v541, %v1322
    %v1324 = vpop.f32.mrb[0].mxu0
    %v1325 = vadd.f32 %v545, %v1324
    %v1326 = vpop.f32.mrb[0].mxu0
    %v1327 = vadd.f32 %v541, %v1326
    %v1328 = vpop.f32.mrb[0].mxu0
    %v1329 = vadd.f32 %v545, %v1328
    %1330 = vmatprep.mubr.bf16.mxu0 0
    %1331 = vmatmul.mubr.bf16.gmra.mrb[0].mxu0 %v443
    %v1332 = vpop.f32.mrb[0].mxu0
    %v1333 = vadd.f32 %v541, %v1332
    %v1334 = vpop.f32.mrb[0].mxu0
    %v1335 = vadd.f32 %v545, %v1334
    %v1336 = vpop.f32.mrb[0].mxu0
    %v1337 = vadd.f32 %v541, %v1336
    %v1338 = vpop.f32.mrb[0].mxu0
    %v1339 = vadd.f32 %v545, %v1338
    %1340 = vmatprep.mubr.bf16.mxu0 0
    %1341 = vmatmul.mubr.bf16.gmra.mrb[0].mxu0 %v444
    %v1342 = vpop.f32.mrb[0].mxu0
    %v1343 = vadd.f32 %v541, %v1342
    %v1344 = vpop.f32.mrb[0].mxu0
    %v1345 = vadd.f32 %v545, %v1344
    %v1346 = vpop.f32.mrb[0].mxu0
    %v1347 = vadd.f32 %v541, %v1346
    %v1348 = vpop.f32.mrb[0].mxu0
    %v1349 = vadd.f32 %v545, %v1348
    %1350 = vmatprep.mubr.bf16.mxu0 0
    %1351 = vmatmul.mubr.bf16.gmra.mrb[0].mxu0 %v445
    %v1352 = vpop.f32.mrb[0].mxu0
    %v1353 = vadd.f32 %v541, %v1352
    %v1354 = vpop.f32.mrb[0].mxu0
    %v1355 = vadd.f32 %v545, %v1354
    %v1356 = vpop.f32.mrb[0].mxu0
    %v1357 = vadd.f32 %v541, %v1356
    %v1358 = vpop.f32.mrb[0].mxu0
    %v1359 = vadd.f32 %v545, %v1358
    %1360 = vmatprep.mubr.bf16.mxu0 0
    %1361 = vmatmul.mubr.bf16.gmra.mrb[0].mxu0 %v446
    %v1362 = vpop.f32.mrb[0].mxu0
    %v1363 = vadd.f32 %v541, %v1362
    %v1364 = vpop.f32.mrb[0].mxu0
    %v1365 = vadd.f32 %v545, %v1364
    %v1366 = vpop.f32.mrb[0].mxu0
    %v1367 = vadd.f32 %v541, %v1366
    %v1368 = vpop.f32.mrb[0].mxu0
    %v1369 = vadd.f32 %v545, %v1368
    %1370 = vmatprep.mubr.bf16.mxu0 0
    %1371 = vmatmul.mubr.bf16.gmra.mrb[0].mxu0 %v447
    %v1372 = vpop.f32.mrb[0].mxu0
    %v1373 = vadd.f32 %v541, %v1372
    %v1374 = vpop.f32.mrb[0].mxu0
    %v1375 = vadd.f32 %v545, %v1374
    %v1376 = vpop.f32.mrb[0].mxu0
    %v1377 = vadd.f32 %v541, %v1376
    %v1378 = vpop.f32.mrb[0].mxu0
    %v1379 = vadd.f32 %v545, %v1378
    %1380 = vmatprep.mubr.bf16.mxu0 0
    %1381 = vmatmul.mubr.bf16.gmra.mrb[0].mxu0 %v448
    %v1382 = vpop.f32.mrb[0].mxu0
    %v1383 = vadd.f32 %v541, %v1382
    %v1384 = vpop.f32.mrb[0].mxu0
    %v1385 = vadd.f32 %v545, %v1384
    %v1386 = vpop.f32.mrb[0].mxu0
    %v1387 = vadd.f32 %v541, %v1386
    %v1388 = vpop.f32.mrb[0].mxu0
    %v1389 = vadd.f32 %v545, %v1388
    %1390 = vmatprep.mubr.bf16.mxu0 0
    %1391 = vmatmul.mubr.bf16.gmra.mrb[0].mxu0 %v449
    %v1392 = vpop.f32.mrb[0].mxu0
    %v1393 = vadd.f32 %v541, %v1392
    %v1394 = vpop.f32.mrb[0].mxu0
    %v1395 = vadd.f32 %v545, %v1394
    %v1396 = vpop.f32.mrb[0].mxu0
    %v1397 = vadd.f32 %v541, %v1396
    %v1398 = vpop.f32.mrb[0].mxu0
    %v1399 = vadd.f32 %v545, %v1398
    %1400 = vmatprep.mubr.bf16.mxu0 0
    %1401 = vmatmul.mubr.bf16.gmra.mrb[0].mxu0 %v450
    %v1402 = vpop.f32.mrb[0].mxu0
    %v1403 = vadd.f32 %v541, %v1402
    %v1404 = vpop.f32.mrb[0].mxu0
    %v1405 = vadd.f32 %v545, %v1404
    %v1406 = vpop.f32.mrb[0].mxu0
    %v1407 = vadd.f32 %v541, %v1406
    %v1408 = vpop.f32.mrb[0].mxu0
    %v1409 = vadd.f32 %v545, %v1408
    %1410 = vmatprep.mubr.bf16.mxu0 0
    %1411 = vmatmul.mubr.bf16.gmra.mrb[0].mxu0 %v451
    %v1412 = vpop.f32.mrb[0].mxu0
    %v1413 = vadd.f32 %v541, %v1412
    %v1414 = vpop.f32.mrb[0].mxu0
    %v1415 = vadd.f32 %v545, %v1414
    %v1416 = vpop.f32.mrb[0].mxu0
    %v1417 = vadd.f32 %v541, %v1416
    %v1418 = vpop.f32.mrb[0].mxu0
    %v1419 = vadd.f32 %v545, %v1418
    %1420 = vmatprep.mubr.bf16.mxu0 0
    %1421 = vmatmul.mubr.bf16.gmra.mrb[0].mxu0 %v452
    %v1422 = vpop.f32.mrb[0].mxu0
    %v1423 = vadd.f32 %v541, %v1422
    %v1424 = vpop.f32.mrb[0].mxu0
    %v1425 = vadd.f32 %v545, %v1424
    %v1426 = vpop.f32.mrb[0].mxu0
    %v1427 = vadd.f32 %v541, %v1426
    %v1428 = vpop.f32.mrb[0].mxu0
    %v1429 = vadd.f32 %v545, %v1428
    %1430 = vmatprep.mubr.bf16.mxu0 0
    %1431 = vmatmul.mubr.bf16.gmra.mrb[0].mxu0 %v453
    %v1432 = vpop.f32.mrb[0].mxu0
    %v1433 = vadd.f32 %v541, %v1432
    %v1434 = vpop.f32.mrb[0].mxu0
    %v1435 = vadd.f32 %v545, %v1434
    %v1436 = vpop.f32.mrb[0].mxu0
    %v1437 = vadd.f32 %v541, %v1436
    %v1438 = vpop.f32.mrb[0].mxu0
    %v1439 = vadd.f32 %v545, %v1438
    %1440 = vmatprep.mubr.bf16.mxu0 0
    %1441 = vmatmul.mubr.bf16.gmra.mrb[0].mxu0 %v454
    %v1442 = vpop.f32.mrb[0].mxu0
    %v1443 = vadd.f32 %v541, %v1442
    %v1444 = vpop.f32.mrb[0].mxu0
    %v1445 = vadd.f32 %v545, %v1444
    %v1446 = vpop.f32.mrb[0].mxu0
    %v1447 = vadd.f32 %v541, %v1446
    %v1448 = vpop.f32.mrb[0].mxu0
    %v1449 = vadd.f32 %v545, %v1448
    %1450 = vmatprep.mubr.bf16.mxu0 0
    %1451 = vmatmul.mubr.bf16.gmra.mrb[0].mxu0 %v455
    %v1452 = vpop.f32.mrb[0].mxu0
    %v1453 = vadd.f32 %v541, %v1452
    %v1454 = vpop.f32.mrb[0].mxu0
    %v1455 = vadd.f32 %v545, %v1454
    %v1456 = vpop.f32.mrb[0].mxu0
    %v1457 = vadd.f32 %v541, %v1456
    %v1458 = vpop.f32.mrb[0].mxu0
    %v1459 = vadd.f32 %v545, %v1458
    %1460 = vdwg.mxu0
    %1461 = vmatprep.subr.bf16.mxu0 %v761
    %1462 = vmatpush1.bf16.msra.mxu0 %v760
    %1463 = vmatprep.subr.bf16.mxu0 %v769
    %1464 = vmatpush1.bf16.msra.mxu0 %v768
    %1465 = vmatprep.subr.bf16.mxu0 %v777
    %1466 = vmatpush1.bf16.msra.mxu0 %v776
    %1467 = vmatprep.subr.bf16.mxu0 %v785
    %1468 = vmatpush1.bf16.msra.mxu0 %v784
    %1469 = vmatprep.subr.bf16.mxu0 %v793
    %1470 = vmatpush1.bf16.msra.mxu0 %v792
    %1471 = vmatprep.subr.bf16.mxu0 %v801
    %1472 = vmatpush1.bf16.msra.mxu0 %v800
    %1473 = vmatprep.subr.bf16.mxu0 %v809
    %1474 = vmatpush1.bf16.msra.mxu0 %v808
    %1475 = vmatprep.subr.bf16.mxu0 %v817
    %1476 = vmatpush1.bf16.msra.mxu0 %v816
    %1477 = vmatprep.subr.bf16.mxu0 0
    %1478 = vmatpush1.bf16.msra.mxu0 0
    %1479 = vmatprep.subr.bf16.mxu0 0
    %1480 = vmatpush1.bf16.msra.mxu0 0
    %1481 = vmatprep.subr.bf16.mxu0 0
    %1482 = vmatpush1.bf16.msra.mxu0 0
    %1483 = vmatprep.subr.bf16.mxu0 0
    %1484 = vmatpush1.bf16.msra.mxu0 0
    %1485 = vmatprep.subr.bf16.mxu0 0
    %1486 = vmatpush1.bf16.msra.mxu0 0
    %1487 = vmatprep.subr.bf16.mxu0 0
    %1488 = vmatpush1.bf16.msra.mxu0 0
    %1489 = vmatprep.subr.bf16.mxu0 0
    %1490 = vmatpush1.bf16.msra.mxu0 0
    %1491 = vmatprep.subr.bf16.mxu0 0
    %1492 = vmatpush1.bf16.msra.mxu0 0
    %1493 = vmatprep.mubr.bf16.mxu0 0
    %1494 = vmatmul.mubr.bf16.gmra.mrb[0].mxu0 %v440
    %v1495 = vpop.f32.mrb[0].mxu0
    %v1496 = vadd.f32 %v549, %v1495
    %v1497 = vpop.f32.mrb[0].mxu0
    %v1498 = vadd.f32 %v553, %v1497
    %v1499 = vpop.f32.mrb[0].mxu0
    %v1500 = vadd.f32 %v549, %v1499
    %v1501 = vpop.f32.mrb[0].mxu0
    %v1502 = vadd.f32 %v553, %v1501
    %1503 = vmatprep.mubr.bf16.mxu0 0
    %1504 = vmatmul.mubr.bf16.gmra.mrb[0].mxu0 %v441
    %v1505 = vpop.f32.mrb[0].mxu0
    %v1506 = vadd.f32 %v549, %v1505
    %v1507 = vpop.f32.mrb[0].mxu0
    %v1508 = vadd.f32 %v553, %v1507
    %v1509 = vpop.f32.mrb[0].mxu0
    %v1510 = vadd.f32 %v549, %v1509
    %v1511 = vpop.f32.mrb[0].mxu0
    %v1512 = vadd.f32 %v553, %v1511
    %1513 = vmatprep.mubr.bf16.mxu0 0
    %1514 = vmatmul.mubr.bf16.gmra.mrb[0].mxu0 %v442
    %v1515 = vpop.f32.mrb[0].mxu0
    %v1516 = vadd.f32 %v549, %v1515
    %v1517 = vpop.f32.mrb[0].mxu0
    %v1518 = vadd.f32 %v553, %v1517
    %v1519 = vpop.f32.mrb[0].mxu0
    %v1520 = vadd.f32 %v549, %v1519
    %v1521 = vpop.f32.mrb[0].mxu0
    %v1522 = vadd.f32 %v553, %v1521
    %1523 = vmatprep.mubr.bf16.mxu0 0
    %1524 = vmatmul.mubr.bf16.gmra.mrb[0].mxu0 %v443
    %v1525 = vpop.f32.mrb[0].mxu0
    %v1526 = vadd.f32 %v549, %v1525
    %v1527 = vpop.f32.mrb[0].mxu0
    %v1528 = vadd.f32 %v553, %v1527
    %v1529 = vpop.f32.mrb[0].mxu0
    %v1530 = vadd.f32 %v549, %v1529
    %v1531 = vpop.f32.mrb[0].mxu0
    %v1532 = vadd.f32 %v553, %v1531
    %1533 = vmatprep.mubr.bf16.mxu0 0
    %1534 = vmatmul.mubr.bf16.gmra.mrb[0].mxu0 %v444
    %v1535 = vpop.f32.mrb[0].mxu0
    %v1536 = vadd.f32 %v549, %v1535
    %v1537 = vpop.f32.mrb[0].mxu0
    %v1538 = vadd.f32 %v553, %v1537
    %v1539 = vpop.f32.mrb[0].mxu0
    %v1540 = vadd.f32 %v549, %v1539
    %v1541 = vpop.f32.mrb[0].mxu0
    %v1542 = vadd.f32 %v553, %v1541
    %1543 = vmatprep.mubr.bf16.mxu0 0
    %1544 = vmatmul.mubr.bf16.gmra.mrb[0].mxu0 %v445
    %v1545 = vpop.f32.mrb[0].mxu0
    %v1546 = vadd.f32 %v549, %v1545
    %v1547 = vpop.f32.mrb[0].mxu0
    %v1548 = vadd.f32 %v553, %v1547
    %v1549 = vpop.f32.mrb[0].mxu0
    %v1550 = vadd.f32 %v549, %v1549
    %v1551 = vpop.f32.mrb[0].mxu0
    %v1552 = vadd.f32 %v553, %v1551
    %1553 = vmatprep.mubr.bf16.mxu0 0
    %1554 = vmatmul.mubr.bf16.gmra.mrb[0].mxu0 %v446
    %v1555 = vpop.f32.mrb[0].mxu0
    %v1556 = vadd.f32 %v549, %v1555
    %v1557 = vpop.f32.mrb[0].mxu0
    %v1558 = vadd.f32 %v553, %v1557
    %v1559 = vpop.f32.mrb[0].mxu0
    %v1560 = vadd.f32 %v549, %v1559
    %v1561 = vpop.f32.mrb[0].mxu0
    %v1562 = vadd.f32 %v553, %v1561
    %1563 = vmatprep.mubr.bf16.mxu0 0
    %1564 = vmatmul.mubr.bf16.gmra.mrb[0].mxu0 %v447
    %v1565 = vpop.f32.mrb[0].mxu0
    %v1566 = vadd.f32 %v549, %v1565
    %v1567 = vpop.f32.mrb[0].mxu0
    %v1568 = vadd.f32 %v553, %v1567
    %v1569 = vpop.f32.mrb[0].mxu0
    %v1570 = vadd.f32 %v549, %v1569
    %v1571 = vpop.f32.mrb[0].mxu0
    %v1572 = vadd.f32 %v553, %v1571
    %1573 = vmatprep.mubr.bf16.mxu0 0
    %1574 = vmatmul.mubr.bf16.gmra.mrb[0].mxu0 %v448
    %v1575 = vpop.f32.mrb[0].mxu0
    %v1576 = vadd.f32 %v549, %v1575
    %v1577 = vpop.f32.mrb[0].mxu0
    %v1578 = vadd.f32 %v553, %v1577
    %v1579 = vpop.f32.mrb[0].mxu0
    %v1580 = vadd.f32 %v549, %v1579
    %v1581 = vpop.f32.mrb[0].mxu0
    %v1582 = vadd.f32 %v553, %v1581
    %1583 = vmatprep.mubr.bf16.mxu0 0
    %1584 = vmatmul.mubr.bf16.gmra.mrb[0].mxu0 %v449
    %v1585 = vpop.f32.mrb[0].mxu0
    %v1586 = vadd.f32 %v549, %v1585
    %v1587 = vpop.f32.mrb[0].mxu0
    %v1588 = vadd.f32 %v553, %v1587
    %v1589 = vpop.f32.mrb[0].mxu0
    %v1590 = vadd.f32 %v549, %v1589
    %v1591 = vpop.f32.mrb[0].mxu0
    %v1592 = vadd.f32 %v553, %v1591
    %1593 = vmatprep.mubr.bf16.mxu0 0
    %1594 = vmatmul.mubr.bf16.gmra.mrb[0].mxu0 %v450
    %v1595 = vpop.f32.mrb[0].mxu0
    %v1596 = vadd.f32 %v549, %v1595
    %v1597 = vpop.f32.mrb[0].mxu0
    %v1598 = vadd.f32 %v553, %v1597
    %v1599 = vpop.f32.mrb[0].mxu0
    %v1600 = vadd.f32 %v549, %v1599
    %v1601 = vpop.f32.mrb[0].mxu0
    %v1602 = vadd.f32 %v553, %v1601
    %1603 = vmatprep.mubr.bf16.mxu0 0
    %1604 = vmatmul.mubr.bf16.gmra.mrb[0].mxu0 %v451
    %v1605 = vpop.f32.mrb[0].mxu0
    %v1606 = vadd.f32 %v549, %v1605
    %v1607 = vpop.f32.mrb[0].mxu0
    %v1608 = vadd.f32 %v553, %v1607
    %v1609 = vpop.f32.mrb[0].mxu0
    %v1610 = vadd.f32 %v549, %v1609
    %v1611 = vpop.f32.mrb[0].mxu0
    %v1612 = vadd.f32 %v553, %v1611
    %1613 = vmatprep.mubr.bf16.mxu0 0
    %1614 = vmatmul.mubr.bf16.gmra.mrb[0].mxu0 %v452
    %v1615 = vpop.f32.mrb[0].mxu0
    %v1616 = vadd.f32 %v549, %v1615
    %v1617 = vpop.f32.mrb[0].mxu0
    %v1618 = vadd.f32 %v553, %v1617
    %v1619 = vpop.f32.mrb[0].mxu0
    %v1620 = vadd.f32 %v549, %v1619
    %v1621 = vpop.f32.mrb[0].mxu0
    %v1622 = vadd.f32 %v553, %v1621
    %1623 = vmatprep.mubr.bf16.mxu0 0
    %1624 = vmatmul.mubr.bf16.gmra.mrb[0].mxu0 %v453
    %v1625 = vpop.f32.mrb[0].mxu0
    %v1626 = vadd.f32 %v549, %v1625
    %v1627 = vpop.f32.mrb[0].mxu0
    %v1628 = vadd.f32 %v553, %v1627
    %v1629 = vpop.f32.mrb[0].mxu0
    %v1630 = vadd.f32 %v549, %v1629
    %v1631 = vpop.f32.mrb[0].mxu0
    %v1632 = vadd.f32 %v553, %v1631
    %1633 = vmatprep.mubr.bf16.mxu0 0
    %1634 = vmatmul.mubr.bf16.gmra.mrb[0].mxu0 %v454
    %v1635 = vpop.f32.mrb[0].mxu0
    %v1636 = vadd.f32 %v549, %v1635
    %v1637 = vpop.f32.mrb[0].mxu0
    %v1638 = vadd.f32 %v553, %v1637
    %v1639 = vpop.f32.mrb[0].mxu0
    %v1640 = vadd.f32 %v549, %v1639
    %v1641 = vpop.f32.mrb[0].mxu0
    %v1642 = vadd.f32 %v553, %v1641
    %1643 = vmatprep.mubr.bf16.mxu0 0
    %1644 = vmatmul.mubr.bf16.gmra.mrb[0].mxu0 %v455
    %v1645 = vpop.f32.mrb[0].mxu0
    %v1646 = vadd.f32 %v549, %v1645
    %v1647 = vpop.f32.mrb[0].mxu0
    %v1648 = vadd.f32 %v553, %v1647
    %v1649 = vpop.f32.mrb[0].mxu0
    %v1650 = vadd.f32 %v549, %v1649
    %v1651 = vpop.f32.mrb[0].mxu0
    %v1652 = vadd.f32 %v553, %v1651
    %1653 = vdwg.mxu0
    %v1654 = vpack.c.bf16 %v921, %v917
    %v1655 = vpack.c.bf16 %v923, %v919
    %v1656 = vpack.c.bf16 %v1114, %v1110
    %v1657 = vpack.c.bf16 %v1116, %v1112
    %v1658 = vpack.c.bf16 %v1307, %v1303
    %v1659 = vpack.c.bf16 %v1309, %v1305
    %v1660 = vpack.c.bf16 %v1500, %v1496
    %v1661 = vpack.c.bf16 %v1502, %v1498
    %v1662 = vpack.c.bf16 %v931, %v927
    %v1663 = vpack.c.bf16 %v933, %v929
    %v1664 = vpack.c.bf16 %v1124, %v1120
    %v1665 = vpack.c.bf16 %v1126, %v1122
    %v1666 = vpack.c.bf16 %v1317, %v1313
    %v1667 = vpack.c.bf16 %v1319, %v1315
    %v1668 = vpack.c.bf16 %v1510, %v1506
    %v1669 = vpack.c.bf16 %v1512, %v1508
    %v1670 = vpack.c.bf16 %v941, %v937
    %v1671 = vpack.c.bf16 %v943, %v939
    %v1672 = vpack.c.bf16 %v1134, %v1130
    %v1673 = vpack.c.bf16 %v1136, %v1132
    %v1674 = vpack.c.bf16 %v1327, %v1323
    %v1675 = vpack.c.bf16 %v1329, %v1325
    %v1676 = vpack.c.bf16 %v1520, %v1516
    %v1677 = vpack.c.bf16 %v1522, %v1518
    %v1678 = vpack.c.bf16 %v951, %v947
    %v1679 = vpack.c.bf16 %v953, %v949
    %v1680 = vpack.c.bf16 %v1144, %v1140
    %v1681 = vpack.c.bf16 %v1146, %v1142
    %v1682 = vpack.c.bf16 %v1337, %v1333
    %v1683 = vpack.c.bf16 %v1339, %v1335
    %v1684 = vpack.c.bf16 %v1530, %v1526
    %v1685 = vpack.c.bf16 %v1532, %v1528
    %v1686 = vpack.c.bf16 %v961, %v957
    %v1687 = vpack.c.bf16 %v963, %v959
    %v1688 = vpack.c.bf16 %v1154, %v1150
    %v1689 = vpack.c.bf16 %v1156, %v1152
    %v1690 = vpack.c.bf16 %v1347, %v1343
    %v1691 = vpack.c.bf16 %v1349, %v1345
    %v1692 = vpack.c.bf16 %v1540, %v1536
    %v1693 = vpack.c.bf16 %v1542, %v1538
    %v1694 = vpack.c.bf16 %v971, %v967
    %v1695 = vpack.c.bf16 %v973, %v969
    %v1696 = vpack.c.bf16 %v1164, %v1160
    %v1697 = vpack.c.bf16 %v1166, %v1162
    %v1698 = vpack.c.bf16 %v1357, %v1353
    %v1699 = vpack.c.bf16 %v1359, %v1355
    %v1700 = vpack.c.bf16 %v1550, %v1546
    %v1701 = vpack.c.bf16 %v1552, %v1548
    %v1702 = vpack.c.bf16 %v981, %v977
    %v1703 = vpack.c.bf16 %v983, %v979
    %v1704 = vpack.c.bf16 %v1174, %v1170
    %v1705 = vpack.c.bf16 %v1176, %v1172
    %v1706 = vpack.c.bf16 %v1367, %v1363
    %v1707 = vpack.c.bf16 %v1369, %v1365
    %v1708 = vpack.c.bf16 %v1560, %v1556
    %v1709 = vpack.c.bf16 %v1562, %v1558
    %v1710 = vpack.c.bf16 %v991, %v987
    %v1711 = vpack.c.bf16 %v993, %v989
    %v1712 = vpack.c.bf16 %v1184, %v1180
    %v1713 = vpack.c.bf16 %v1186, %v1182
    %v1714 = vpack.c.bf16 %v1377, %v1373
    %v1715 = vpack.c.bf16 %v1379, %v1375
    %v1716 = vpack.c.bf16 %v1570, %v1566
    %v1717 = vpack.c.bf16 %v1572, %v1568
    %v1718 = vpack.c.bf16 %v1001, %v997
    %v1719 = vpack.c.bf16 %v1003, %v999
    %v1720 = vpack.c.bf16 %v1194, %v1190
    %v1721 = vpack.c.bf16 %v1196, %v1192
    %v1722 = vpack.c.bf16 %v1387, %v1383
    %v1723 = vpack.c.bf16 %v1389, %v1385
    %v1724 = vpack.c.bf16 %v1580, %v1576
    %v1725 = vpack.c.bf16 %v1582, %v1578
    %v1726 = vpack.c.bf16 %v1011, %v1007
    %v1727 = vpack.c.bf16 %v1013, %v1009
    %v1728 = vpack.c.bf16 %v1204, %v1200
    %v1729 = vpack.c.bf16 %v1206, %v1202
    %v1730 = vpack.c.bf16 %v1397, %v1393
    %v1731 = vpack.c.bf16 %v1399, %v1395
    %v1732 = vpack.c.bf16 %v1590, %v1586
    %v1733 = vpack.c.bf16 %v1592, %v1588
    %v1734 = vpack.c.bf16 %v1021, %v1017
    %v1735 = vpack.c.bf16 %v1023, %v1019
    %v1736 = vpack.c.bf16 %v1214, %v1210
    %v1737 = vpack.c.bf16 %v1216, %v1212
    %v1738 = vpack.c.bf16 %v1407, %v1403
    %v1739 = vpack.c.bf16 %v1409, %v1405
    %v1740 = vpack.c.bf16 %v1600, %v1596
    %v1741 = vpack.c.bf16 %v1602, %v1598
    %v1742 = vpack.c.bf16 %v1031, %v1027
    %v1743 = vpack.c.bf16 %v1033, %v1029
    %v1744 = vpack.c.bf16 %v1224, %v1220
    %v1745 = vpack.c.bf16 %v1226, %v1222
    %v1746 = vpack.c.bf16 %v1417, %v1413
    %v1747 = vpack.c.bf16 %v1419, %v1415
    %v1748 = vpack.c.bf16 %v1610, %v1606
    %v1749 = vpack.c.bf16 %v1612, %v1608
    %v1750 = vpack.c.bf16 %v1041, %v1037
    %v1751 = vpack.c.bf16 %v1043, %v1039
    %v1752 = vpack.c.bf16 %v1234, %v1230
    %v1753 = vpack.c.bf16 %v1236, %v1232
    %v1754 = vpack.c.bf16 %v1427, %v1423
    %v1755 = vpack.c.bf16 %v1429, %v1425
    %v1756 = vpack.c.bf16 %v1620, %v1616
    %v1757 = vpack.c.bf16 %v1622, %v1618
    %v1758 = vpack.c.bf16 %v1051, %v1047
    %v1759 = vpack.c.bf16 %v1053, %v1049
    %v1760 = vpack.c.bf16 %v1244, %v1240
    %v1761 = vpack.c.bf16 %v1246, %v1242
    %v1762 = vpack.c.bf16 %v1437, %v1433
    %v1763 = vpack.c.bf16 %v1439, %v1435
    %v1764 = vpack.c.bf16 %v1630, %v1626
    %v1765 = vpack.c.bf16 %v1632, %v1628
    %v1766 = vpack.c.bf16 %v1061, %v1057
    %v1767 = vpack.c.bf16 %v1063, %v1059
    %v1768 = vpack.c.bf16 %v1254, %v1250
    %v1769 = vpack.c.bf16 %v1256, %v1252
    %v1770 = vpack.c.bf16 %v1447, %v1443
    %v1771 = vpack.c.bf16 %v1449, %v1445
    %v1772 = vpack.c.bf16 %v1640, %v1636
    %v1773 = vpack.c.bf16 %v1642, %v1638
    %v1774 = vpack.c.bf16 %v1071, %v1067
    %v1775 = vpack.c.bf16 %v1073, %v1069
    %v1776 = vpack.c.bf16 %v1264, %v1260
    %v1777 = vpack.c.bf16 %v1266, %v1262
    %v1778 = vpack.c.bf16 %v1457, %v1453
    %v1779 = vpack.c.bf16 %v1459, %v1455
    %v1780 = vpack.c.bf16 %v1650, %v1646
    %v1781 = vpack.c.bf16 %v1652, %v1648
    %vm1782 = vcmp.gt.bf16.partialorder %v1654, 0
    %vm1783 = vcmp.gt.bf16.partialorder %v1655, 0
    %vm1784 = vcmp.gt.bf16.partialorder %v1656, 0
    %vm1785 = vcmp.gt.bf16.partialorder %v1657, 0
    %vm1786 = vcmp.gt.bf16.partialorder %v1658, 0
    %vm1787 = vcmp.gt.bf16.partialorder %v1659, 0
    %vm1788 = vcmp.gt.bf16.partialorder %v1660, 0
    %vm1789 = vcmp.gt.bf16.partialorder %v1661, 0
    %vm1790 = vcmp.gt.bf16.partialorder %v1662, 0
    %vm1791 = vcmp.gt.bf16.partialorder %v1663, 0
    %vm1792 = vcmp.gt.bf16.partialorder %v1664, 0
    %vm1793 = vcmp.gt.bf16.partialorder %v1665, 0
    %vm1794 = vcmp.gt.bf16.partialorder %v1666, 0
    %vm1795 = vcmp.gt.bf16.partialorder %v1667, 0
    %vm1796 = vcmp.gt.bf16.partialorder %v1668, 0
    %vm1797 = vcmp.gt.bf16.partialorder %v1669, 0
    %vm1798 = vcmp.gt.bf16.partialorder %v1670, 0
    %vm1799 = vcmp.gt.bf16.partialorder %v1671, 0
    %vm1800 = vcmp.gt.bf16.partialorder %v1672, 0
    %vm1801 = vcmp.gt.bf16.partialorder %v1673, 0
    %vm1802 = vcmp.gt.bf16.partialorder %v1674, 0
    %vm1803 = vcmp.gt.bf16.partialorder %v1675, 0
    %vm1804 = vcmp.gt.bf16.partialorder %v1676, 0
    %vm1805 = vcmp.gt.bf16.partialorder %v1677, 0
    %vm1806 = vcmp.gt.bf16.partialorder %v1678, 0
    %vm1807 = vcmp.gt.bf16.partialorder %v1679, 0
    %vm1808 = vcmp.gt.bf16.partialorder %v1680, 0
    %vm1809 = vcmp.gt.bf16.partialorder %v1681, 0
    %vm1810 = vcmp.gt.bf16.partialorder %v1682, 0
    %vm1811 = vcmp.gt.bf16.partialorder %v1683, 0
    %vm1812 = vcmp.gt.bf16.partialorder %v1684, 0
    %vm1813 = vcmp.gt.bf16.partialorder %v1685, 0
    %vm1814 = vcmp.gt.bf16.partialorder %v1686, 0
    %vm1815 = vcmp.gt.bf16.partialorder %v1687, 0
    %vm1816 = vcmp.gt.bf16.partialorder %v1688, 0
    %vm1817 = vcmp.gt.bf16.partialorder %v1689, 0
    %vm1818 = vcmp.gt.bf16.partialorder %v1690, 0
    %vm1819 = vcmp.gt.bf16.partialorder %v1691, 0
    %vm1820 = vcmp.gt.bf16.partialorder %v1692, 0
    %vm1821 = vcmp.gt.bf16.partialorder %v1693, 0
    %vm1822 = vcmp.gt.bf16.partialorder %v1694, 0
    %vm1823 = vcmp.gt.bf16.partialorder %v1695, 0
    %vm1824 = vcmp.gt.bf16.partialorder %v1696, 0
    %vm1825 = vcmp.gt.bf16.partialorder %v1697, 0
    %vm1826 = vcmp.gt.bf16.partialorder %v1698, 0
    %vm1827 = vcmp.gt.bf16.partialorder %v1699, 0
    %vm1828 = vcmp.gt.bf16.partialorder %v1700, 0
    %vm1829 = vcmp.gt.bf16.partialorder %v1701, 0
    %vm1830 = vcmp.gt.bf16.partialorder %v1702, 0
    %vm1831 = vcmp.gt.bf16.partialorder %v1703, 0
    %vm1832 = vcmp.gt.bf16.partialorder %v1704, 0
    %vm1833 = vcmp.gt.bf16.partialorder %v1705, 0
    %vm1834 = vcmp.gt.bf16.partialorder %v1706, 0
    %vm1835 = vcmp.gt.bf16.partialorder %v1707, 0
    %vm1836 = vcmp.gt.bf16.partialorder %v1708, 0
    %vm1837 = vcmp.gt.bf16.partialorder %v1709, 0
    %vm1838 = vcmp.gt.bf16.partialorder %v1710, 0
    %vm1839 = vcmp.gt.bf16.partialorder %v1711, 0
    %vm1840 = vcmp.gt.bf16.partialorder %v1712, 0
    %vm1841 = vcmp.gt.bf16.partialorder %v1713, 0
    %vm1842 = vcmp.gt.bf16.partialorder %v1714, 0
    %vm1843 = vcmp.gt.bf16.partialorder %v1715, 0
    %vm1844 = vcmp.gt.bf16.partialorder %v1716, 0
    %vm1845 = vcmp.gt.bf16.partialorder %v1717, 0
    %vm1846 = vcmp.gt.bf16.partialorder %v1718, 0
    %vm1847 = vcmp.gt.bf16.partialorder %v1719, 0
    %vm1848 = vcmp.gt.bf16.partialorder %v1720, 0
    %vm1849 = vcmp.gt.bf16.partialorder %v1721, 0
    %vm1850 = vcmp.gt.bf16.partialorder %v1722, 0
    %vm1851 = vcmp.gt.bf16.partialorder %v1723, 0
    %vm1852 = vcmp.gt.bf16.partialorder %v1724, 0
    %vm1853 = vcmp.gt.bf16.partialorder %v1725, 0
    %vm1854 = vcmp.gt.bf16.partialorder %v1726, 0
    %vm1855 = vcmp.gt.bf16.partialorder %v1727, 0
    %vm1856 = vcmp.gt.bf16.partialorder %v1728, 0
    %vm1857 = vcmp.gt.bf16.partialorder %v1729, 0
    %vm1858 = vcmp.gt.bf16.partialorder %v1730, 0
    %vm1859 = vcmp.gt.bf16.partialorder %v1731, 0
    %vm1860 = vcmp.gt.bf16.partialorder %v1732, 0
    %vm1861 = vcmp.gt.bf16.partialorder %v1733, 0
    %vm1862 = vcmp.gt.bf16.partialorder %v1734, 0
    %vm1863 = vcmp.gt.bf16.partialorder %v1735, 0
    %vm1864 = vcmp.gt.bf16.partialorder %v1736, 0
    %vm1865 = vcmp.gt.bf16.partialorder %v1737, 0
    %vm1866 = vcmp.gt.bf16.partialorder %v1738, 0
    %vm1867 = vcmp.gt.bf16.partialorder %v1739, 0
    %vm1868 = vcmp.gt.bf16.partialorder %v1740, 0
    %vm1869 = vcmp.gt.bf16.partialorder %v1741, 0
    %vm1870 = vcmp.gt.bf16.partialorder %v1742, 0
    %vm1871 = vcmp.gt.bf16.partialorder %v1743, 0
    %vm1872 = vcmp.gt.bf16.partialorder %v1744, 0
    %vm1873 = vcmp.gt.bf16.partialorder %v1745, 0
    %vm1874 = vcmp.gt.bf16.partialorder %v1746, 0
    %vm1875 = vcmp.gt.bf16.partialorder %v1747, 0
    %vm1876 = vcmp.gt.bf16.partialorder %v1748, 0
    %vm1877 = vcmp.gt.bf16.partialorder %v1749, 0
    %vm1878 = vcmp.gt.bf16.partialorder %v1750, 0
    %vm1879 = vcmp.gt.bf16.partialorder %v1751, 0
    %vm1880 = vcmp.gt.bf16.partialorder %v1752, 0
    %vm1881 = vcmp.gt.bf16.partialorder %v1753, 0
    %vm1882 = vcmp.gt.bf16.partialorder %v1754, 0
    %vm1883 = vcmp.gt.bf16.partialorder %v1755, 0
    %vm1884 = vcmp.gt.bf16.partialorder %v1756, 0
    %vm1885 = vcmp.gt.bf16.partialorder %v1757, 0
    %vm1886 = vcmp.gt.bf16.partialorder %v1758, 0
    %vm1887 = vcmp.gt.bf16.partialorder %v1759, 0
    %vm1888 = vcmp.gt.bf16.partialorder %v1760, 0
    %vm1889 = vcmp.gt.bf16.partialorder %v1761, 0
    %vm1890 = vcmp.gt.bf16.partialorder %v1762, 0
    %vm1891 = vcmp.gt.bf16.partialorder %v1763, 0
    %vm1892 = vcmp.gt.bf16.partialorder %v1764, 0
    %vm1893 = vcmp.gt.bf16.partialorder %v1765, 0
    %vm1894 = vcmp.gt.bf16.partialorder %v1766, 0
    %vm1895 = vcmp.gt.bf16.partialorder %v1767, 0
    %vm1896 = vcmp.gt.bf16.partialorder %v1768, 0
    %vm1897 = vcmp.gt.bf16.partialorder %v1769, 0
    %vm1898 = vcmp.gt.bf16.partialorder %v1770, 0
    %vm1899 = vcmp.gt.bf16.partialorder %v1771, 0
    %vm1900 = vcmp.gt.bf16.partialorder %v1772, 0
    %vm1901 = vcmp.gt.bf16.partialorder %v1773, 0
    %vm1902 = vcmp.gt.bf16.partialorder %v1774, 0
    %vm1903 = vcmp.gt.bf16.partialorder %v1775, 0
    %vm1904 = vcmp.gt.bf16.partialorder %v1776, 0
    %vm1905 = vcmp.gt.bf16.partialorder %v1777, 0
    %vm1906 = vcmp.gt.bf16.partialorder %v1778, 0
    %vm1907 = vcmp.gt.bf16.partialorder %v1779, 0
    %vm1908 = vcmp.gt.bf16.partialorder %v1780, 0
    %vm1909 = vcmp.gt.bf16.partialorder %v1781, 0
    %v1910 = vmul.bf16 %v1654, 1009007652
    %v1911 = vmul.bf16 %v1655, 1009007652
    %v1912 = vmul.bf16 %v1656, 1009007652
    %v1913 = vmul.bf16 %v1657, 1009007652
    %v1914 = vmul.bf16 %v1658, 1009007652
    %v1915 = vmul.bf16 %v1659, 1009007652
    %v1916 = vmul.bf16 %v1660, 1009007652
    %v1917 = vmul.bf16 %v1661, 1009007652
    %v1918 = vmul.bf16 %v1662, 1009007652
    %v1919 = vmul.bf16 %v1663, 1009007652
    %v1920 = vmul.bf16 %v1664, 1009007652
    %v1921 = vmul.bf16 %v1665, 1009007652
    %v1922 = vmul.bf16 %v1666, 1009007652
    %v1923 = vmul.bf16 %v1667, 1009007652
    %v1924 = vmul.bf16 %v1668, 1009007652
    %v1925 = vmul.bf16 %v1669, 1009007652
    %v1926 = vmul.bf16 %v1670, 1009007652
    %v1927 = vmul.bf16 %v1671, 1009007652
    %v1928 = vmul.bf16 %v1672, 1009007652
    %v1929 = vmul.bf16 %v1673, 1009007652
    %v1930 = vmul.bf16 %v1674, 1009007652
    %v1931 = vmul.bf16 %v1675, 1009007652
    %v1932 = vmul.bf16 %v1676, 1009007652
    %v1933 = vmul.bf16 %v1677, 1009007652
    %v1934 = vmul.bf16 %v1678, 1009007652
    %v1935 = vmul.bf16 %v1679, 1009007652
    %v1936 = vmul.bf16 %v1680, 1009007652
    %v1937 = vmul.bf16 %v1681, 1009007652
    %v1938 = vmul.bf16 %v1682, 1009007652
    %v1939 = vmul.bf16 %v1683, 1009007652
    %v1940 = vmul.bf16 %v1684, 1009007652
    %v1941 = vmul.bf16 %v1685, 1009007652
    %v1942 = vmul.bf16 %v1686, 1009007652
    %v1943 = vmul.bf16 %v1687, 1009007652
    %v1944 = vmul.bf16 %v1688, 1009007652
    %v1945 = vmul.bf16 %v1689, 1009007652
    %v1946 = vmul.bf16 %v1690, 1009007652
    %v1947 = vmul.bf16 %v1691, 1009007652
    %v1948 = vmul.bf16 %v1692, 1009007652
    %v1949 = vmul.bf16 %v1693, 1009007652
    %v1950 = vmul.bf16 %v1694, 1009007652
    %v1951 = vmul.bf16 %v1695, 1009007652
    %v1952 = vmul.bf16 %v1696, 1009007652
    %v1953 = vmul.bf16 %v1697, 1009007652
    %v1954 = vmul.bf16 %v1698, 1009007652
    %v1955 = vmul.bf16 %v1699, 1009007652
    %v1956 = vmul.bf16 %v1700, 1009007652
    %v1957 = vmul.bf16 %v1701, 1009007652
    %v1958 = vmul.bf16 %v1702, 1009007652
    %v1959 = vmul.bf16 %v1703, 1009007652
    %v1960 = vmul.bf16 %v1704, 1009007652
    %v1961 = vmul.bf16 %v1705, 1009007652
    %v1962 = vmul.bf16 %v1706, 1009007652
    %v1963 = vmul.bf16 %v1707, 1009007652
    %v1964 = vmul.bf16 %v1708, 1009007652
    %v1965 = vmul.bf16 %v1709, 1009007652
    %v1966 = vmul.bf16 %v1710, 1009007652
    %v1967 = vmul.bf16 %v1711, 1009007652
    %v1968 = vmul.bf16 %v1712, 1009007652
    %v1969 = vmul.bf16 %v1713, 1009007652
    %v1970 = vmul.bf16 %v1714, 1009007652
    %v1971 = vmul.bf16 %v1715, 1009007652
    %v1972 = vmul.bf16 %v1716, 1009007652
    %v1973 = vmul.bf16 %v1717, 1009007652
    %v1974 = vmul.bf16 %v1718, 1009007652
    %v1975 = vmul.bf16 %v1719, 1009007652
    %v1976 = vmul.bf16 %v1720, 1009007652
    %v1977 = vmul.bf16 %v1721, 1009007652
    %v1978 = vmul.bf16 %v1722, 1009007652
    %v1979 = vmul.bf16 %v1723, 1009007652
    %v1980 = vmul.bf16 %v1724, 1009007652
    %v1981 = vmul.bf16 %v1725, 1009007652
    %v1982 = vmul.bf16 %v1726, 1009007652
    %v1983 = vmul.bf16 %v1727, 1009007652
    %v1984 = vmul.bf16 %v1728, 1009007652
    %v1985 = vmul.bf16 %v1729, 1009007652
    %v1986 = vmul.bf16 %v1730, 1009007652
    %v1987 = vmul.bf16 %v1731, 1009007652
    %v1988 = vmul.bf16 %v1732, 1009007652
    %v1989 = vmul.bf16 %v1733, 1009007652
    %v1990 = vmul.bf16 %v1734, 1009007652
    %v1991 = vmul.bf16 %v1735, 1009007652
    %v1992 = vmul.bf16 %v1736, 1009007652
    %v1993 = vmul.bf16 %v1737, 1009007652
    %v1994 = vmul.bf16 %v1738, 1009007652
    %v1995 = vmul.bf16 %v1739, 1009007652
    %v1996 = vmul.bf16 %v1740, 1009007652
    %v1997 = vmul.bf16 %v1741, 1009007652
    %v1998 = vmul.bf16 %v1742, 1009007652
    %v1999 = vmul.bf16 %v1743, 1009007652
    %v2000 = vmul.bf16 %v1744, 1009007652
    %v2001 = vmul.bf16 %v1745, 1009007652
    %v2002 = vmul.bf16 %v1746, 1009007652
    %v2003 = vmul.bf16 %v1747, 1009007652
    %v2004 = vmul.bf16 %v1748, 1009007652
    %v2005 = vmul.bf16 %v1749, 1009007652
    %v2006 = vmul.bf16 %v1750, 1009007652
    %v2007 = vmul.bf16 %v1751, 1009007652
    %v2008 = vmul.bf16 %v1752, 1009007652
    %v2009 = vmul.bf16 %v1753, 1009007652
    %v2010 = vmul.bf16 %v1754, 1009007652
    %v2011 = vmul.bf16 %v1755, 1009007652
    %v2012 = vmul.bf16 %v1756, 1009007652
    %v2013 = vmul.bf16 %v1757, 1009007652
    %v2014 = vmul.bf16 %v1758, 1009007652
    %v2015 = vmul.bf16 %v1759, 1009007652
    %v2016 = vmul.bf16 %v1760, 1009007652
    %v2017 = vmul.bf16 %v1761, 1009007652
    %v2018 = vmul.bf16 %v1762, 1009007652
    %v2019 = vmul.bf16 %v1763, 1009007652
    %v2020 = vmul.bf16 %v1764, 1009007652
    %v2021 = vmul.bf16 %v1765, 1009007652
    %v2022 = vmul.bf16 %v1766, 1009007652
    %v2023 = vmul.bf16 %v1767, 1009007652
    %v2024 = vmul.bf16 %v1768, 1009007652
    %v2025 = vmul.bf16 %v1769, 1009007652
    %v2026 = vmul.bf16 %v1770, 1009007652
    %v2027 = vmul.bf16 %v1771, 1009007652
    %v2028 = vmul.bf16 %v1772, 1009007652
    %v2029 = vmul.bf16 %v1773, 1009007652
    %v2030 = vmul.bf16 %v1774, 1009007652
    %v2031 = vmul.bf16 %v1775, 1009007652
    %v2032 = vmul.bf16 %v1776, 1009007652
    %v2033 = vmul.bf16 %v1777, 1009007652
    %v2034 = vmul.bf16 %v1778, 1009007652
    %v2035 = vmul.bf16 %v1779, 1009007652
    %v2036 = vmul.bf16 %v1780, 1009007652
    %v2037 = vmul.bf16 %v1781, 1009007652
    %v2038 = vsel %vm1782, %v1654, %v1910
    %v2039 = vsel %vm1783, %v1655, %v1911
    %v2040 = vsel %vm1784, %v1656, %v1912
    %v2041 = vsel %vm1785, %v1657, %v1913
    %v2042 = vsel %vm1786, %v1658, %v1914
    %v2043 = vsel %vm1787, %v1659, %v1915
    %v2044 = vsel %vm1788, %v1660, %v1916
    %v2045 = vsel %vm1789, %v1661, %v1917
    %v2046 = vsel %vm1790, %v1662, %v1918
    %v2047 = vsel %vm1791, %v1663, %v1919
    %v2048 = vsel %vm1792, %v1664, %v1920
    %v2049 = vsel %vm1793, %v1665, %v1921
    %v2050 = vsel %vm1794, %v1666, %v1922
    %v2051 = vsel %vm1795, %v1667, %v1923
    %v2052 = vsel %vm1796, %v1668, %v1924
    %v2053 = vsel %vm1797, %v1669, %v1925
    %v2054 = vsel %vm1798, %v1670, %v1926
    %v2055 = vsel %vm1799, %v1671, %v1927
    %v2056 = vsel %vm1800, %v1672, %v1928
    %v2057 = vsel %vm1801, %v1673, %v1929
    %v2058 = vsel %vm1802, %v1674, %v1930
    %v2059 = vsel %vm1803, %v1675, %v1931
    %v2060 = vsel %vm1804, %v1676, %v1932
    %v2061 = vsel %vm1805, %v1677, %v1933
    %v2062 = vsel %vm1806, %v1678, %v1934
    %v2063 = vsel %vm1807, %v1679, %v1935
    %v2064 = vsel %vm1808, %v1680, %v1936
    %v2065 = vsel %vm1809, %v1681, %v1937
    %v2066 = vsel %vm1810, %v1682, %v1938
    %v2067 = vsel %vm1811, %v1683, %v1939
    %v2068 = vsel %vm1812, %v1684, %v1940
    %v2069 = vsel %vm1813, %v1685, %v1941
    %v2070 = vsel %vm1814, %v1686, %v1942
    %v2071 = vsel %vm1815, %v1687, %v1943
    %v2072 = vsel %vm1816, %v1688, %v1944
    %v2073 = vsel %vm1817, %v1689, %v1945
    %v2074 = vsel %vm1818, %v1690, %v1946
    %v2075 = vsel %vm1819, %v1691, %v1947
    %v2076 = vsel %vm1820, %v1692, %v1948
    %v2077 = vsel %vm1821, %v1693, %v1949
    %v2078 = vsel %vm1822, %v1694, %v1950
    %v2079 = vsel %vm1823, %v1695, %v1951
    %v2080 = vsel %vm1824, %v1696, %v1952
    %v2081 = vsel %vm1825, %v1697, %v1953
    %v2082 = vsel %vm1826, %v1698, %v1954
    %v2083 = vsel %vm1827, %v1699, %v1955
    %v2084 = vsel %vm1828, %v1700, %v1956
    %v2085 = vsel %vm1829, %v1701, %v1957
    %v2086 = vsel %vm1830, %v1702, %v1958
    %v2087 = vsel %vm1831, %v1703, %v1959
    %v2088 = vsel %vm1832, %v1704, %v1960
    %v2089 = vsel %vm1833, %v1705, %v1961
    %v2090 = vsel %vm1834, %v1706, %v1962
    %v2091 = vsel %vm1835, %v1707, %v1963
    %v2092 = vsel %vm1836, %v1708, %v1964
    %v2093 = vsel %vm1837, %v1709, %v1965
    %v2094 = vsel %vm1838, %v1710, %v1966
    %v2095 = vsel %vm1839, %v1711, %v1967
    %v2096 = vsel %vm1840, %v1712, %v1968
    %v2097 = vsel %vm1841, %v1713, %v1969
    %v2098 = vsel %vm1842, %v1714, %v1970
    %v2099 = vsel %vm1843, %v1715, %v1971
    %v2100 = vsel %vm1844, %v1716, %v1972
    %v2101 = vsel %vm1845, %v1717, %v1973
    %v2102 = vsel %vm1846, %v1718, %v1974
    %v2103 = vsel %vm1847, %v1719, %v1975
    %v2104 = vsel %vm1848, %v1720, %v1976
    %v2105 = vsel %vm1849, %v1721, %v1977
    %v2106 = vsel %vm1850, %v1722, %v1978
    %v2107 = vsel %vm1851, %v1723, %v1979
    %v2108 = vsel %vm1852, %v1724, %v1980
    %v2109 = vsel %vm1853, %v1725, %v1981
    %v2110 = vsel %vm1854, %v1726, %v1982
    %v2111 = vsel %vm1855, %v1727, %v1983
    %v2112 = vsel %vm1856, %v1728, %v1984
    %v2113 = vsel %vm1857, %v1729, %v1985
    %v2114 = vsel %vm1858, %v1730, %v1986
    %v2115 = vsel %vm1859, %v1731, %v1987
    %v2116 = vsel %vm1860, %v1732, %v1988
    %v2117 = vsel %vm1861, %v1733, %v1989
    %v2118 = vsel %vm1862, %v1734, %v1990
    %v2119 = vsel %vm1863, %v1735, %v1991
    %v2120 = vsel %vm1864, %v1736, %v1992
    %v2121 = vsel %vm1865, %v1737, %v1993
    %v2122 = vsel %vm1866, %v1738, %v1994
    %v2123 = vsel %vm1867, %v1739, %v1995
    %v2124 = vsel %vm1868, %v1740, %v1996
    %v2125 = vsel %vm1869, %v1741, %v1997
    %v2126 = vsel %vm1870, %v1742, %v1998
    %v2127 = vsel %vm1871, %v1743, %v1999
    %v2128 = vsel %vm1872, %v1744, %v2000
    %v2129 = vsel %vm1873, %v1745, %v2001
    %v2130 = vsel %vm1874, %v1746, %v2002
    %v2131 = vsel %vm1875, %v1747, %v2003
    %v2132 = vsel %vm1876, %v1748, %v2004
    %v2133 = vsel %vm1877, %v1749, %v2005
    %v2134 = vsel %vm1878, %v1750, %v2006
    %v2135 = vsel %vm1879, %v1751, %v2007
    %v2136 = vsel %vm1880, %v1752, %v2008
    %v2137 = vsel %vm1881, %v1753, %v2009
    %v2138 = vsel %vm1882, %v1754, %v2010
    %v2139 = vsel %vm1883, %v1755, %v2011
    %v2140 = vsel %vm1884, %v1756, %v2012
    %v2141 = vsel %vm1885, %v1757, %v2013
    %v2142 = vsel %vm1886, %v1758, %v2014
    %v2143 = vsel %vm1887, %v1759, %v2015
    %v2144 = vsel %vm1888, %v1760, %v2016
    %v2145 = vsel %vm1889, %v1761, %v2017
    %v2146 = vsel %vm1890, %v1762, %v2018
    %v2147 = vsel %vm1891, %v1763, %v2019
    %v2148 = vsel %vm1892, %v1764, %v2020
    %v2149 = vsel %vm1893, %v1765, %v2021
    %v2150 = vsel %vm1894, %v1766, %v2022
    %v2151 = vsel %vm1895, %v1767, %v2023
    %v2152 = vsel %vm1896, %v1768, %v2024
    %v2153 = vsel %vm1897, %v1769, %v2025
    %v2154 = vsel %vm1898, %v1770, %v2026
    %v2155 = vsel %vm1899, %v1771, %v2027
    %v2156 = vsel %vm1900, %v1772, %v2028
    %v2157 = vsel %vm1901, %v1773, %v2029
    %v2158 = vsel %vm1902, %v1774, %v2030
    %v2159 = vsel %vm1903, %v1775, %v2031
    %v2160 = vsel %vm1904, %v1776, %v2032
    %v2161 = vsel %vm1905, %v1777, %v2033
    %v2162 = vsel %vm1906, %v1778, %v2034
    %v2163 = vsel %vm1907, %v1779, %v2035
    %v2164 = vsel %vm1908, %v1780, %v2036
    %v2165 = vsel %vm1909, %v1781, %v2037
    %v2166 = vld [vmem:[#allocation6] sm:$0xf]
    %v2167 = vld [vmem:[#allocation6 + $0x4] sm:$0xf]
    %v2168 = vld [vmem:[#allocation6 + $0x8] sm:$0xf]
    %v2169 = vld [vmem:[#allocation6 + $0xc] sm:$0xf]
    %v2170 = vld [vmem:[#allocation6 + $0x10] sm:$0xf]
    %v2171 = vld [vmem:[#allocation6 + $0x14] sm:$0xf]
    %v2172 = vld [vmem:[#allocation6 + $0x18] sm:$0xf]
    %v2173 = vld [vmem:[#allocation6 + $0x1c] sm:$0xf]
    %v2174 = vld [vmem:[#allocation6 + $0x20] sm:$0xf]
    %v2175 = vld [vmem:[#allocation6 + $0x24] sm:$0xf]
    %v2176 = vld [vmem:[#allocation6 + $0x28] sm:$0xf]
    %v2177 = vld [vmem:[#allocation6 + $0x2c] sm:$0xf]
    %v2178 = vld [vmem:[#allocation6 + $0x30] sm:$0xf]
    %v2179 = vld [vmem:[#allocation6 + $0x34] sm:$0xf]
    %v2180 = vld [vmem:[#allocation6 + $0x38] sm:$0xf]
    %v2181 = vld [vmem:[#allocation6 + $0x3c] sm:$0xf]
    %v2182 = vld [vmem:[#allocation6 + $0x40] sm:$0xf]
    %v2183 = vld [vmem:[#allocation6 + $0x44] sm:$0xf]
    %v2184 = vld [vmem:[#allocation6 + $0x48] sm:$0xf]
    %v2185 = vld [vmem:[#allocation6 + $0x4c] sm:$0xf]
    %v2186 = vld [vmem:[#allocation6 + $0x50] sm:$0xf]
    %v2187 = vld [vmem:[#allocation6 + $0x54] sm:$0xf]
    %v2188 = vld [vmem:[#allocation6 + $0x58] sm:$0xf]
    %v2189 = vld [vmem:[#allocation6 + $0x5c] sm:$0xf]
    %v2190 = vld [vmem:[#allocation6 + $0x60] sm:$0xf]
    %v2191 = vld [vmem:[#allocation6 + $0x64] sm:$0xf]
    %v2192 = vld [vmem:[#allocation6 + $0x68] sm:$0xf]
    %v2193 = vld [vmem:[#allocation6 + $0x6c] sm:$0xf]
    %v2194 = vld [vmem:[#allocation6 + $0x70] sm:$0xf]
    %v2195 = vld [vmem:[#allocation6 + $0x74] sm:$0xf]
    %v2196 = vld [vmem:[#allocation6 + $0x78] sm:$0xf]
    %v2197 = vld [vmem:[#allocation6 + $0x7c] sm:$0xf]
    %v2198 = vld [vmem:[#allocation6 + $0x80] sm:$0xf]
    %v2199 = vld [vmem:[#allocation6 + $0x84] sm:$0xf]
    %v2200 = vld [vmem:[#allocation6 + $0x88] sm:$0xf]
    %v2201 = vld [vmem:[#allocation6 + $0x8c] sm:$0xf]
    %v2202 = vld [vmem:[#allocation6 + $0x90] sm:$0xf]
    %v2203 = vld [vmem:[#allocation6 + $0x94] sm:$0xf]
    %v2204 = vld [vmem:[#allocation6 + $0x98] sm:$0xf]
    %v2205 = vld [vmem:[#allocation6 + $0x9c] sm:$0xf]
    %v2206 = vld [vmem:[#allocation6 + $0xa0] sm:$0xf]
    %v2207 = vld [vmem:[#allocation6 + $0xa4] sm:$0xf]
    %v2208 = vld [vmem:[#allocation6 + $0xa8] sm:$0xf]
    %v2209 = vld [vmem:[#allocation6 + $0xac] sm:$0xf]
    %v2210 = vld [vmem:[#allocation6 + $0xb0] sm:$0xf]
    %v2211 = vld [vmem:[#allocation6 + $0xb4] sm:$0xf]
    %v2212 = vld [vmem:[#allocation6 + $0xb8] sm:$0xf]
    %v2213 = vld [vmem:[#allocation6 + $0xbc] sm:$0xf]
    %v2214 = vld [vmem:[#allocation6 + $0xc0] sm:$0xf]
    %v2215 = vld [vmem:[#allocation6 + $0xc4] sm:$0xf]
    %v2216 = vld [vmem:[#allocation6 + $0xc8] sm:$0xf]
    %v2217 = vld [vmem:[#allocation6 + $0xcc] sm:$0xf]
    %v2218 = vld [vmem:[#allocation6 + $0xd0] sm:$0xf]
    %v2219 = vld [vmem:[#allocation6 + $0xd4] sm:$0xf]
    %v2220 = vld [vmem:[#allocation6 + $0xd8] sm:$0xf]
    %v2221 = vld [vmem:[#allocation6 + $0xdc] sm:$0xf]
    %v2222 = vld [vmem:[#allocation6 + $0xe0] sm:$0xf]
    %v2223 = vld [vmem:[#allocation6 + $0xe4] sm:$0xf]
    %v2224 = vld [vmem:[#allocation6 + $0xe8] sm:$0xf]
    %v2225 = vld [vmem:[#allocation6 + $0xec] sm:$0xf]
    %v2226 = vld [vmem:[#allocation6 + $0xf0] sm:$0xf]
    %v2227 = vld [vmem:[#allocation6 + $0xf4] sm:$0xf]
    %v2228 = vld [vmem:[#allocation6 + $0xf8] sm:$0xf]
    %v2229 = vld [vmem:[#allocation6 + $0xfc] sm:$0xf]
    %v2230 = vld [vmem:[#allocation6 + $0x100] sm:$0xf]
    %v2231 = vld [vmem:[#allocation6 + $0x104] sm:$0xf]
    %v2232 = vld [vmem:[#allocation6 + $0x108] sm:$0xf]
    %v2233 = vld [vmem:[#allocation6 + $0x10c] sm:$0xf]
    %v2234 = vld [vmem:[#allocation6 + $0x110] sm:$0xf]
    %v2235 = vld [vmem:[#allocation6 + $0x114] sm:$0xf]
    %v2236 = vld [vmem:[#allocation6 + $0x118] sm:$0xf]
    %v2237 = vld [vmem:[#allocation6 + $0x11c] sm:$0xf]
    %v2238 = vld [vmem:[#allocation6 + $0x120] sm:$0xf]
    %v2239 = vld [vmem:[#allocation6 + $0x124] sm:$0xf]
    %v2240 = vld [vmem:[#allocation6 + $0x128] sm:$0xf]
    %v2241 = vld [vmem:[#allocation6 + $0x12c] sm:$0xf]
    %v2242 = vld [vmem:[#allocation6 + $0x130] sm:$0xf]
    %v2243 = vld [vmem:[#allocation6 + $0x134] sm:$0xf]
    %v2244 = vld [vmem:[#allocation6 + $0x138] sm:$0xf]
    %v2245 = vld [vmem:[#allocation6 + $0x13c] sm:$0xf]
    %v2246 = vld [vmem:[#allocation6 + $0x140] sm:$0xf]
    %v2247 = vld [vmem:[#allocation6 + $0x144] sm:$0xf]
    %v2248 = vld [vmem:[#allocation6 + $0x148] sm:$0xf]
    %v2249 = vld [vmem:[#allocation6 + $0x14c] sm:$0xf]
    %v2250 = vld [vmem:[#allocation6 + $0x150] sm:$0xf]
    %v2251 = vld [vmem:[#allocation6 + $0x154] sm:$0xf]
    %v2252 = vld [vmem:[#allocation6 + $0x158] sm:$0xf]
    %v2253 = vld [vmem:[#allocation6 + $0x15c] sm:$0xf]
    %v2254 = vld [vmem:[#allocation6 + $0x160] sm:$0xf]
    %v2255 = vld [vmem:[#allocation6 + $0x164] sm:$0xf]
    %v2256 = vld [vmem:[#allocation6 + $0x168] sm:$0xf]
    %v2257 = vld [vmem:[#allocation6 + $0x16c] sm:$0xf]
    %v2258 = vld [vmem:[#allocation6 + $0x170] sm:$0xf]
    %v2259 = vld [vmem:[#allocation6 + $0x174] sm:$0xf]
    %v2260 = vld [vmem:[#allocation6 + $0x178] sm:$0xf]
    %v2261 = vld [vmem:[#allocation6 + $0x17c] sm:$0xf]
    %v2262 = vld [vmem:[#allocation6 + $0x180] sm:$0xf]
    %v2263 = vld [vmem:[#allocation6 + $0x184] sm:$0xf]
    %v2264 = vld [vmem:[#allocation6 + $0x188] sm:$0xf]
    %v2265 = vld [vmem:[#allocation6 + $0x18c] sm:$0xf]
    %v2266 = vld [vmem:[#allocation6 + $0x190] sm:$0xf]
    %v2267 = vld [vmem:[#allocation6 + $0x194] sm:$0xf]
    %v2268 = vld [vmem:[#allocation6 + $0x198] sm:$0xf]
    %v2269 = vld [vmem:[#allocation6 + $0x19c] sm:$0xf]
    %v2270 = vld [vmem:[#allocation6 + $0x1a0] sm:$0xf]
    %v2271 = vld [vmem:[#allocation6 + $0x1a4] sm:$0xf]
    %v2272 = vld [vmem:[#allocation6 + $0x1a8] sm:$0xf]
    %v2273 = vld [vmem:[#allocation6 + $0x1ac] sm:$0xf]
    %v2274 = vld [vmem:[#allocation6 + $0x1b0] sm:$0xf]
    %v2275 = vld [vmem:[#allocation6 + $0x1b4] sm:$0xf]
    %v2276 = vld [vmem:[#allocation6 + $0x1b8] sm:$0xf]
    %v2277 = vld [vmem:[#allocation6 + $0x1bc] sm:$0xf]
    %v2278 = vld [vmem:[#allocation6 + $0x1c0] sm:$0xf]
    %v2279 = vld [vmem:[#allocation6 + $0x1c4] sm:$0xf]
    %v2280 = vld [vmem:[#allocation6 + $0x1c8] sm:$0xf]
    %v2281 = vld [vmem:[#allocation6 + $0x1cc] sm:$0xf]
    %v2282 = vld [vmem:[#allocation6 + $0x1d0] sm:$0xf]
    %v2283 = vld [vmem:[#allocation6 + $0x1d4] sm:$0xf]
    %v2284 = vld [vmem:[#allocation6 + $0x1d8] sm:$0xf]
    %v2285 = vld [vmem:[#allocation6 + $0x1dc] sm:$0xf]
    %v2286 = vld [vmem:[#allocation6 + $0x1e0] sm:$0xf]
    %v2287 = vld [vmem:[#allocation6 + $0x1e4] sm:$0xf]
    %v2288 = vld [vmem:[#allocation6 + $0x1e8] sm:$0xf]
    %v2289 = vld [vmem:[#allocation6 + $0x1ec] sm:$0xf]
    %v2290 = vld [vmem:[#allocation6 + $0x1f0] sm:$0xf]
    %v2291 = vld [vmem:[#allocation6 + $0x1f4] sm:$0xf]
    %v2292 = vld [vmem:[#allocation6 + $0x1f8] sm:$0xf]
    %v2293 = vld [vmem:[#allocation6 + $0x1fc] sm:$0xf]
    %v2294 = vld [vmem:[%s6] sm:$0x1]
    %v2296 = vlaneseq
    %v2297 = vshrl.u32 %v2296, 7
    %v2298 = vsub.s32 0, %v2297
    %v2299 = vrot.slane %v2294, %v2298
    %v2429 = vunpack.c.l.b16 %v2166
    %v2430 = vunpack.c.l.b16 %v2167
    %v2431 = vunpack.c.l.b16 %v2168
    %v2432 = vunpack.c.l.b16 %v2169
    %v2433 = vunpack.c.l.b16 %v2170
    %v2434 = vunpack.c.l.b16 %v2171
    %v2435 = vunpack.c.l.b16 %v2172
    %v2436 = vunpack.c.l.b16 %v2173
    %v2437 = vunpack.c.l.b16 %v2174
    %v2438 = vunpack.c.l.b16 %v2175
    %v2439 = vunpack.c.l.b16 %v2176
    %v2440 = vunpack.c.l.b16 %v2177
    %v2441 = vunpack.c.l.b16 %v2178
    %v2442 = vunpack.c.l.b16 %v2179
    %v2443 = vunpack.c.l.b16 %v2180
    %v2444 = vunpack.c.l.b16 %v2181
    %v2445 = vunpack.c.l.b16 %v2182
    %v2446 = vunpack.c.l.b16 %v2183
    %v2447 = vunpack.c.l.b16 %v2184
    %v2448 = vunpack.c.l.b16 %v2185
    %v2449 = vunpack.c.l.b16 %v2186
    %v2450 = vunpack.c.l.b16 %v2187
    %v2451 = vunpack.c.l.b16 %v2188
    %v2452 = vunpack.c.l.b16 %v2189
    %v2453 = vunpack.c.l.b16 %v2190
    %v2454 = vunpack.c.l.b16 %v2191
    %v2455 = vunpack.c.l.b16 %v2192
    %v2456 = vunpack.c.l.b16 %v2193
    %v2457 = vunpack.c.l.b16 %v2194
    %v2458 = vunpack.c.l.b16 %v2195
    %v2459 = vunpack.c.l.b16 %v2196
    %v2460 = vunpack.c.l.b16 %v2197
    %v2461 = vunpack.c.l.b16 %v2198
    %v2462 = vunpack.c.l.b16 %v2199
    %v2463 = vunpack.c.l.b16 %v2200
    %v2464 = vunpack.c.l.b16 %v2201
    %v2465 = vunpack.c.l.b16 %v2202
    %v2466 = vunpack.c.l.b16 %v2203
    %v2467 = vunpack.c.l.b16 %v2204
    %v2468 = vunpack.c.l.b16 %v2205
    %v2469 = vunpack.c.l.b16 %v2206
    %v2470 = vunpack.c.l.b16 %v2207
    %v2471 = vunpack.c.l.b16 %v2208
    %v2472 = vunpack.c.l.b16 %v2209
    %v2473 = vunpack.c.l.b16 %v2210
    %v2474 = vunpack.c.l.b16 %v2211
    %v2475 = vunpack.c.l.b16 %v2212
    %v2476 = vunpack.c.l.b16 %v2213
    %v2477 = vunpack.c.l.b16 %v2214
    %v2478 = vunpack.c.l.b16 %v2215
    %v2479 = vunpack.c.l.b16 %v2216
    %v2480 = vunpack.c.l.b16 %v2217
    %v2481 = vunpack.c.l.b16 %v2218
    %v2482 = vunpack.c.l.b16 %v2219
    %v2483 = vunpack.c.l.b16 %v2220
    %v2484 = vunpack.c.l.b16 %v2221
    %v2485 = vunpack.c.l.b16 %v2222
    %v2486 = vunpack.c.l.b16 %v2223
    %v2487 = vunpack.c.l.b16 %v2224
    %v2488 = vunpack.c.l.b16 %v2225
    %v2489 = vunpack.c.l.b16 %v2226
    %v2490 = vunpack.c.l.b16 %v2227
    %v2491 = vunpack.c.l.b16 %v2228
    %v2492 = vunpack.c.l.b16 %v2229
    %v2493 = vunpack.c.l.b16 %v2230
    %v2494 = vunpack.c.l.b16 %v2231
    %v2495 = vunpack.c.l.b16 %v2232
    %v2496 = vunpack.c.l.b16 %v2233
    %v2497 = vunpack.c.l.b16 %v2234
    %v2498 = vunpack.c.l.b16 %v2235
    %v2499 = vunpack.c.l.b16 %v2236
    %v2500 = vunpack.c.l.b16 %v2237
    %v2501 = vunpack.c.l.b16 %v2238
    %v2502 = vunpack.c.l.b16 %v2239
    %v2503 = vunpack.c.l.b16 %v2240
    %v2504 = vunpack.c.l.b16 %v2241
    %v2505 = vunpack.c.l.b16 %v2242
    %v2506 = vunpack.c.l.b16 %v2243
    %v2507 = vunpack.c.l.b16 %v2244
    %v2508 = vunpack.c.l.b16 %v2245
    %v2509 = vunpack.c.l.b16 %v2246
    %v2510 = vunpack.c.l.b16 %v2247
    %v2511 = vunpack.c.l.b16 %v2248
    %v2512 = vunpack.c.l.b16 %v2249
    %v2513 = vunpack.c.l.b16 %v2250
    %v2514 = vunpack.c.l.b16 %v2251
    %v2515 = vunpack.c.l.b16 %v2252
    %v2516 = vunpack.c.l.b16 %v2253
    %v2517 = vunpack.c.l.b16 %v2254
    %v2518 = vunpack.c.l.b16 %v2255
    %v2519 = vunpack.c.l.b16 %v2256
    %v2520 = vunpack.c.l.b16 %v2257
    %v2521 = vunpack.c.l.b16 %v2258
    %v2522 = vunpack.c.l.b16 %v2259
    %v2523 = vunpack.c.l.b16 %v2260
    %v2524 = vunpack.c.l.b16 %v2261
    %v2525 = vunpack.c.l.b16 %v2262
    %v2526 = vunpack.c.l.b16 %v2263
    %v2527 = vunpack.c.l.b16 %v2264
    %v2528 = vunpack.c.l.b16 %v2265
    %v2529 = vunpack.c.l.b16 %v2266
    %v2530 = vunpack.c.l.b16 %v2267
    %v2531 = vunpack.c.l.b16 %v2268
    %v2532 = vunpack.c.l.b16 %v2269
    %v2533 = vunpack.c.l.b16 %v2270
    %v2534 = vunpack.c.l.b16 %v2271
    %v2535 = vunpack.c.l.b16 %v2272
    %v2536 = vunpack.c.l.b16 %v2273
    %v2537 = vunpack.c.l.b16 %v2274
    %v2538 = vunpack.c.l.b16 %v2275
    %v2539 = vunpack.c.l.b16 %v2276
    %v2540 = vunpack.c.l.b16 %v2277
    %v2541 = vunpack.c.l.b16 %v2278
    %v2542 = vunpack.c.l.b16 %v2279
    %v2543 = vunpack.c.l.b16 %v2280
    %v2544 = vunpack.c.l.b16 %v2281
    %v2545 = vunpack.c.l.b16 %v2282
    %v2546 = vunpack.c.l.b16 %v2283
    %v2547 = vunpack.c.l.b16 %v2284
    %v2548 = vunpack.c.l.b16 %v2285
    %v2549 = vunpack.c.l.b16 %v2286
    %v2550 = vunpack.c.l.b16 %v2287
    %v2551 = vunpack.c.l.b16 %v2288
    %v2552 = vunpack.c.l.b16 %v2289
    %v2553 = vunpack.c.l.b16 %v2290
    %v2554 = vunpack.c.l.b16 %v2291
    %v2555 = vunpack.c.l.b16 %v2292
    %v2556 = vunpack.c.l.b16 %v2293
    %v2557 = vpack.c.b16 %v2430, %v2429
    %v2558 = vpack.c.b16 %v2432, %v2431
    %v2559 = vpack.c.b16 %v2434, %v2433
    %v2560 = vpack.c.b16 %v2436, %v2435
    %v2561 = vpack.c.b16 %v2438, %v2437
    %v2562 = vpack.c.b16 %v2440, %v2439
    %v2563 = vpack.c.b16 %v2442, %v2441
    %v2564 = vpack.c.b16 %v2444, %v2443
    %v2565 = vpack.c.b16 %v2446, %v2445
    %v2566 = vpack.c.b16 %v2448, %v2447
    %v2567 = vpack.c.b16 %v2450, %v2449
    %v2568 = vpack.c.b16 %v2452, %v2451
    %v2569 = vpack.c.b16 %v2454, %v2453
    %v2570 = vpack.c.b16 %v2456, %v2455
    %v2571 = vpack.c.b16 %v2458, %v2457
    %v2572 = vpack.c.b16 %v2460, %v2459
    %v2573 = vpack.c.b16 %v2462, %v2461
    %v2574 = vpack.c.b16 %v2464, %v2463
    %v2575 = vpack.c.b16 %v2466, %v2465
    %v2576 = vpack.c.b16 %v2468, %v2467
    %v2577 = vpack.c.b16 %v2470, %v2469
    %v2578 = vpack.c.b16 %v2472, %v2471
    %v2579 = vpack.c.b16 %v2474, %v2473
    %v2580 = vpack.c.b16 %v2476, %v2475
    %v2581 = vpack.c.b16 %v2478, %v2477
    %v2582 = vpack.c.b16 %v2480, %v2479
    %v2583 = vpack.c.b16 %v2482, %v2481
    %v2584 = vpack.c.b16 %v2484, %v2483
    %v2585 = vpack.c.b16 %v2486, %v2485
    %v2586 = vpack.c.b16 %v2488, %v2487
    %v2587 = vpack.c.b16 %v2490, %v2489
    %v2588 = vpack.c.b16 %v2492, %v2491
    %v2589 = vpack.c.b16 %v2494, %v2493
    %v2590 = vpack.c.b16 %v2496, %v2495
    %v2591 = vpack.c.b16 %v2498, %v2497
    %v2592 = vpack.c.b16 %v2500, %v2499
    %v2593 = vpack.c.b16 %v2502, %v2501
    %v2594 = vpack.c.b16 %v2504, %v2503
    %v2595 = vpack.c.b16 %v2506, %v2505
    %v2596 = vpack.c.b16 %v2508, %v2507
    %v2597 = vpack.c.b16 %v2510, %v2509
    %v2598 = vpack.c.b16 %v2512, %v2511
    %v2599 = vpack.c.b16 %v2514, %v2513
    %v2600 = vpack.c.b16 %v2516, %v2515
    %v2601 = vpack.c.b16 %v2518, %v2517
    %v2602 = vpack.c.b16 %v2520, %v2519
    %v2603 = vpack.c.b16 %v2522, %v2521
    %v2604 = vpack.c.b16 %v2524, %v2523
    %v2605 = vpack.c.b16 %v2526, %v2525
    %v2606 = vpack.c.b16 %v2528, %v2527
    %v2607 = vpack.c.b16 %v2530, %v2529
    %v2608 = vpack.c.b16 %v2532, %v2531
    %v2609 = vpack.c.b16 %v2534, %v2533
    %v2610 = vpack.c.b16 %v2536, %v2535
    %v2611 = vpack.c.b16 %v2538, %v2537
    %v2612 = vpack.c.b16 %v2540, %v2539
    %v2613 = vpack.c.b16 %v2542, %v2541
    %v2614 = vpack.c.b16 %v2544, %v2543
    %v2615 = vpack.c.b16 %v2546, %v2545
    %v2616 = vpack.c.b16 %v2548, %v2547
    %v2617 = vpack.c.b16 %v2550, %v2549
    %v2618 = vpack.c.b16 %v2552, %v2551
    %v2619 = vpack.c.b16 %v2554, %v2553
    %v2620 = vpack.c.b16 %v2556, %v2555
    %2685 = vmatprep.subr.bf16.mxu0 0
    %2686 = vmatpush1.bf16.msra.mxu0 %v2557
    %2687 = vmatprep.subr.bf16.mxu0 0
    %2688 = vmatpush1.bf16.msra.mxu0 %v2558
    %2689 = vmatprep.subr.bf16.mxu0 0
    %2690 = vmatpush1.bf16.msra.mxu0 %v2559
    %2691 = vmatprep.subr.bf16.mxu0 0
    %2692 = vmatpush1.bf16.msra.mxu0 %v2560
    %2693 = vmatprep.subr.bf16.mxu0 0
    %2694 = vmatpush1.bf16.msra.mxu0 %v2561
    %2695 = vmatprep.subr.bf16.mxu0 0
    %2696 = vmatpush1.bf16.msra.mxu0 %v2562
    %2697 = vmatprep.subr.bf16.mxu0 0
    %2698 = vmatpush1.bf16.msra.mxu0 %v2563
    %2699 = vmatprep.subr.bf16.mxu0 0
    %2700 = vmatpush1.bf16.msra.mxu0 %v2564
    %2701 = vmatprep.subr.bf16.mxu0 0
    %2702 = vmatpush1.bf16.msra.mxu0 %v2565
    %2703 = vmatprep.subr.bf16.mxu0 0
    %2704 = vmatpush1.bf16.msra.mxu0 %v2566
    %2705 = vmatprep.subr.bf16.mxu0 0
    %2706 = vmatpush1.bf16.msra.mxu0 %v2567
    %2707 = vmatprep.subr.bf16.mxu0 0
    %2708 = vmatpush1.bf16.msra.mxu0 %v2568
    %2709 = vmatprep.subr.bf16.mxu0 0
    %2710 = vmatpush1.bf16.msra.mxu0 %v2569
    %2711 = vmatprep.subr.bf16.mxu0 0
    %2712 = vmatpush1.bf16.msra.mxu0 %v2570
    %2713 = vmatprep.subr.bf16.mxu0 0
    %2714 = vmatpush1.bf16.msra.mxu0 %v2571
    %2715 = vmatprep.subr.bf16.mxu0 0
    %2716 = vmatpush1.bf16.msra.mxu0 %v2572
    %2717 = vmatprep.mubr.bf16.mxu0 %v2039
    %2718 = vmatmul.mubr.bf16.gmra.mrb[0].mxu0 %v2038
    %v2719 = vpop.f32.mrb[0].mxu0
    %v2720 = vadd.f32 %v2299, %v2719
    %v2721 = vpop.f32.mrb[0].mxu0
    %v2722 = vpop.f32.mrb[0].mxu0
    %v2723 = vadd.f32 %v2299, %v2722
    %v2724 = vpop.f32.mrb[0].mxu0
    %2725 = vmatprep.mubr.bf16.mxu0 %v2047
    %2726 = vmatmul.mubr.bf16.gmra.mrb[0].mxu0 %v2046
    %v2727 = vpop.f32.mrb[0].mxu0
    %v2728 = vadd.f32 %v2299, %v2727
    %v2729 = vpop.f32.mrb[0].mxu0
    %v2730 = vpop.f32.mrb[0].mxu0
    %v2731 = vadd.f32 %v2299, %v2730
    %v2732 = vpop.f32.mrb[0].mxu0
    %2733 = vmatprep.mubr.bf16.mxu0 %v2055
    %2734 = vmatmul.mubr.bf16.gmra.mrb[0].mxu0 %v2054
    %v2735 = vpop.f32.mrb[0].mxu0
    %v2736 = vadd.f32 %v2299, %v2735
    %v2737 = vpop.f32.mrb[0].mxu0
    %v2738 = vpop.f32.mrb[0].mxu0
    %v2739 = vadd.f32 %v2299, %v2738
    %v2740 = vpop.f32.mrb[0].mxu0
    %2741 = vmatprep.mubr.bf16.mxu0 %v2063
    %2742 = vmatmul.mubr.bf16.gmra.mrb[0].mxu0 %v2062
    %v2743 = vpop.f32.mrb[0].mxu0
    %v2744 = vadd.f32 %v2299, %v2743
    %v2745 = vpop.f32.mrb[0].mxu0
    %v2746 = vpop.f32.mrb[0].mxu0
    %v2747 = vadd.f32 %v2299, %v2746
    %v2748 = vpop.f32.mrb[0].mxu0
    %2749 = vmatprep.mubr.bf16.mxu0 %v2071
    %2750 = vmatmul.mubr.bf16.gmra.mrb[0].mxu0 %v2070
    %v2751 = vpop.f32.mrb[0].mxu0
    %v2752 = vadd.f32 %v2299, %v2751
    %v2753 = vpop.f32.mrb[0].mxu0
    %v2754 = vpop.f32.mrb[0].mxu0
    %v2755 = vadd.f32 %v2299, %v2754
    %v2756 = vpop.f32.mrb[0].mxu0
    %2757 = vmatprep.mubr.bf16.mxu0 %v2079
    %2758 = vmatmul.mubr.bf16.gmra.mrb[0].mxu0 %v2078
    %v2759 = vpop.f32.mrb[0].mxu0
    %v2760 = vadd.f32 %v2299, %v2759
    %v2761 = vpop.f32.mrb[0].mxu0
    %v2762 = vpop.f32.mrb[0].mxu0
    %v2763 = vadd.f32 %v2299, %v2762
    %v2764 = vpop.f32.mrb[0].mxu0
    %2765 = vmatprep.mubr.bf16.mxu0 %v2087
    %2766 = vmatmul.mubr.bf16.gmra.mrb[0].mxu0 %v2086
    %v2767 = vpop.f32.mrb[0].mxu0
    %v2768 = vadd.f32 %v2299, %v2767
    %v2769 = vpop.f32.mrb[0].mxu0
    %v2770 = vpop.f32.mrb[0].mxu0
    %v2771 = vadd.f32 %v2299, %v2770
    %v2772 = vpop.f32.mrb[0].mxu0
    %2773 = vmatprep.mubr.bf16.mxu0 %v2095
    %2774 = vmatmul.mubr.bf16.gmra.mrb[0].mxu0 %v2094
    %v2775 = vpop.f32.mrb[0].mxu0
    %v2776 = vadd.f32 %v2299, %v2775
    %v2777 = vpop.f32.mrb[0].mxu0
    %v2778 = vpop.f32.mrb[0].mxu0
    %v2779 = vadd.f32 %v2299, %v2778
    %v2780 = vpop.f32.mrb[0].mxu0
    %2781 = vmatprep.mubr.bf16.mxu0 %v2103
    %2782 = vmatmul.mubr.bf16.gmra.mrb[0].mxu0 %v2102
    %v2783 = vpop.f32.mrb[0].mxu0
    %v2784 = vadd.f32 %v2299, %v2783
    %v2785 = vpop.f32.mrb[0].mxu0
    %v2786 = vpop.f32.mrb[0].mxu0
    %v2787 = vadd.f32 %v2299, %v2786
    %v2788 = vpop.f32.mrb[0].mxu0
    %2789 = vmatprep.mubr.bf16.mxu0 %v2111
    %2790 = vmatmul.mubr.bf16.gmra.mrb[0].mxu0 %v2110
    %v2791 = vpop.f32.mrb[0].mxu0
    %v2792 = vadd.f32 %v2299, %v2791
    %v2793 = vpop.f32.mrb[0].mxu0
    %v2794 = vpop.f32.mrb[0].mxu0
    %v2795 = vadd.f32 %v2299, %v2794
    %v2796 = vpop.f32.mrb[0].mxu0
    %2797 = vmatprep.mubr.bf16.mxu0 %v2119
    %2798 = vmatmul.mubr.bf16.gmra.mrb[0].mxu0 %v2118
    %v2799 = vpop.f32.mrb[0].mxu0
    %v2800 = vadd.f32 %v2299, %v2799
    %v2801 = vpop.f32.mrb[0].mxu0
    %v2802 = vpop.f32.mrb[0].mxu0
    %v2803 = vadd.f32 %v2299, %v2802
    %v2804 = vpop.f32.mrb[0].mxu0
    %2805 = vmatprep.mubr.bf16.mxu0 %v2127
    %2806 = vmatmul.mubr.bf16.gmra.mrb[0].mxu0 %v2126
    %v2807 = vpop.f32.mrb[0].mxu0
    %v2808 = vadd.f32 %v2299, %v2807
    %v2809 = vpop.f32.mrb[0].mxu0
    %v2810 = vpop.f32.mrb[0].mxu0
    %v2811 = vadd.f32 %v2299, %v2810
    %v2812 = vpop.f32.mrb[0].mxu0
    %2813 = vmatprep.mubr.bf16.mxu0 %v2135
    %2814 = vmatmul.mubr.bf16.gmra.mrb[0].mxu0 %v2134
    %v2815 = vpop.f32.mrb[0].mxu0
    %v2816 = vadd.f32 %v2299, %v2815
    %v2817 = vpop.f32.mrb[0].mxu0
    %v2818 = vpop.f32.mrb[0].mxu0
    %v2819 = vadd.f32 %v2299, %v2818
    %v2820 = vpop.f32.mrb[0].mxu0
    %2821 = vmatprep.mubr.bf16.mxu0 %v2143
    %2822 = vmatmul.mubr.bf16.gmra.mrb[0].mxu0 %v2142
    %v2823 = vpop.f32.mrb[0].mxu0
    %v2824 = vadd.f32 %v2299, %v2823
    %v2825 = vpop.f32.mrb[0].mxu0
    %v2826 = vpop.f32.mrb[0].mxu0
    %v2827 = vadd.f32 %v2299, %v2826
    %v2828 = vpop.f32.mrb[0].mxu0
    %2829 = vmatprep.mubr.bf16.mxu0 %v2151
    %2830 = vmatmul.mubr.bf16.gmra.mrb[0].mxu0 %v2150
    %v2831 = vpop.f32.mrb[0].mxu0
    %v2832 = vadd.f32 %v2299, %v2831
    %v2833 = vpop.f32.mrb[0].mxu0
    %v2834 = vpop.f32.mrb[0].mxu0
    %v2835 = vadd.f32 %v2299, %v2834
    %v2836 = vpop.f32.mrb[0].mxu0
    %2837 = vmatprep.mubr.bf16.mxu0 %v2159
    %2838 = vmatmul.mubr.bf16.gmra.mrb[0].mxu0 %v2158
    %v2839 = vpop.f32.mrb[0].mxu0
    %v2840 = vadd.f32 %v2299, %v2839
    %v2841 = vpop.f32.mrb[0].mxu0
    %v2842 = vpop.f32.mrb[0].mxu0
    %v2843 = vadd.f32 %v2299, %v2842
    %v2844 = vpop.f32.mrb[0].mxu0
    %2845 = vdwg.mxu0
    %2846 = vmatprep.subr.bf16.mxu0 0
    %2847 = vmatpush1.bf16.msra.mxu0 %v2573
    %2848 = vmatprep.subr.bf16.mxu0 0
    %2849 = vmatpush1.bf16.msra.mxu0 %v2574
    %2850 = vmatprep.subr.bf16.mxu0 0
    %2851 = vmatpush1.bf16.msra.mxu0 %v2575
    %2852 = vmatprep.subr.bf16.mxu0 0
    %2853 = vmatpush1.bf16.msra.mxu0 %v2576
    %2854 = vmatprep.subr.bf16.mxu0 0
    %2855 = vmatpush1.bf16.msra.mxu0 %v2577
    %2856 = vmatprep.subr.bf16.mxu0 0
    %2857 = vmatpush1.bf16.msra.mxu0 %v2578
    %2858 = vmatprep.subr.bf16.mxu0 0
    %2859 = vmatpush1.bf16.msra.mxu0 %v2579
    %2860 = vmatprep.subr.bf16.mxu0 0
    %2861 = vmatpush1.bf16.msra.mxu0 %v2580
    %2862 = vmatprep.subr.bf16.mxu0 0
    %2863 = vmatpush1.bf16.msra.mxu0 %v2581
    %2864 = vmatprep.subr.bf16.mxu0 0
    %2865 = vmatpush1.bf16.msra.mxu0 %v2582
    %2866 = vmatprep.subr.bf16.mxu0 0
    %2867 = vmatpush1.bf16.msra.mxu0 %v2583
    %2868 = vmatprep.subr.bf16.mxu0 0
    %2869 = vmatpush1.bf16.msra.mxu0 %v2584
    %2870 = vmatprep.subr.bf16.mxu0 0
    %2871 = vmatpush1.bf16.msra.mxu0 %v2585
    %2872 = vmatprep.subr.bf16.mxu0 0
    %2873 = vmatpush1.bf16.msra.mxu0 %v2586
    %2874 = vmatprep.subr.bf16.mxu0 0
    %2875 = vmatpush1.bf16.msra.mxu0 %v2587
    %2876 = vmatprep.subr.bf16.mxu0 0
    %2877 = vmatpush1.bf16.msra.mxu0 %v2588
    %2878 = vmatprep.mubr.bf16.mxu0 %v2041
    %2879 = vmatmul.mubr.bf16.gmra.mrb[0].mxu0 %v2040
    %v2880 = vpop.f32.mrb[0].mxu0
    %v2881 = vadd.f32 %v2720, %v2880
    %v2882 = vpop.f32.mrb[0].mxu0
    %v2883 = vpop.f32.mrb[0].mxu0
    %v2884 = vadd.f32 %v2723, %v2883
    %v2885 = vpop.f32.mrb[0].mxu0
    %2886 = vmatprep.mubr.bf16.mxu0 %v2049
    %2887 = vmatmul.mubr.bf16.gmra.mrb[0].mxu0 %v2048
    %v2888 = vpop.f32.mrb[0].mxu0
    %v2889 = vadd.f32 %v2728, %v2888
    %v2890 = vpop.f32.mrb[0].mxu0
    %v2891 = vpop.f32.mrb[0].mxu0
    %v2892 = vadd.f32 %v2731, %v2891
    %v2893 = vpop.f32.mrb[0].mxu0
    %2894 = vmatprep.mubr.bf16.mxu0 %v2057
    %2895 = vmatmul.mubr.bf16.gmra.mrb[0].mxu0 %v2056
    %v2896 = vpop.f32.mrb[0].mxu0
    %v2897 = vadd.f32 %v2736, %v2896
    %v2898 = vpop.f32.mrb[0].mxu0
    %v2899 = vpop.f32.mrb[0].mxu0
    %v2900 = vadd.f32 %v2739, %v2899
    %v2901 = vpop.f32.mrb[0].mxu0
    %2902 = vmatprep.mubr.bf16.mxu0 %v2065
    %2903 = vmatmul.mubr.bf16.gmra.mrb[0].mxu0 %v2064
    %v2904 = vpop.f32.mrb[0].mxu0
    %v2905 = vadd.f32 %v2744, %v2904
    %v2906 = vpop.f32.mrb[0].mxu0
    %v2907 = vpop.f32.mrb[0].mxu0
    %v2908 = vadd.f32 %v2747, %v2907
    %v2909 = vpop.f32.mrb[0].mxu0
    %2910 = vmatprep.mubr.bf16.mxu0 %v2073
    %2911 = vmatmul.mubr.bf16.gmra.mrb[0].mxu0 %v2072
    %v2912 = vpop.f32.mrb[0].mxu0
    %v2913 = vadd.f32 %v2752, %v2912
    %v2914 = vpop.f32.mrb[0].mxu0
    %v2915 = vpop.f32.mrb[0].mxu0
    %v2916 = vadd.f32 %v2755, %v2915
    %v2917 = vpop.f32.mrb[0].mxu0
    %2918 = vmatprep.mubr.bf16.mxu0 %v2081
    %2919 = vmatmul.mubr.bf16.gmra.mrb[0].mxu0 %v2080
    %v2920 = vpop.f32.mrb[0].mxu0
    %v2921 = vadd.f32 %v2760, %v2920
    %v2922 = vpop.f32.mrb[0].mxu0
    %v2923 = vpop.f32.mrb[0].mxu0
    %v2924 = vadd.f32 %v2763, %v2923
    %v2925 = vpop.f32.mrb[0].mxu0
    %2926 = vmatprep.mubr.bf16.mxu0 %v2089
    %2927 = vmatmul.mubr.bf16.gmra.mrb[0].mxu0 %v2088
    %v2928 = vpop.f32.mrb[0].mxu0
    %v2929 = vadd.f32 %v2768, %v2928
    %v2930 = vpop.f32.mrb[0].mxu0
    %v2931 = vpop.f32.mrb[0].mxu0
    %v2932 = vadd.f32 %v2771, %v2931
    %v2933 = vpop.f32.mrb[0].mxu0
    %2934 = vmatprep.mubr.bf16.mxu0 %v2097
    %2935 = vmatmul.mubr.bf16.gmra.mrb[0].mxu0 %v2096
    %v2936 = vpop.f32.mrb[0].mxu0
    %v2937 = vadd.f32 %v2776, %v2936
    %v2938 = vpop.f32.mrb[0].mxu0
    %v2939 = vpop.f32.mrb[0].mxu0
    %v2940 = vadd.f32 %v2779, %v2939
    %v2941 = vpop.f32.mrb[0].mxu0
    %2942 = vmatprep.mubr.bf16.mxu0 %v2105
    %2943 = vmatmul.mubr.bf16.gmra.mrb[0].mxu0 %v2104
    %v2944 = vpop.f32.mrb[0].mxu0
    %v2945 = vadd.f32 %v2784, %v2944
    %v2946 = vpop.f32.mrb[0].mxu0
    %v2947 = vpop.f32.mrb[0].mxu0
    %v2948 = vadd.f32 %v2787, %v2947
    %v2949 = vpop.f32.mrb[0].mxu0
    %2950 = vmatprep.mubr.bf16.mxu0 %v2113
    %2951 = vmatmul.mubr.bf16.gmra.mrb[0].mxu0 %v2112
    %v2952 = vpop.f32.mrb[0].mxu0
    %v2953 = vadd.f32 %v2792, %v2952
    %v2954 = vpop.f32.mrb[0].mxu0
    %v2955 = vpop.f32.mrb[0].mxu0
    %v2956 = vadd.f32 %v2795, %v2955
    %v2957 = vpop.f32.mrb[0].mxu0
    %2958 = vmatprep.mubr.bf16.mxu0 %v2121
    %2959 = vmatmul.mubr.bf16.gmra.mrb[0].mxu0 %v2120
    %v2960 = vpop.f32.mrb[0].mxu0
    %v2961 = vadd.f32 %v2800, %v2960
    %v2962 = vpop.f32.mrb[0].mxu0
    %v2963 = vpop.f32.mrb[0].mxu0
    %v2964 = vadd.f32 %v2803, %v2963
    %v2965 = vpop.f32.mrb[0].mxu0
    %2966 = vmatprep.mubr.bf16.mxu0 %v2129
    %2967 = vmatmul.mubr.bf16.gmra.mrb[0].mxu0 %v2128
    %v2968 = vpop.f32.mrb[0].mxu0
    %v2969 = vadd.f32 %v2808, %v2968
    %v2970 = vpop.f32.mrb[0].mxu0
    %v2971 = vpop.f32.mrb[0].mxu0
    %v2972 = vadd.f32 %v2811, %v2971
    %v2973 = vpop.f32.mrb[0].mxu0
    %2974 = vmatprep.mubr.bf16.mxu0 %v2137
    %2975 = vmatmul.mubr.bf16.gmra.mrb[0].mxu0 %v2136
    %v2976 = vpop.f32.mrb[0].mxu0
    %v2977 = vadd.f32 %v2816, %v2976
    %v2978 = vpop.f32.mrb[0].mxu0
    %v2979 = vpop.f32.mrb[0].mxu0
    %v2980 = vadd.f32 %v2819, %v2979
    %v2981 = vpop.f32.mrb[0].mxu0
    %2982 = vmatprep.mubr.bf16.mxu0 %v2145
    %2983 = vmatmul.mubr.bf16.gmra.mrb[0].mxu0 %v2144
    %v2984 = vpop.f32.mrb[0].mxu0
    %v2985 = vadd.f32 %v2824, %v2984
    %v2986 = vpop.f32.mrb[0].mxu0
    %v2987 = vpop.f32.mrb[0].mxu0
    %v2988 = vadd.f32 %v2827, %v2987
    %v2989 = vpop.f32.mrb[0].mxu0
    %2990 = vmatprep.mubr.bf16.mxu0 %v2153
    %2991 = vmatmul.mubr.bf16.gmra.mrb[0].mxu0 %v2152
    %v2992 = vpop.f32.mrb[0].mxu0
    %v2993 = vadd.f32 %v2832, %v2992
    %v2994 = vpop.f32.mrb[0].mxu0
    %v2995 = vpop.f32.mrb[0].mxu0
    %v2996 = vadd.f32 %v2835, %v2995
    %v2997 = vpop.f32.mrb[0].mxu0
    %2998 = vmatprep.mubr.bf16.mxu0 %v2161
    %2999 = vmatmul.mubr.bf16.gmra.mrb[0].mxu0 %v2160
    %v3000 = vpop.f32.mrb[0].mxu0
    %v3001 = vadd.f32 %v2840, %v3000
    %v3002 = vpop.f32.mrb[0].mxu0
    %v3003 = vpop.f32.mrb[0].mxu0
    %v3004 = vadd.f32 %v2843, %v3003
    %v3005 = vpop.f32.mrb[0].mxu0
    %3006 = vdwg.mxu0
    %3007 = vmatprep.subr.bf16.mxu0 0
    %3008 = vmatpush1.bf16.msra.mxu0 %v2589
    %3009 = vmatprep.subr.bf16.mxu0 0
    %3010 = vmatpush1.bf16.msra.mxu0 %v2590
    %3011 = vmatprep.subr.bf16.mxu0 0
    %3012 = vmatpush1.bf16.msra.mxu0 %v2591
    %3013 = vmatprep.subr.bf16.mxu0 0
    %3014 = vmatpush1.bf16.msra.mxu0 %v2592
    %3015 = vmatprep.subr.bf16.mxu0 0
    %3016 = vmatpush1.bf16.msra.mxu0 %v2593
    %3017 = vmatprep.subr.bf16.mxu0 0
    %3018 = vmatpush1.bf16.msra.mxu0 %v2594
    %3019 = vmatprep.subr.bf16.mxu0 0
    %3020 = vmatpush1.bf16.msra.mxu0 %v2595
    %3021 = vmatprep.subr.bf16.mxu0 0
    %3022 = vmatpush1.bf16.msra.mxu0 %v2596
    %3023 = vmatprep.subr.bf16.mxu0 0
    %3024 = vmatpush1.bf16.msra.mxu0 %v2597
    %3025 = vmatprep.subr.bf16.mxu0 0
    %3026 = vmatpush1.bf16.msra.mxu0 %v2598
    %3027 = vmatprep.subr.bf16.mxu0 0
    %3028 = vmatpush1.bf16.msra.mxu0 %v2599
    %3029 = vmatprep.subr.bf16.mxu0 0
    %3030 = vmatpush1.bf16.msra.mxu0 %v2600
    %3031 = vmatprep.subr.bf16.mxu0 0
    %3032 = vmatpush1.bf16.msra.mxu0 %v2601
    %3033 = vmatprep.subr.bf16.mxu0 0
    %3034 = vmatpush1.bf16.msra.mxu0 %v2602
    %3035 = vmatprep.subr.bf16.mxu0 0
    %3036 = vmatpush1.bf16.msra.mxu0 %v2603
    %3037 = vmatprep.subr.bf16.mxu0 0
    %3038 = vmatpush1.bf16.msra.mxu0 %v2604
    %3039 = vmatprep.mubr.bf16.mxu0 %v2043
    %3040 = vmatmul.mubr.bf16.gmra.mrb[0].mxu0 %v2042
    %v3041 = vpop.f32.mrb[0].mxu0
    %v3042 = vadd.f32 %v2881, %v3041
    %v3043 = vpop.f32.mrb[0].mxu0
    %v3044 = vpop.f32.mrb[0].mxu0
    %v3045 = vadd.f32 %v2884, %v3044
    %v3046 = vpop.f32.mrb[0].mxu0
    %3047 = vmatprep.mubr.bf16.mxu0 %v2051
    %3048 = vmatmul.mubr.bf16.gmra.mrb[0].mxu0 %v2050
    %v3049 = vpop.f32.mrb[0].mxu0
    %v3050 = vadd.f32 %v2889, %v3049
    %v3051 = vpop.f32.mrb[0].mxu0
    %v3052 = vpop.f32.mrb[0].mxu0
    %v3053 = vadd.f32 %v2892, %v3052
    %v3054 = vpop.f32.mrb[0].mxu0
    %3055 = vmatprep.mubr.bf16.mxu0 %v2059
    %3056 = vmatmul.mubr.bf16.gmra.mrb[0].mxu0 %v2058
    %v3057 = vpop.f32.mrb[0].mxu0
    %v3058 = vadd.f32 %v2897, %v3057
    %v3059 = vpop.f32.mrb[0].mxu0
    %v3060 = vpop.f32.mrb[0].mxu0
    %v3061 = vadd.f32 %v2900, %v3060
    %v3062 = vpop.f32.mrb[0].mxu0
    %3063 = vmatprep.mubr.bf16.mxu0 %v2067
    %3064 = vmatmul.mubr.bf16.gmra.mrb[0].mxu0 %v2066
    %v3065 = vpop.f32.mrb[0].mxu0
    %v3066 = vadd.f32 %v2905, %v3065
    %v3067 = vpop.f32.mrb[0].mxu0
    %v3068 = vpop.f32.mrb[0].mxu0
    %v3069 = vadd.f32 %v2908, %v3068
    %v3070 = vpop.f32.mrb[0].mxu0
    %3071 = vmatprep.mubr.bf16.mxu0 %v2075
    %3072 = vmatmul.mubr.bf16.gmra.mrb[0].mxu0 %v2074
    %v3073 = vpop.f32.mrb[0].mxu0
    %v3074 = vadd.f32 %v2913, %v3073
    %v3075 = vpop.f32.mrb[0].mxu0
    %v3076 = vpop.f32.mrb[0].mxu0
    %v3077 = vadd.f32 %v2916, %v3076
    %v3078 = vpop.f32.mrb[0].mxu0
    %3079 = vmatprep.mubr.bf16.mxu0 %v2083
    %3080 = vmatmul.mubr.bf16.gmra.mrb[0].mxu0 %v2082
    %v3081 = vpop.f32.mrb[0].mxu0
    %v3082 = vadd.f32 %v2921, %v3081
    %v3083 = vpop.f32.mrb[0].mxu0
    %v3084 = vpop.f32.mrb[0].mxu0
    %v3085 = vadd.f32 %v2924, %v3084
    %v3086 = vpop.f32.mrb[0].mxu0
    %3087 = vmatprep.mubr.bf16.mxu0 %v2091
    %3088 = vmatmul.mubr.bf16.gmra.mrb[0].mxu0 %v2090
    %v3089 = vpop.f32.mrb[0].mxu0
    %v3090 = vadd.f32 %v2929, %v3089
    %v3091 = vpop.f32.mrb[0].mxu0
    %v3092 = vpop.f32.mrb[0].mxu0
    %v3093 = vadd.f32 %v2932, %v3092
    %v3094 = vpop.f32.mrb[0].mxu0
    %3095 = vmatprep.mubr.bf16.mxu0 %v2099
    %3096 = vmatmul.mubr.bf16.gmra.mrb[0].mxu0 %v2098
    %v3097 = vpop.f32.mrb[0].mxu0
    %v3098 = vadd.f32 %v2937, %v3097
    %v3099 = vpop.f32.mrb[0].mxu0
    %v3100 = vpop.f32.mrb[0].mxu0
    %v3101 = vadd.f32 %v2940, %v3100
    %v3102 = vpop.f32.mrb[0].mxu0
    %3103 = vmatprep.mubr.bf16.mxu0 %v2107
    %3104 = vmatmul.mubr.bf16.gmra.mrb[0].mxu0 %v2106
    %v3105 = vpop.f32.mrb[0].mxu0
    %v3106 = vadd.f32 %v2945, %v3105
    %v3107 = vpop.f32.mrb[0].mxu0
    %v3108 = vpop.f32.mrb[0].mxu0
    %v3109 = vadd.f32 %v2948, %v3108
    %v3110 = vpop.f32.mrb[0].mxu0
    %3111 = vmatprep.mubr.bf16.mxu0 %v2115
    %3112 = vmatmul.mubr.bf16.gmra.mrb[0].mxu0 %v2114
    %v3113 = vpop.f32.mrb[0].mxu0
    %v3114 = vadd.f32 %v2953, %v3113
    %v3115 = vpop.f32.mrb[0].mxu0
    %v3116 = vpop.f32.mrb[0].mxu0
    %v3117 = vadd.f32 %v2956, %v3116
    %v3118 = vpop.f32.mrb[0].mxu0
    %3119 = vmatprep.mubr.bf16.mxu0 %v2123
    %3120 = vmatmul.mubr.bf16.gmra.mrb[0].mxu0 %v2122
    %v3121 = vpop.f32.mrb[0].mxu0
    %v3122 = vadd.f32 %v2961, %v3121
    %v3123 = vpop.f32.mrb[0].mxu0
    %v3124 = vpop.f32.mrb[0].mxu0
    %v3125 = vadd.f32 %v2964, %v3124
    %v3126 = vpop.f32.mrb[0].mxu0
    %3127 = vmatprep.mubr.bf16.mxu0 %v2131
    %3128 = vmatmul.mubr.bf16.gmra.mrb[0].mxu0 %v2130
    %v3129 = vpop.f32.mrb[0].mxu0
    %v3130 = vadd.f32 %v2969, %v3129
    %v3131 = vpop.f32.mrb[0].mxu0
    %v3132 = vpop.f32.mrb[0].mxu0
    %v3133 = vadd.f32 %v2972, %v3132
    %v3134 = vpop.f32.mrb[0].mxu0
    %3135 = vmatprep.mubr.bf16.mxu0 %v2139
    %3136 = vmatmul.mubr.bf16.gmra.mrb[0].mxu0 %v2138
    %v3137 = vpop.f32.mrb[0].mxu0
    %v3138 = vadd.f32 %v2977, %v3137
    %v3139 = vpop.f32.mrb[0].mxu0
    %v3140 = vpop.f32.mrb[0].mxu0
    %v3141 = vadd.f32 %v2980, %v3140
    %v3142 = vpop.f32.mrb[0].mxu0
    %3143 = vmatprep.mubr.bf16.mxu0 %v2147
    %3144 = vmatmul.mubr.bf16.gmra.mrb[0].mxu0 %v2146
    %v3145 = vpop.f32.mrb[0].mxu0
    %v3146 = vadd.f32 %v2985, %v3145
    %v3147 = vpop.f32.mrb[0].mxu0
    %v3148 = vpop.f32.mrb[0].mxu0
    %v3149 = vadd.f32 %v2988, %v3148
    %v3150 = vpop.f32.mrb[0].mxu0
    %3151 = vmatprep.mubr.bf16.mxu0 %v2155
    %3152 = vmatmul.mubr.bf16.gmra.mrb[0].mxu0 %v2154
    %v3153 = vpop.f32.mrb[0].mxu0
    %v3154 = vadd.f32 %v2993, %v3153
    %v3155 = vpop.f32.mrb[0].mxu0
    %v3156 = vpop.f32.mrb[0].mxu0
    %v3157 = vadd.f32 %v2996, %v3156
    %v3158 = vpop.f32.mrb[0].mxu0
    %3159 = vmatprep.mubr.bf16.mxu0 %v2163
    %3160 = vmatmul.mubr.bf16.gmra.mrb[0].mxu0 %v2162
    %v3161 = vpop.f32.mrb[0].mxu0
    %v3162 = vadd.f32 %v3001, %v3161
    %v3163 = vpop.f32.mrb[0].mxu0
    %v3164 = vpop.f32.mrb[0].mxu0
    %v3165 = vadd.f32 %v3004, %v3164
    %v3166 = vpop.f32.mrb[0].mxu0
    %3167 = vdwg.mxu0
    %3168 = vmatprep.subr.bf16.mxu0 0
    %3169 = vmatpush1.bf16.msra.mxu0 %v2605
    %3170 = vmatprep.subr.bf16.mxu0 0
    %3171 = vmatpush1.bf16.msra.mxu0 %v2606
    %3172 = vmatprep.subr.bf16.mxu0 0
    %3173 = vmatpush1.bf16.msra.mxu0 %v2607
    %3174 = vmatprep.subr.bf16.mxu0 0
    %3175 = vmatpush1.bf16.msra.mxu0 %v2608
    %3176 = vmatprep.subr.bf16.mxu0 0
    %3177 = vmatpush1.bf16.msra.mxu0 %v2609
    %3178 = vmatprep.subr.bf16.mxu0 0
    %3179 = vmatpush1.bf16.msra.mxu0 %v2610
    %3180 = vmatprep.subr.bf16.mxu0 0
    %3181 = vmatpush1.bf16.msra.mxu0 %v2611
    %3182 = vmatprep.subr.bf16.mxu0 0
    %3183 = vmatpush1.bf16.msra.mxu0 %v2612
    %3184 = vmatprep.subr.bf16.mxu0 0
    %3185 = vmatpush1.bf16.msra.mxu0 %v2613
    %3186 = vmatprep.subr.bf16.mxu0 0
    %3187 = vmatpush1.bf16.msra.mxu0 %v2614
    %3188 = vmatprep.subr.bf16.mxu0 0
    %3189 = vmatpush1.bf16.msra.mxu0 %v2615
    %3190 = vmatprep.subr.bf16.mxu0 0
    %3191 = vmatpush1.bf16.msra.mxu0 %v2616
    %3192 = vmatprep.subr.bf16.mxu0 0
    %3193 = vmatpush1.bf16.msra.mxu0 %v2617
    %3194 = vmatprep.subr.bf16.mxu0 0
    %3195 = vmatpush1.bf16.msra.mxu0 %v2618
    %3196 = vmatprep.subr.bf16.mxu0 0
    %3197 = vmatpush1.bf16.msra.mxu0 %v2619
    %3198 = vmatprep.subr.bf16.mxu0 0
    %3199 = vmatpush1.bf16.msra.mxu0 %v2620
    %3200 = vmatprep.mubr.bf16.mxu0 %v2045
    %3201 = vmatmul.mubr.bf16.gmra.mrb[0].mxu0 %v2044
    %v3202 = vpop.f32.mrb[0].mxu0
    %v3203 = vadd.f32 %v3042, %v3202
    %v3204 = vpop.f32.mrb[0].mxu0
    %v3205 = vpop.f32.mrb[0].mxu0
    %v3206 = vadd.f32 %v3045, %v3205
    %v3207 = vpop.f32.mrb[0].mxu0
    %3208 = vmatprep.mubr.bf16.mxu0 %v2053
    %3209 = vmatmul.mubr.bf16.gmra.mrb[0].mxu0 %v2052
    %v3210 = vpop.f32.mrb[0].mxu0
    %v3211 = vadd.f32 %v3050, %v3210
    %v3212 = vpop.f32.mrb[0].mxu0
    %v3213 = vpop.f32.mrb[0].mxu0
    %v3214 = vadd.f32 %v3053, %v3213
    %v3215 = vpop.f32.mrb[0].mxu0
    %3216 = vmatprep.mubr.bf16.mxu0 %v2061
    %3217 = vmatmul.mubr.bf16.gmra.mrb[0].mxu0 %v2060
    %v3218 = vpop.f32.mrb[0].mxu0
    %v3219 = vadd.f32 %v3058, %v3218
    %v3220 = vpop.f32.mrb[0].mxu0
    %v3221 = vpop.f32.mrb[0].mxu0
    %v3222 = vadd.f32 %v3061, %v3221
    %v3223 = vpop.f32.mrb[0].mxu0
    %3224 = vmatprep.mubr.bf16.mxu0 %v2069
    %3225 = vmatmul.mubr.bf16.gmra.mrb[0].mxu0 %v2068
    %v3226 = vpop.f32.mrb[0].mxu0
    %v3227 = vadd.f32 %v3066, %v3226
    %v3228 = vpop.f32.mrb[0].mxu0
    %v3229 = vpop.f32.mrb[0].mxu0
    %v3230 = vadd.f32 %v3069, %v3229
    %v3231 = vpop.f32.mrb[0].mxu0
    %3232 = vmatprep.mubr.bf16.mxu0 %v2077
    %3233 = vmatmul.mubr.bf16.gmra.mrb[0].mxu0 %v2076
    %v3234 = vpop.f32.mrb[0].mxu0
    %v3235 = vadd.f32 %v3074, %v3234
    %v3236 = vpop.f32.mrb[0].mxu0
    %v3237 = vpop.f32.mrb[0].mxu0
    %v3238 = vadd.f32 %v3077, %v3237
    %v3239 = vpop.f32.mrb[0].mxu0
    %3240 = vmatprep.mubr.bf16.mxu0 %v2085
    %3241 = vmatmul.mubr.bf16.gmra.mrb[0].mxu0 %v2084
    %v3242 = vpop.f32.mrb[0].mxu0
    %v3243 = vadd.f32 %v3082, %v3242
    %v3244 = vpop.f32.mrb[0].mxu0
    %v3245 = vpop.f32.mrb[0].mxu0
    %v3246 = vadd.f32 %v3085, %v3245
    %v3247 = vpop.f32.mrb[0].mxu0
    %3248 = vmatprep.mubr.bf16.mxu0 %v2093
    %3249 = vmatmul.mubr.bf16.gmra.mrb[0].mxu0 %v2092
    %v3250 = vpop.f32.mrb[0].mxu0
    %v3251 = vadd.f32 %v3090, %v3250
    %v3252 = vpop.f32.mrb[0].mxu0
    %v3253 = vpop.f32.mrb[0].mxu0
    %v3254 = vadd.f32 %v3093, %v3253
    %v3255 = vpop.f32.mrb[0].mxu0
    %3256 = vmatprep.mubr.bf16.mxu0 %v2101
    %3257 = vmatmul.mubr.bf16.gmra.mrb[0].mxu0 %v2100
    %v3258 = vpop.f32.mrb[0].mxu0
    %v3259 = vadd.f32 %v3098, %v3258
    %v3260 = vpop.f32.mrb[0].mxu0
    %v3261 = vpop.f32.mrb[0].mxu0
    %v3262 = vadd.f32 %v3101, %v3261
    %v3263 = vpop.f32.mrb[0].mxu0
    %3264 = vmatprep.mubr.bf16.mxu0 %v2109
    %3265 = vmatmul.mubr.bf16.gmra.mrb[0].mxu0 %v2108
    %v3266 = vpop.f32.mrb[0].mxu0
    %v3267 = vadd.f32 %v3106, %v3266
    %v3268 = vpop.f32.mrb[0].mxu0
    %v3269 = vpop.f32.mrb[0].mxu0
    %v3270 = vadd.f32 %v3109, %v3269
    %v3271 = vpop.f32.mrb[0].mxu0
    %3272 = vmatprep.mubr.bf16.mxu0 %v2117
    %3273 = vmatmul.mubr.bf16.gmra.mrb[0].mxu0 %v2116
    %v3274 = vpop.f32.mrb[0].mxu0
    %v3275 = vadd.f32 %v3114, %v3274
    %v3276 = vpop.f32.mrb[0].mxu0
    %v3277 = vpop.f32.mrb[0].mxu0
    %v3278 = vadd.f32 %v3117, %v3277
    %v3279 = vpop.f32.mrb[0].mxu0
    %3280 = vmatprep.mubr.bf16.mxu0 %v2125
    %3281 = vmatmul.mubr.bf16.gmra.mrb[0].mxu0 %v2124
    %v3282 = vpop.f32.mrb[0].mxu0
    %v3283 = vadd.f32 %v3122, %v3282
    %v3284 = vpop.f32.mrb[0].mxu0
    %v3285 = vpop.f32.mrb[0].mxu0
    %v3286 = vadd.f32 %v3125, %v3285
    %v3287 = vpop.f32.mrb[0].mxu0
    %3288 = vmatprep.mubr.bf16.mxu0 %v2133
    %3289 = vmatmul.mubr.bf16.gmra.mrb[0].mxu0 %v2132
    %v3290 = vpop.f32.mrb[0].mxu0
    %v3291 = vadd.f32 %v3130, %v3290
    %v3292 = vpop.f32.mrb[0].mxu0
    %v3293 = vpop.f32.mrb[0].mxu0
    %v3294 = vadd.f32 %v3133, %v3293
    %v3295 = vpop.f32.mrb[0].mxu0
    %3296 = vmatprep.mubr.bf16.mxu0 %v2141
    %3297 = vmatmul.mubr.bf16.gmra.mrb[0].mxu0 %v2140
    %v3298 = vpop.f32.mrb[0].mxu0
    %v3299 = vadd.f32 %v3138, %v3298
    %v3300 = vpop.f32.mrb[0].mxu0
    %v3301 = vpop.f32.mrb[0].mxu0
    %v3302 = vadd.f32 %v3141, %v3301
    %v3303 = vpop.f32.mrb[0].mxu0
    %3304 = vmatprep.mubr.bf16.mxu0 %v2149
    %3305 = vmatmul.mubr.bf16.gmra.mrb[0].mxu0 %v2148
    %v3306 = vpop.f32.mrb[0].mxu0
    %v3307 = vadd.f32 %v3146, %v3306
    %v3308 = vpop.f32.mrb[0].mxu0
    %v3309 = vpop.f32.mrb[0].mxu0
    %v3310 = vadd.f32 %v3149, %v3309
    %v3311 = vpop.f32.mrb[0].mxu0
    %3312 = vmatprep.mubr.bf16.mxu0 %v2157
    %3313 = vmatmul.mubr.bf16.gmra.mrb[0].mxu0 %v2156
    %v3314 = vpop.f32.mrb[0].mxu0
    %v3315 = vadd.f32 %v3154, %v3314
    %v3316 = vpop.f32.mrb[0].mxu0
    %v3317 = vpop.f32.mrb[0].mxu0
    %v3318 = vadd.f32 %v3157, %v3317
    %v3319 = vpop.f32.mrb[0].mxu0
    %3320 = vmatprep.mubr.bf16.mxu0 %v2165
    %3321 = vmatmul.mubr.bf16.gmra.mrb[0].mxu0 %v2164
    %v3322 = vpop.f32.mrb[0].mxu0
    %v3323 = vadd.f32 %v3162, %v3322
    %v3324 = vpop.f32.mrb[0].mxu0
    %v3325 = vpop.f32.mrb[0].mxu0
    %v3326 = vadd.f32 %v3165, %v3325
    %v3327 = vpop.f32.mrb[0].mxu0
    %3328 = vdwg.mxu0
    %v3329 = vpack.c.bf16 %v3206, %v3203
    %v3330 = vpack.c.bf16 %v3214, %v3211
    %v3331 = vpack.c.bf16 %v3222, %v3219
    %v3332 = vpack.c.bf16 %v3230, %v3227
    %v3333 = vpack.c.bf16 %v3238, %v3235
    %v3334 = vpack.c.bf16 %v3246, %v3243
    %v3335 = vpack.c.bf16 %v3254, %v3251
    %v3336 = vpack.c.bf16 %v3262, %v3259
    %v3337 = vpack.c.bf16 %v3270, %v3267
    %v3338 = vpack.c.bf16 %v3278, %v3275
    %v3339 = vpack.c.bf16 %v3286, %v3283
    %v3340 = vpack.c.bf16 %v3294, %v3291
    %v3341 = vpack.c.bf16 %v3302, %v3299
    %v3342 = vpack.c.bf16 %v3310, %v3307
    %v3343 = vpack.c.bf16 %v3318, %v3315
    %v3344 = vpack.c.bf16 %v3326, %v3323
    %vm3345 = vcmp.gt.bf16.partialorder %v3329, 0
    %vm3346 = vcmp.gt.bf16.partialorder %v3330, 0
    %vm3347 = vcmp.gt.bf16.partialorder %v3331, 0
    %vm3348 = vcmp.gt.bf16.partialorder %v3332, 0
    %vm3349 = vcmp.gt.bf16.partialorder %v3333, 0
    %vm3350 = vcmp.gt.bf16.partialorder %v3334, 0
    %vm3351 = vcmp.gt.bf16.partialorder %v3335, 0
    %vm3352 = vcmp.gt.bf16.partialorder %v3336, 0
    %vm3353 = vcmp.gt.bf16.partialorder %v3337, 0
    %vm3354 = vcmp.gt.bf16.partialorder %v3338, 0
    %vm3355 = vcmp.gt.bf16.partialorder %v3339, 0
    %vm3356 = vcmp.gt.bf16.partialorder %v3340, 0
    %vm3357 = vcmp.gt.bf16.partialorder %v3341, 0
    %vm3358 = vcmp.gt.bf16.partialorder %v3342, 0
    %vm3359 = vcmp.gt.bf16.partialorder %v3343, 0
    %vm3360 = vcmp.gt.bf16.partialorder %v3344, 0
    %v3361 = vmul.bf16 %v3329, 1009007652
    %v3362 = vmul.bf16 %v3330, 1009007652
    %v3363 = vmul.bf16 %v3331, 1009007652
    %v3364 = vmul.bf16 %v3332, 1009007652
    %v3365 = vmul.bf16 %v3333, 1009007652
    %v3366 = vmul.bf16 %v3334, 1009007652
    %v3367 = vmul.bf16 %v3335, 1009007652
    %v3368 = vmul.bf16 %v3336, 1009007652
    %v3369 = vmul.bf16 %v3337, 1009007652
    %v3370 = vmul.bf16 %v3338, 1009007652
    %v3371 = vmul.bf16 %v3339, 1009007652
    %v3372 = vmul.bf16 %v3340, 1009007652
    %v3373 = vmul.bf16 %v3341, 1009007652
    %v3374 = vmul.bf16 %v3342, 1009007652
    %v3375 = vmul.bf16 %v3343, 1009007652
    %v3376 = vmul.bf16 %v3344, 1009007652
    %v3377 = vsel %vm3345, %v3329, %v3361
    %v3378 = vsel %vm3346, %v3330, %v3362
    %v3379 = vsel %vm3347, %v3331, %v3363
    %v3380 = vsel %vm3348, %v3332, %v3364
    %v3381 = vsel %vm3349, %v3333, %v3365
    %v3382 = vsel %vm3350, %v3334, %v3366
    %v3383 = vsel %vm3351, %v3335, %v3367
    %v3384 = vsel %vm3352, %v3336, %v3368
    %v3385 = vsel %vm3353, %v3337, %v3369
    %v3386 = vsel %vm3354, %v3338, %v3370
    %v3387 = vsel %vm3355, %v3339, %v3371
    %v3388 = vsel %vm3356, %v3340, %v3372
    %v3389 = vsel %vm3357, %v3341, %v3373
    %v3390 = vsel %vm3358, %v3342, %v3374
    %v3391 = vsel %vm3359, %v3343, %v3375
    %v3392 = vsel %vm3360, %v3344, %v3376
    %v3393 = vld [vmem:[%s7] sm:$0xf]
    %v3394 = vld [vmem:[%s7 + $0x4] sm:$0xf]
    %v3395 = vld [vmem:[%s7 + $0x8] sm:$0xf]
    %v3396 = vld [vmem:[%s7 + $0xc] sm:$0xf]
    %v3397 = vld [vmem:[%s7 + $0x10] sm:$0xf]
    %v3398 = vld [vmem:[%s7 + $0x14] sm:$0xf]
    %v3399 = vld [vmem:[%s7 + $0x18] sm:$0xf]
    %v3400 = vld [vmem:[%s7 + $0x1c] sm:$0xf]
    %v3401 = vld [vmem:[%s7 + $0x20] sm:$0xf]
    %v3402 = vld [vmem:[%s7 + $0x24] sm:$0xf]
    %v3403 = vld [vmem:[%s7 + $0x28] sm:$0xf]
    %v3404 = vld [vmem:[%s7 + $0x2c] sm:$0xf]
    %v3405 = vld [vmem:[%s7 + $0x30] sm:$0xf]
    %v3406 = vld [vmem:[%s7 + $0x34] sm:$0xf]
    %v3407 = vld [vmem:[%s7 + $0x38] sm:$0xf]
    %v3408 = vld [vmem:[%s7 + $0x3c] sm:$0xf]
    %v3409 = vld [vmem:[%s8] sm:$0x1]
    %v3411 = vlaneseq
    %v3412 = vshrl.u32 %v3411, 7
    %v3413 = vsub.s32 0, %v3412
    %v3414 = vrot.slane %v3409, %v3413
    %v3432 = vunpack.c.l.b16 %v3393
    %v3433 = vunpack.c.l.b16 %v3394
    %v3434 = vunpack.c.l.b16 %v3395
    %v3435 = vunpack.c.l.b16 %v3396
    %v3436 = vunpack.c.l.b16 %v3397
    %v3437 = vunpack.c.l.b16 %v3398
    %v3438 = vunpack.c.l.b16 %v3399
    %v3439 = vunpack.c.l.b16 %v3400
    %v3440 = vunpack.c.l.b16 %v3401
    %v3441 = vunpack.c.l.b16 %v3402
    %v3442 = vunpack.c.l.b16 %v3403
    %v3443 = vunpack.c.l.b16 %v3404
    %v3444 = vunpack.c.l.b16 %v3405
    %v3445 = vunpack.c.l.b16 %v3406
    %v3446 = vunpack.c.l.b16 %v3407
    %v3447 = vunpack.c.l.b16 %v3408
    %v3448 = vpack.c.b16 %v3433, %v3432
    %v3449 = vpack.c.b16 %v3435, %v3434
    %v3450 = vpack.c.b16 %v3437, %v3436
    %v3451 = vpack.c.b16 %v3439, %v3438
    %v3452 = vpack.c.b16 %v3441, %v3440
    %v3453 = vpack.c.b16 %v3443, %v3442
    %v3454 = vpack.c.b16 %v3445, %v3444
    %v3455 = vpack.c.b16 %v3447, %v3446
    %3464 = vmatprep.subr.bf16.mxu0 0
    %3465 = vmatpush1.bf16.msra.mxu0 %v3448
    %3466 = vmatprep.subr.bf16.mxu0 0
    %3467 = vmatpush1.bf16.msra.mxu0 %v3449
    %3468 = vmatprep.subr.bf16.mxu0 0
    %3469 = vmatpush1.bf16.msra.mxu0 %v3450
    %3470 = vmatprep.subr.bf16.mxu0 0
    %3471 = vmatpush1.bf16.msra.mxu0 %v3451
    %3472 = vmatprep.subr.bf16.mxu0 0
    %3473 = vmatpush1.bf16.msra.mxu0 %v3452
    %3474 = vmatprep.subr.bf16.mxu0 0
    %3475 = vmatpush1.bf16.msra.mxu0 %v3453
    %3476 = vmatprep.subr.bf16.mxu0 0
    %3477 = vmatpush1.bf16.msra.mxu0 %v3454
    %3478 = vmatprep.subr.bf16.mxu0 0
    %3479 = vmatpush1.bf16.msra.mxu0 %v3455
    %3480 = vmatprep.subr.bf16.mxu0 0
    %3481 = vmatpush1.bf16.msra.mxu0 0
    %3482 = vmatprep.subr.bf16.mxu0 0
    %3483 = vmatpush1.bf16.msra.mxu0 0
    %3484 = vmatprep.subr.bf16.mxu0 0
    %3485 = vmatpush1.bf16.msra.mxu0 0
    %3486 = vmatprep.subr.bf16.mxu0 0
    %3487 = vmatpush1.bf16.msra.mxu0 0
    %3488 = vmatprep.subr.bf16.mxu0 0
    %3489 = vmatpush1.bf16.msra.mxu0 0
    %3490 = vmatprep.subr.bf16.mxu0 0
    %3491 = vmatpush1.bf16.msra.mxu0 0
    %3492 = vmatprep.subr.bf16.mxu0 0
    %3493 = vmatpush1.bf16.msra.mxu0 0
    %3494 = vmatprep.subr.bf16.mxu0 0
    %3495 = vmatpush1.bf16.msra.mxu0 0
    %3496 = vmatprep.mubr.bf16.mxu0 0
    %3497 = vmatmul.mubr.bf16.gmra.mrb[0].mxu0 %v3377
    %v3498 = vpop.f32.mrb[0].mxu0
    %v3499 = vadd.f32 %v3414, %v3498
    %v3500 = vpop.f32.mrb[0].mxu0
    %v3501 = vpop.f32.mrb[0].mxu0
    %v3502 = vadd.f32 %v3414, %v3501
    %v3503 = vpop.f32.mrb[0].mxu0
    %3504 = vmatprep.mubr.bf16.mxu0 0
    %3505 = vmatmul.mubr.bf16.gmra.mrb[0].mxu0 %v3378
    %v3506 = vpop.f32.mrb[0].mxu0
    %v3507 = vadd.f32 %v3414, %v3506
    %v3508 = vpop.f32.mrb[0].mxu0
    %v3509 = vpop.f32.mrb[0].mxu0
    %v3510 = vadd.f32 %v3414, %v3509
    %v3511 = vpop.f32.mrb[0].mxu0
    %3512 = vmatprep.mubr.bf16.mxu0 0
    %3513 = vmatmul.mubr.bf16.gmra.mrb[0].mxu0 %v3379
    %v3514 = vpop.f32.mrb[0].mxu0
    %v3515 = vadd.f32 %v3414, %v3514
    %v3516 = vpop.f32.mrb[0].mxu0
    %v3517 = vpop.f32.mrb[0].mxu0
    %v3518 = vadd.f32 %v3414, %v3517
    %v3519 = vpop.f32.mrb[0].mxu0
    %3520 = vmatprep.mubr.bf16.mxu0 0
    %3521 = vmatmul.mubr.bf16.gmra.mrb[0].mxu0 %v3380
    %v3522 = vpop.f32.mrb[0].mxu0
    %v3523 = vadd.f32 %v3414, %v3522
    %v3524 = vpop.f32.mrb[0].mxu0
    %v3525 = vpop.f32.mrb[0].mxu0
    %v3526 = vadd.f32 %v3414, %v3525
    %v3527 = vpop.f32.mrb[0].mxu0
    %3528 = vmatprep.mubr.bf16.mxu0 0
    %3529 = vmatmul.mubr.bf16.gmra.mrb[0].mxu0 %v3381
    %v3530 = vpop.f32.mrb[0].mxu0
    %v3531 = vadd.f32 %v3414, %v3530
    %v3532 = vpop.f32.mrb[0].mxu0
    %v3533 = vpop.f32.mrb[0].mxu0
    %v3534 = vadd.f32 %v3414, %v3533
    %v3535 = vpop.f32.mrb[0].mxu0
    %3536 = vmatprep.mubr.bf16.mxu0 0
    %3537 = vmatmul.mubr.bf16.gmra.mrb[0].mxu0 %v3382
    %v3538 = vpop.f32.mrb[0].mxu0
    %v3539 = vadd.f32 %v3414, %v3538
    %v3540 = vpop.f32.mrb[0].mxu0
    %v3541 = vpop.f32.mrb[0].mxu0
    %v3542 = vadd.f32 %v3414, %v3541
    %v3543 = vpop.f32.mrb[0].mxu0
    %3544 = vmatprep.mubr.bf16.mxu0 0
    %3545 = vmatmul.mubr.bf16.gmra.mrb[0].mxu0 %v3383
    %v3546 = vpop.f32.mrb[0].mxu0
    %v3547 = vadd.f32 %v3414, %v3546
    %v3548 = vpop.f32.mrb[0].mxu0
    %v3549 = vpop.f32.mrb[0].mxu0
    %v3550 = vadd.f32 %v3414, %v3549
    %v3551 = vpop.f32.mrb[0].mxu0
    %3552 = vmatprep.mubr.bf16.mxu0 0
    %3553 = vmatmul.mubr.bf16.gmra.mrb[0].mxu0 %v3384
    %v3554 = vpop.f32.mrb[0].mxu0
    %v3555 = vadd.f32 %v3414, %v3554
    %v3556 = vpop.f32.mrb[0].mxu0
    %v3557 = vpop.f32.mrb[0].mxu0
    %v3558 = vadd.f32 %v3414, %v3557
    %v3559 = vpop.f32.mrb[0].mxu0
    %3560 = vmatprep.mubr.bf16.mxu0 0
    %3561 = vmatmul.mubr.bf16.gmra.mrb[0].mxu0 %v3385
    %v3562 = vpop.f32.mrb[0].mxu0
    %v3563 = vadd.f32 %v3414, %v3562
    %v3564 = vpop.f32.mrb[0].mxu0
    %v3565 = vpop.f32.mrb[0].mxu0
    %v3566 = vadd.f32 %v3414, %v3565
    %v3567 = vpop.f32.mrb[0].mxu0
    %3568 = vmatprep.mubr.bf16.mxu0 0
    %3569 = vmatmul.mubr.bf16.gmra.mrb[0].mxu0 %v3386
    %v3570 = vpop.f32.mrb[0].mxu0
    %v3571 = vadd.f32 %v3414, %v3570
    %v3572 = vpop.f32.mrb[0].mxu0
    %v3573 = vpop.f32.mrb[0].mxu0
    %v3574 = vadd.f32 %v3414, %v3573
    %v3575 = vpop.f32.mrb[0].mxu0
    %3576 = vmatprep.mubr.bf16.mxu0 0
    %3577 = vmatmul.mubr.bf16.gmra.mrb[0].mxu0 %v3387
    %v3578 = vpop.f32.mrb[0].mxu0
    %v3579 = vadd.f32 %v3414, %v3578
    %v3580 = vpop.f32.mrb[0].mxu0
    %v3581 = vpop.f32.mrb[0].mxu0
    %v3582 = vadd.f32 %v3414, %v3581
    %v3583 = vpop.f32.mrb[0].mxu0
    %3584 = vmatprep.mubr.bf16.mxu0 0
    %3585 = vmatmul.mubr.bf16.gmra.mrb[0].mxu0 %v3388
    %v3586 = vpop.f32.mrb[0].mxu0
    %v3587 = vadd.f32 %v3414, %v3586
    %v3588 = vpop.f32.mrb[0].mxu0
    %v3589 = vpop.f32.mrb[0].mxu0
    %v3590 = vadd.f32 %v3414, %v3589
    %v3591 = vpop.f32.mrb[0].mxu0
    %3592 = vmatprep.mubr.bf16.mxu0 0
    %3593 = vmatmul.mubr.bf16.gmra.mrb[0].mxu0 %v3389
    %v3594 = vpop.f32.mrb[0].mxu0
    %v3595 = vadd.f32 %v3414, %v3594
    %v3596 = vpop.f32.mrb[0].mxu0
    %v3597 = vpop.f32.mrb[0].mxu0
    %v3598 = vadd.f32 %v3414, %v3597
    %v3599 = vpop.f32.mrb[0].mxu0
    %3600 = vmatprep.mubr.bf16.mxu0 0
    %3601 = vmatmul.mubr.bf16.gmra.mrb[0].mxu0 %v3390
    %v3602 = vpop.f32.mrb[0].mxu0
    %v3603 = vadd.f32 %v3414, %v3602
    %v3604 = vpop.f32.mrb[0].mxu0
    %v3605 = vpop.f32.mrb[0].mxu0
    %v3606 = vadd.f32 %v3414, %v3605
    %v3607 = vpop.f32.mrb[0].mxu0
    %3608 = vmatprep.mubr.bf16.mxu0 0
    %3609 = vmatmul.mubr.bf16.gmra.mrb[0].mxu0 %v3391
    %v3610 = vpop.f32.mrb[0].mxu0
    %v3611 = vadd.f32 %v3414, %v3610
    %v3612 = vpop.f32.mrb[0].mxu0
    %v3613 = vpop.f32.mrb[0].mxu0
    %v3614 = vadd.f32 %v3414, %v3613
    %v3615 = vpop.f32.mrb[0].mxu0
    %3616 = vmatprep.mubr.bf16.mxu0 0
    %3617 = vmatmul.mubr.bf16.gmra.mrb[0].mxu0 %v3392
    %v3618 = vpop.f32.mrb[0].mxu0
    %v3619 = vadd.f32 %v3414, %v3618
    %v3620 = vpop.f32.mrb[0].mxu0
    %v3621 = vpop.f32.mrb[0].mxu0
    %v3622 = vadd.f32 %v3414, %v3621
    %v3623 = vpop.f32.mrb[0].mxu0
    %3624 = vdwg.mxu0
    %v3625 = vpack.c.bf16 %v3502, %v3499
    %v3626 = vpack.c.bf16 %v3510, %v3507
    %v3627 = vpack.c.bf16 %v3518, %v3515
    %v3628 = vpack.c.bf16 %v3526, %v3523
    %v3629 = vpack.c.bf16 %v3534, %v3531
    %v3630 = vpack.c.bf16 %v3542, %v3539
    %v3631 = vpack.c.bf16 %v3550, %v3547
    %v3632 = vpack.c.bf16 %v3558, %v3555
    %v3633 = vpack.c.bf16 %v3566, %v3563
    %v3634 = vpack.c.bf16 %v3574, %v3571
    %v3635 = vpack.c.bf16 %v3582, %v3579
    %v3636 = vpack.c.bf16 %v3590, %v3587
    %v3637 = vpack.c.bf16 %v3598, %v3595
    %v3638 = vpack.c.bf16 %v3606, %v3603
    %v3639 = vpack.c.bf16 %v3614, %v3611
    %v3640 = vpack.c.bf16 %v3622, %v3619
    %vm3641 = vcmp.gt.bf16.partialorder %v3625, 0
    %vm3642 = vcmp.gt.bf16.partialorder %v3626, 0
    %vm3643 = vcmp.gt.bf16.partialorder %v3627, 0
    %vm3644 = vcmp.gt.bf16.partialorder %v3628, 0
    %vm3645 = vcmp.gt.bf16.partialorder %v3629, 0
    %vm3646 = vcmp.gt.bf16.partialorder %v3630, 0
    %vm3647 = vcmp.gt.bf16.partialorder %v3631, 0
    %vm3648 = vcmp.gt.bf16.partialorder %v3632, 0
    %vm3649 = vcmp.gt.bf16.partialorder %v3633, 0
    %vm3650 = vcmp.gt.bf16.partialorder %v3634, 0
    %vm3651 = vcmp.gt.bf16.partialorder %v3635, 0
    %vm3652 = vcmp.gt.bf16.partialorder %v3636, 0
    %vm3653 = vcmp.gt.bf16.partialorder %v3637, 0
    %vm3654 = vcmp.gt.bf16.partialorder %v3638, 0
    %vm3655 = vcmp.gt.bf16.partialorder %v3639, 0
    %vm3656 = vcmp.gt.bf16.partialorder %v3640, 0
    %v3657 = vmul.bf16 %v3625, 1009007652
    %v3658 = vmul.bf16 %v3626, 1009007652
    %v3659 = vmul.bf16 %v3627, 1009007652
    %v3660 = vmul.bf16 %v3628, 1009007652
    %v3661 = vmul.bf16 %v3629, 1009007652
    %v3662 = vmul.bf16 %v3630, 1009007652
    %v3663 = vmul.bf16 %v3631, 1009007652
    %v3664 = vmul.bf16 %v3632, 1009007652
    %v3665 = vmul.bf16 %v3633, 1009007652
    %v3666 = vmul.bf16 %v3634, 1009007652
    %v3667 = vmul.bf16 %v3635, 1009007652
    %v3668 = vmul.bf16 %v3636, 1009007652
    %v3669 = vmul.bf16 %v3637, 1009007652
    %v3670 = vmul.bf16 %v3638, 1009007652
    %v3671 = vmul.bf16 %v3639, 1009007652
    %v3672 = vmul.bf16 %v3640, 1009007652
    %v3673 = vsel %vm3641, %v3625, %v3657
    %v3674 = vsel %vm3642, %v3626, %v3658
    %v3675 = vsel %vm3643, %v3627, %v3659
    %v3676 = vsel %vm3644, %v3628, %v3660
    %v3677 = vsel %vm3645, %v3629, %v3661
    %v3678 = vsel %vm3646, %v3630, %v3662
    %v3679 = vsel %vm3647, %v3631, %v3663
    %v3680 = vsel %vm3648, %v3632, %v3664
    %v3681 = vsel %vm3649, %v3633, %v3665
    %v3682 = vsel %vm3650, %v3634, %v3666
    %v3683 = vsel %vm3651, %v3635, %v3667
    %v3684 = vsel %vm3652, %v3636, %v3668
    %v3685 = vsel %vm3653, %v3637, %v3669
    %v3686 = vsel %vm3654, %v3638, %v3670
    %v3687 = vsel %vm3655, %v3639, %v3671
    %v3688 = vsel %vm3656, %v3640, %v3672
    %v3689 = vld [vmem:[#allocation8] sm:$0xf]
    %v3690 = vld [vmem:[#allocation8 + $0x4] sm:$0xf]
    %v3691 = vld [vmem:[#allocation8 + $0x8] sm:$0xf]
    %v3692 = vld [vmem:[#allocation8 + $0xc] sm:$0xf]
    %v3693 = vld [vmem:[#allocation8 + $0x10] sm:$0xf]
    %v3694 = vld [vmem:[#allocation8 + $0x14] sm:$0xf]
    %v3695 = vld [vmem:[#allocation8 + $0x18] sm:$0xf]
    %v3696 = vld [vmem:[#allocation8 + $0x1c] sm:$0xf]
    %v3697 = vld [vmem:[#allocation8 + $0x20] sm:$0xf]
    %v3698 = vld [vmem:[#allocation8 + $0x24] sm:$0xf]
    %v3699 = vld [vmem:[#allocation8 + $0x28] sm:$0xf]
    %v3700 = vld [vmem:[#allocation8 + $0x2c] sm:$0xf]
    %v3701 = vld [vmem:[#allocation8 + $0x30] sm:$0xf]
    %v3702 = vld [vmem:[#allocation8 + $0x34] sm:$0xf]
    %v3703 = vld [vmem:[#allocation8 + $0x38] sm:$0xf]
    %v3704 = vld [vmem:[#allocation8 + $0x3c] sm:$0xf]
    %v3705 = vld [vmem:[%s10] sm:$0x1]
    %v3707 = vlaneseq
    %v3708 = vshrl.u32 %v3707, 7
    %v3709 = vsub.s32 0, %v3708
    %v3710 = vrot.slane %v3705, %v3709
    %v3728 = vunpack.c.l.b16 %v3689
    %v3729 = vunpack.c.l.b16 %v3690
    %v3730 = vunpack.c.l.b16 %v3691
    %v3731 = vunpack.c.l.b16 %v3692
    %v3732 = vunpack.c.l.b16 %v3693
    %v3733 = vunpack.c.l.b16 %v3694
    %v3734 = vunpack.c.l.b16 %v3695
    %v3735 = vunpack.c.l.b16 %v3696
    %v3736 = vunpack.c.l.b16 %v3697
    %v3737 = vunpack.c.l.b16 %v3698
    %v3738 = vunpack.c.l.b16 %v3699
    %v3739 = vunpack.c.l.b16 %v3700
    %v3740 = vunpack.c.l.b16 %v3701
    %v3741 = vunpack.c.l.b16 %v3702
    %v3742 = vunpack.c.l.b16 %v3703
    %v3743 = vunpack.c.l.b16 %v3704
    %v3744 = vpack.c.b16 %v3729, %v3728
    %v3745 = vpack.c.b16 %v3731, %v3730
    %v3746 = vpack.c.b16 %v3733, %v3732
    %v3747 = vpack.c.b16 %v3735, %v3734
    %v3748 = vpack.c.b16 %v3737, %v3736
    %v3749 = vpack.c.b16 %v3739, %v3738
    %v3750 = vpack.c.b16 %v3741, %v3740
    %v3751 = vpack.c.b16 %v3743, %v3742
    %3760 = vmatprep.subr.bf16.mxu0 0
    %3761 = vmatpush1.bf16.msra.mxu0 %v3744
    %3762 = vmatprep.subr.bf16.mxu0 0
    %3763 = vmatpush1.bf16.msra.mxu0 %v3745
    %3764 = vmatprep.subr.bf16.mxu0 0
    %3765 = vmatpush1.bf16.msra.mxu0 %v3746
    %3766 = vmatprep.subr.bf16.mxu0 0
    %3767 = vmatpush1.bf16.msra.mxu0 %v3747
    %3768 = vmatprep.subr.bf16.mxu0 0
    %3769 = vmatpush1.bf16.msra.mxu0 %v3748
    %3770 = vmatprep.subr.bf16.mxu0 0
    %3771 = vmatpush1.bf16.msra.mxu0 %v3749
    %3772 = vmatprep.subr.bf16.mxu0 0
    %3773 = vmatpush1.bf16.msra.mxu0 %v3750
    %3774 = vmatprep.subr.bf16.mxu0 0
    %3775 = vmatpush1.bf16.msra.mxu0 %v3751
    %3776 = vmatprep.subr.bf16.mxu0 0
    %3777 = vmatpush1.bf16.msra.mxu0 0
    %3778 = vmatprep.subr.bf16.mxu0 0
    %3779 = vmatpush1.bf16.msra.mxu0 0
    %3780 = vmatprep.subr.bf16.mxu0 0
    %3781 = vmatpush1.bf16.msra.mxu0 0
    %3782 = vmatprep.subr.bf16.mxu0 0
    %3783 = vmatpush1.bf16.msra.mxu0 0
    %3784 = vmatprep.subr.bf16.mxu0 0
    %3785 = vmatpush1.bf16.msra.mxu0 0
    %3786 = vmatprep.subr.bf16.mxu0 0
    %3787 = vmatpush1.bf16.msra.mxu0 0
    %3788 = vmatprep.subr.bf16.mxu0 0
    %3789 = vmatpush1.bf16.msra.mxu0 0
    %3790 = vmatprep.subr.bf16.mxu0 0
    %3791 = vmatpush1.bf16.msra.mxu0 0
    %3792 = vmatprep.mubr.bf16.mxu0 0
    %3793 = vmatmul.mubr.bf16.gmra.mrb[0].mxu0 %v3673
    %v3794 = vpop.f32.mrb[0].mxu0
    %v3795 = vadd.f32 %v3710, %v3794
    %v3796 = vpop.f32.mrb[0].mxu0
    %v3797 = vpop.f32.mrb[0].mxu0
    %v3798 = vadd.f32 %v3710, %v3797
    %v3799 = vpop.f32.mrb[0].mxu0
    %3800 = vmatprep.mubr.bf16.mxu0 0
    %3801 = vmatmul.mubr.bf16.gmra.mrb[0].mxu0 %v3674
    %v3802 = vpop.f32.mrb[0].mxu0
    %v3803 = vadd.f32 %v3710, %v3802
    %v3804 = vpop.f32.mrb[0].mxu0
    %v3805 = vpop.f32.mrb[0].mxu0
    %v3806 = vadd.f32 %v3710, %v3805
    %v3807 = vpop.f32.mrb[0].mxu0
    %3808 = vmatprep.mubr.bf16.mxu0 0
    %3809 = vmatmul.mubr.bf16.gmra.mrb[0].mxu0 %v3675
    %v3810 = vpop.f32.mrb[0].mxu0
    %v3811 = vadd.f32 %v3710, %v3810
    %v3812 = vpop.f32.mrb[0].mxu0
    %v3813 = vpop.f32.mrb[0].mxu0
    %v3814 = vadd.f32 %v3710, %v3813
    %v3815 = vpop.f32.mrb[0].mxu0
    %3816 = vmatprep.mubr.bf16.mxu0 0
    %3817 = vmatmul.mubr.bf16.gmra.mrb[0].mxu0 %v3676
    %v3818 = vpop.f32.mrb[0].mxu0
    %v3819 = vadd.f32 %v3710, %v3818
    %v3820 = vpop.f32.mrb[0].mxu0
    %v3821 = vpop.f32.mrb[0].mxu0
    %v3822 = vadd.f32 %v3710, %v3821
    %v3823 = vpop.f32.mrb[0].mxu0
    %3824 = vmatprep.mubr.bf16.mxu0 0
    %3825 = vmatmul.mubr.bf16.gmra.mrb[0].mxu0 %v3677
    %v3826 = vpop.f32.mrb[0].mxu0
    %v3827 = vadd.f32 %v3710, %v3826
    %v3828 = vpop.f32.mrb[0].mxu0
    %v3829 = vpop.f32.mrb[0].mxu0
    %v3830 = vadd.f32 %v3710, %v3829
    %v3831 = vpop.f32.mrb[0].mxu0
    %3832 = vmatprep.mubr.bf16.mxu0 0
    %3833 = vmatmul.mubr.bf16.gmra.mrb[0].mxu0 %v3678
    %v3834 = vpop.f32.mrb[0].mxu0
    %v3835 = vadd.f32 %v3710, %v3834
    %v3836 = vpop.f32.mrb[0].mxu0
    %v3837 = vpop.f32.mrb[0].mxu0
    %v3838 = vadd.f32 %v3710, %v3837
    %v3839 = vpop.f32.mrb[0].mxu0
    %3840 = vmatprep.mubr.bf16.mxu0 0
    %3841 = vmatmul.mubr.bf16.gmra.mrb[0].mxu0 %v3679
    %v3842 = vpop.f32.mrb[0].mxu0
    %v3843 = vadd.f32 %v3710, %v3842
    %v3844 = vpop.f32.mrb[0].mxu0
    %v3845 = vpop.f32.mrb[0].mxu0
    %v3846 = vadd.f32 %v3710, %v3845
    %v3847 = vpop.f32.mrb[0].mxu0
    %3848 = vmatprep.mubr.bf16.mxu0 0
    %3849 = vmatmul.mubr.bf16.gmra.mrb[0].mxu0 %v3680
    %v3850 = vpop.f32.mrb[0].mxu0
    %v3851 = vadd.f32 %v3710, %v3850
    %v3852 = vpop.f32.mrb[0].mxu0
    %v3853 = vpop.f32.mrb[0].mxu0
    %v3854 = vadd.f32 %v3710, %v3853
    %v3855 = vpop.f32.mrb[0].mxu0
    %3856 = vmatprep.mubr.bf16.mxu0 0
    %3857 = vmatmul.mubr.bf16.gmra.mrb[0].mxu0 %v3681
    %v3858 = vpop.f32.mrb[0].mxu0
    %v3859 = vadd.f32 %v3710, %v3858
    %v3860 = vpop.f32.mrb[0].mxu0
    %v3861 = vpop.f32.mrb[0].mxu0
    %v3862 = vadd.f32 %v3710, %v3861
    %v3863 = vpop.f32.mrb[0].mxu0
    %3864 = vmatprep.mubr.bf16.mxu0 0
    %3865 = vmatmul.mubr.bf16.gmra.mrb[0].mxu0 %v3682
    %v3866 = vpop.f32.mrb[0].mxu0
    %v3867 = vadd.f32 %v3710, %v3866
    %v3868 = vpop.f32.mrb[0].mxu0
    %v3869 = vpop.f32.mrb[0].mxu0
    %v3870 = vadd.f32 %v3710, %v3869
    %v3871 = vpop.f32.mrb[0].mxu0
    %3872 = vmatprep.mubr.bf16.mxu0 0
    %3873 = vmatmul.mubr.bf16.gmra.mrb[0].mxu0 %v3683
    %v3874 = vpop.f32.mrb[0].mxu0
    %v3875 = vadd.f32 %v3710, %v3874
    %v3876 = vpop.f32.mrb[0].mxu0
    %v3877 = vpop.f32.mrb[0].mxu0
    %v3878 = vadd.f32 %v3710, %v3877
    %v3879 = vpop.f32.mrb[0].mxu0
    %3880 = vmatprep.mubr.bf16.mxu0 0
    %3881 = vmatmul.mubr.bf16.gmra.mrb[0].mxu0 %v3684
    %v3882 = vpop.f32.mrb[0].mxu0
    %v3883 = vadd.f32 %v3710, %v3882
    %v3884 = vpop.f32.mrb[0].mxu0
    %v3885 = vpop.f32.mrb[0].mxu0
    %v3886 = vadd.f32 %v3710, %v3885
    %v3887 = vpop.f32.mrb[0].mxu0
    %3888 = vmatprep.mubr.bf16.mxu0 0
    %3889 = vmatmul.mubr.bf16.gmra.mrb[0].mxu0 %v3685
    %v3890 = vpop.f32.mrb[0].mxu0
    %v3891 = vadd.f32 %v3710, %v3890
    %v3892 = vpop.f32.mrb[0].mxu0
    %v3893 = vpop.f32.mrb[0].mxu0
    %v3894 = vadd.f32 %v3710, %v3893
    %v3895 = vpop.f32.mrb[0].mxu0
    %3896 = vmatprep.mubr.bf16.mxu0 0
    %3897 = vmatmul.mubr.bf16.gmra.mrb[0].mxu0 %v3686
    %v3898 = vpop.f32.mrb[0].mxu0
    %v3899 = vadd.f32 %v3710, %v3898
    %v3900 = vpop.f32.mrb[0].mxu0
    %v3901 = vpop.f32.mrb[0].mxu0
    %v3902 = vadd.f32 %v3710, %v3901
    %v3903 = vpop.f32.mrb[0].mxu0
    %3904 = vmatprep.mubr.bf16.mxu0 0
    %3905 = vmatmul.mubr.bf16.gmra.mrb[0].mxu0 %v3687
    %v3906 = vpop.f32.mrb[0].mxu0
    %v3907 = vadd.f32 %v3710, %v3906
    %v3908 = vpop.f32.mrb[0].mxu0
    %v3909 = vpop.f32.mrb[0].mxu0
    %v3910 = vadd.f32 %v3710, %v3909
    %v3911 = vpop.f32.mrb[0].mxu0
    %3912 = vmatprep.mubr.bf16.mxu0 0
    %3913 = vmatmul.mubr.bf16.gmra.mrb[0].mxu0 %v3688
    %v3914 = vpop.f32.mrb[0].mxu0
    %v3915 = vadd.f32 %v3710, %v3914
    %v3916 = vpop.f32.mrb[0].mxu0
    %v3917 = vpop.f32.mrb[0].mxu0
    %v3918 = vadd.f32 %v3710, %v3917
    %v3919 = vpop.f32.mrb[0].mxu0
    %3920 = vdwg.mxu0
    %v3921 = vpack.c.bf16 %v3798, %v3795
    %v3922 = vpack.c.bf16 %v3806, %v3803
    %v3923 = vpack.c.bf16 %v3814, %v3811
    %v3924 = vpack.c.bf16 %v3822, %v3819
    %v3925 = vpack.c.bf16 %v3830, %v3827
    %v3926 = vpack.c.bf16 %v3838, %v3835
    %v3927 = vpack.c.bf16 %v3846, %v3843
    %v3928 = vpack.c.bf16 %v3854, %v3851
    %v3929 = vpack.c.bf16 %v3862, %v3859
    %v3930 = vpack.c.bf16 %v3870, %v3867
    %v3931 = vpack.c.bf16 %v3878, %v3875
    %v3932 = vpack.c.bf16 %v3886, %v3883
    %v3933 = vpack.c.bf16 %v3894, %v3891
    %v3934 = vpack.c.bf16 %v3902, %v3899
    %v3935 = vpack.c.bf16 %v3910, %v3907
    %v3936 = vpack.c.bf16 %v3918, %v3915
    %vm3937 = vcmp.gt.bf16.partialorder %v3921, 0
    %vm3938 = vcmp.gt.bf16.partialorder %v3922, 0
    %vm3939 = vcmp.gt.bf16.partialorder %v3923, 0
    %vm3940 = vcmp.gt.bf16.partialorder %v3924, 0
    %vm3941 = vcmp.gt.bf16.partialorder %v3925, 0
    %vm3942 = vcmp.gt.bf16.partialorder %v3926, 0
    %vm3943 = vcmp.gt.bf16.partialorder %v3927, 0
    %vm3944 = vcmp.gt.bf16.partialorder %v3928, 0
    %vm3945 = vcmp.gt.bf16.partialorder %v3929, 0
    %vm3946 = vcmp.gt.bf16.partialorder %v3930, 0
    %vm3947 = vcmp.gt.bf16.partialorder %v3931, 0
    %vm3948 = vcmp.gt.bf16.partialorder %v3932, 0
    %vm3949 = vcmp.gt.bf16.partialorder %v3933, 0
    %vm3950 = vcmp.gt.bf16.partialorder %v3934, 0
    %vm3951 = vcmp.gt.bf16.partialorder %v3935, 0
    %vm3952 = vcmp.gt.bf16.partialorder %v3936, 0
    %v3953 = vmul.bf16 %v3921, 1009007652
    %v3954 = vmul.bf16 %v3922, 1009007652
    %v3955 = vmul.bf16 %v3923, 1009007652
    %v3956 = vmul.bf16 %v3924, 1009007652
    %v3957 = vmul.bf16 %v3925, 1009007652
    %v3958 = vmul.bf16 %v3926, 1009007652
    %v3959 = vmul.bf16 %v3927, 1009007652
    %v3960 = vmul.bf16 %v3928, 1009007652
    %v3961 = vmul.bf16 %v3929, 1009007652
    %v3962 = vmul.bf16 %v3930, 1009007652
    %v3963 = vmul.bf16 %v3931, 1009007652
    %v3964 = vmul.bf16 %v3932, 1009007652
    %v3965 = vmul.bf16 %v3933, 1009007652
    %v3966 = vmul.bf16 %v3934, 1009007652
    %v3967 = vmul.bf16 %v3935, 1009007652
    %v3968 = vmul.bf16 %v3936, 1009007652
    %v3969 = vsel %vm3937, %v3921, %v3953
    %v3970 = vsel %vm3938, %v3922, %v3954
    %v3971 = vsel %vm3939, %v3923, %v3955
    %v3972 = vsel %vm3940, %v3924, %v3956
    %v3973 = vsel %vm3941, %v3925, %v3957
    %v3974 = vsel %vm3942, %v3926, %v3958
    %v3975 = vsel %vm3943, %v3927, %v3959
    %v3976 = vsel %vm3944, %v3928, %v3960
    %v3977 = vsel %vm3945, %v3929, %v3961
    %v3978 = vsel %vm3946, %v3930, %v3962
    %v3979 = vsel %vm3947, %v3931, %v3963
    %v3980 = vsel %vm3948, %v3932, %v3964
    %v3981 = vsel %vm3949, %v3933, %v3965
    %v3982 = vsel %vm3950, %v3934, %v3966
    %v3983 = vsel %vm3951, %v3935, %v3967
    %v3984 = vsel %vm3952, %v3936, %v3968
    %v3985 = vld [vmem:[%s11] sm:$0x1]
    %v3986 = vunpack.c.l.bf16 %v3969
    %v3987 = vunpack.c.h.bf16 %v3969
    %v3988 = vunpack.c.l.bf16 %v3970
    %v3989 = vunpack.c.h.bf16 %v3970
    %v3990 = vunpack.c.l.bf16 %v3971
    %v3991 = vunpack.c.h.bf16 %v3971
    %v3992 = vunpack.c.l.bf16 %v3972
    %v3993 = vunpack.c.h.bf16 %v3972
    %v3994 = vunpack.c.l.bf16 %v3973
    %v3995 = vunpack.c.h.bf16 %v3973
    %v3996 = vunpack.c.l.bf16 %v3974
    %v3997 = vunpack.c.h.bf16 %v3974
    %v3998 = vunpack.c.l.bf16 %v3975
    %v3999 = vunpack.c.h.bf16 %v3975
    %v4000 = vunpack.c.l.bf16 %v3976
    %v4001 = vunpack.c.h.bf16 %v3976
    %v4002 = vunpack.c.l.bf16 %v3977
    %v4003 = vunpack.c.h.bf16 %v3977
    %v4004 = vunpack.c.l.bf16 %v3978
    %v4005 = vunpack.c.h.bf16 %v3978
    %v4006 = vunpack.c.l.bf16 %v3979
    %v4007 = vunpack.c.h.bf16 %v3979
    %v4008 = vunpack.c.l.bf16 %v3980
    %v4009 = vunpack.c.h.bf16 %v3980
    %v4010 = vunpack.c.l.bf16 %v3981
    %v4011 = vunpack.c.h.bf16 %v3981
    %v4012 = vunpack.c.l.bf16 %v3982
    %v4013 = vunpack.c.h.bf16 %v3982
    %v4014 = vunpack.c.l.bf16 %v3983
    %v4015 = vunpack.c.h.bf16 %v3983
    %v4016 = vunpack.c.l.bf16 %v3984
    %v4017 = vunpack.c.h.bf16 %v3984
    %v4018 = vld [vmem:[#allocation2] sm:$0x1]
    %4020 = vset.pattern.permute.xlu0 0
    %4021 = vperm.xlu0 %4020, %v4018
    %v4022 = vpop.permute.xlu0 %4021
    %v4024 = vlaneseq
    %v4025 = vshrl.u32 %v4024, 7
    %v4026 = vsub.s32 0, %v4025
    %v4027 = vrot.slane %v4022, %v4026
    %4028 = vmatprep.subr.mxu0 0.0
    %4029 = vmatpush1.xpose.msra.mxu0 %v3986
    %4030 = vmatprep.subr.mxu0 0.0
    %4031 = vmatpush1.xpose.msra.mxu0 %v3987
    %4032 = vmatprep.subr.mxu0 0.0
    %4033 = vmatpush1.xpose.msra.mxu0 %v3988
    %4034 = vmatprep.subr.mxu0 0.0
    %4035 = vmatpush1.xpose.msra.mxu0 %v3989
    %4036 = vmatprep.subr.mxu0 0.0
    %4037 = vmatpush1.xpose.msra.mxu0 %v3990
    %4038 = vmatprep.subr.mxu0 0.0
    %4039 = vmatpush1.xpose.msra.mxu0 %v3991
    %4040 = vmatprep.subr.mxu0 0.0
    %4041 = vmatpush1.xpose.msra.mxu0 %v3992
    %4042 = vmatprep.subr.mxu0 0.0
    %4043 = vmatpush1.xpose.msra.mxu0 %v3993
    %4044 = vmatprep.subr.mxu0 0.0
    %4045 = vmatpush1.xpose.msra.mxu0 %v3994
    %4046 = vmatprep.subr.mxu0 0.0
    %4047 = vmatpush1.xpose.msra.mxu0 %v3995
    %4048 = vmatprep.subr.mxu0 0.0
    %4049 = vmatpush1.xpose.msra.mxu0 %v3996
    %4050 = vmatprep.subr.mxu0 0.0
    %4051 = vmatpush1.xpose.msra.mxu0 %v3997
    %4052 = vmatprep.subr.mxu0 0.0
    %4053 = vmatpush1.xpose.msra.mxu0 %v3998
    %4054 = vmatprep.subr.mxu0 0.0
    %4055 = vmatpush1.xpose.msra.mxu0 %v3999
    %4056 = vmatprep.subr.mxu0 0.0
    %4057 = vmatpush1.xpose.msra.mxu0 %v4000
    %4058 = vmatprep.subr.mxu0 0.0
    %4059 = vmatpush1.xpose.msra.mxu0 %v4001
    %4060 = vmatprep.subr.mxu0 0.0
    %4061 = vmatpush1.xpose.msra.mxu0 %v4002
    %4062 = vmatprep.subr.mxu0 0.0
    %4063 = vmatpush1.xpose.msra.mxu0 %v4003
    %4064 = vmatprep.subr.mxu0 0.0
    %4065 = vmatpush1.xpose.msra.mxu0 %v4004
    %4066 = vmatprep.subr.mxu0 0.0
    %4067 = vmatpush1.xpose.msra.mxu0 %v4005
    %4068 = vmatprep.subr.mxu0 0.0
    %4069 = vmatpush1.xpose.msra.mxu0 %v4006
    %4070 = vmatprep.subr.mxu0 0.0
    %4071 = vmatpush1.xpose.msra.mxu0 %v4007
    %4072 = vmatprep.subr.mxu0 0.0
    %4073 = vmatpush1.xpose.msra.mxu0 %v4008
    %4074 = vmatprep.subr.mxu0 0.0
    %4075 = vmatpush1.xpose.msra.mxu0 %v4009
    %4076 = vmatprep.subr.mxu0 0.0
    %4077 = vmatpush1.xpose.msra.mxu0 %v4010
    %4078 = vmatprep.subr.mxu0 0.0
    %4079 = vmatpush1.xpose.msra.mxu0 %v4011
    %4080 = vmatprep.subr.mxu0 0.0
    %4081 = vmatpush1.xpose.msra.mxu0 %v4012
    %4082 = vmatprep.subr.mxu0 0.0
    %4083 = vmatpush1.xpose.msra.mxu0 %v4013
    %4084 = vmatprep.subr.mxu0 0.0
    %4085 = vmatpush1.xpose.msra.mxu0 %v4014
    %4086 = vmatprep.subr.mxu0 0.0
    %4087 = vmatpush1.xpose.msra.mxu0 %v4015
    %4088 = vmatprep.subr.mxu0 0.0
    %4089 = vmatpush1.xpose.msra.mxu0 %v4016
    %4090 = vmatprep.subr.mxu0 0.0
    %4091 = vmatpush1.xpose.msra.mxu0 %v4017
    %4092 = vmatprep.mubr.f32.mxu0 0.0
    %4093 = vmatmul.mubr.f32.gmra.mrb[0].mxu0 %v3985
    %v4094 = vpop.f32.mrb[0].mxu0
    %v4095 = vadd.f32 %v4027, %v4094
    %v4096 = vpop.f32.mrb[0].mxu0
    %v4097 = vadd.f32 %v4027, %v4096
    %4098 = vdwg.mxu0
    %v4099 = vand.u32 2147483647, %v4095
    %v4100 = vand.u32 2147483647, %v4097
    %v4101 = vsub.f32 0.0, %v4099
    %v4102 = vsub.f32 0.0, %v4100
    %v4103 = vmul.f32 %v4101, 1.442695
    %v4104 = vpow.pop %v4103
    %v4105 = vmul.f32 %v4102, 1.442695
    %v4106 = vpow.pop %v4105
    %v4107 = vadd.f32 %v4104, 1.0
    %v4108 = vadd.f32 %v4106, 1.0
    %v4109 = vrcp.pop %v4107
    %v4110 = vmul.f32 1.0, %v4109
    %v4111 = vrcp.pop %v4108
    %v4112 = vmul.f32 1.0, %v4111
    %vm4113 = vcmp.ge.f32.partialorder %v4095, 0.0
    %vm4114 = vcmp.ge.f32.partialorder %v4097, 0.0
    %v4115 = vsub.f32 1.0, %v4110
    %v4116 = vsub.f32 1.0, %v4112
    %v4117 = vsel %vm4113, %v4110, %v4115
    %v4118 = vsel %vm4114, %v4112, %v4116
    %v4119 = vmul.f32 %v4117, 1.442695
    %v4120 = vpow.pop %v4119
    %v4121 = vmul.f32 %v4118, 1.442695
    %v4122 = vpow.pop %v4121
    %v4123 = vld [vmem:[%s13] sm:$0xff]
    %v4124 = vld [vmem:[%s13 + $0x8] sm:$0xff]
    %v4125 = vld [vmem:[%s13 + $0x10] sm:$0xff]
    %v4126 = vld [vmem:[%s13 + $0x18] sm:$0xff]
    %v4127 = vld [vmem:[%s13 + $0x20] sm:$0xff]
    %v4128 = vld [vmem:[%s13 + $0x28] sm:$0xff]
    %v4129 = vld [vmem:[%s13 + $0x30] sm:$0xff]
    %v4130 = vld [vmem:[%s13 + $0x38] sm:$0xff]
    %v4131 = vld [vmem:[%s13 + $0x40] sm:$0xff]
    %v4132 = vld [vmem:[%s13 + $0x48] sm:$0xff]
    %v4133 = vld [vmem:[%s13 + $0x50] sm:$0xff]
    %v4134 = vld [vmem:[%s13 + $0x58] sm:$0xff]
    %v4135 = vld [vmem:[%s13 + $0x60] sm:$0xff]
    %v4136 = vld [vmem:[%s13 + $0x68] sm:$0xff]
    %v4137 = vld [vmem:[%s13 + $0x70] sm:$0xff]
    %v4138 = vld [vmem:[%s13 + $0x78] sm:$0xff]
    %v4139 = vld [vmem:[%s13 + $0x80] sm:$0xff]
    %v4140 = vld [vmem:[%s13 + $0x88] sm:$0xff]
    %v4141 = vld [vmem:[%s13 + $0x90] sm:$0xff]
    %v4142 = vld [vmem:[%s13 + $0x98] sm:$0xff]
    %v4143 = vld [vmem:[%s13 + $0xa0] sm:$0xff]
    %v4144 = vld [vmem:[%s13 + $0xa8] sm:$0xff]
    %v4145 = vld [vmem:[%s13 + $0xb0] sm:$0xff]
    %v4146 = vld [vmem:[%s13 + $0xb8] sm:$0xff]
    %v4147 = vld [vmem:[%s13 + $0xc0] sm:$0xff]
    %v4148 = vld [vmem:[%s13 + $0xc8] sm:$0xff]
    %v4149 = vld [vmem:[%s13 + $0xd0] sm:$0xff]
    %v4150 = vld [vmem:[%s13 + $0xd8] sm:$0xff]
    %v4151 = vld [vmem:[%s13 + $0xe0] sm:$0xff]
    %v4152 = vld [vmem:[%s13 + $0xe8] sm:$0xff]
    %v4153 = vld [vmem:[%s13 + $0xf0] sm:$0xff]
    %v4154 = vld [vmem:[%s13 + $0xf8] sm:$0xff]
    %4155 = vmatprep.subr.mxu0 0.0
    %4156 = vmatpush1.msra.mxu0 %v4123
    %4157 = vmatprep.subr.mxu0 0.0
    %4158 = vmatpush1.msra.mxu0 %v4124
    %4159 = vmatprep.subr.mxu0 0.0
    %4160 = vmatpush1.msra.mxu0 %v4125
    %4161 = vmatprep.subr.mxu0 0.0
    %4162 = vmatpush1.msra.mxu0 %v4126
    %4163 = vmatprep.subr.mxu0 0.0
    %4164 = vmatpush1.msra.mxu0 %v4127
    %4165 = vmatprep.subr.mxu0 0.0
    %4166 = vmatpush1.msra.mxu0 %v4128
    %4167 = vmatprep.subr.mxu0 0.0
    %4168 = vmatpush1.msra.mxu0 %v4129
    %4169 = vmatprep.subr.mxu0 0.0
    %4170 = vmatpush1.msra.mxu0 %v4130
    %4171 = vmatprep.subr.mxu0 0.0
    %4172 = vmatpush1.msra.mxu0 %v4131
    %4173 = vmatprep.subr.mxu0 0.0
    %4174 = vmatpush1.msra.mxu0 %v4132
    %4175 = vmatprep.subr.mxu0 0.0
    %4176 = vmatpush1.msra.mxu0 %v4133
    %4177 = vmatprep.subr.mxu0 0.0
    %4178 = vmatpush1.msra.mxu0 %v4134
    %4179 = vmatprep.subr.mxu0 0.0
    %4180 = vmatpush1.msra.mxu0 %v4135
    %4181 = vmatprep.subr.mxu0 0.0
    %4182 = vmatpush1.msra.mxu0 %v4136
    %4183 = vmatprep.subr.mxu0 0.0
    %4184 = vmatpush1.msra.mxu0 %v4137
    %4185 = vmatprep.subr.mxu0 0.0
    %4186 = vmatpush1.msra.mxu0 %v4138
    %4187 = vmatprep.subr.mxu0 0.0
    %4188 = vmatpush1.msra.mxu0 %v4139
    %4189 = vmatprep.subr.mxu0 0.0
    %4190 = vmatpush1.msra.mxu0 %v4140
    %4191 = vmatprep.subr.mxu0 0.0
    %4192 = vmatpush1.msra.mxu0 %v4141
    %4193 = vmatprep.subr.mxu0 0.0
    %4194 = vmatpush1.msra.mxu0 %v4142
    %4195 = vmatprep.subr.mxu0 0.0
    %4196 = vmatpush1.msra.mxu0 %v4143
    %4197 = vmatprep.subr.mxu0 0.0
    %4198 = vmatpush1.msra.mxu0 %v4144
    %4199 = vmatprep.subr.mxu0 0.0
    %4200 = vmatpush1.msra.mxu0 %v4145
    %4201 = vmatprep.subr.mxu0 0.0
    %4202 = vmatpush1.msra.mxu0 %v4146
    %4203 = vmatprep.subr.mxu0 0.0
    %4204 = vmatpush1.msra.mxu0 %v4147
    %4205 = vmatprep.subr.mxu0 0.0
    %4206 = vmatpush1.msra.mxu0 %v4148
    %4207 = vmatprep.subr.mxu0 0.0
    %4208 = vmatpush1.msra.mxu0 %v4149
    %4209 = vmatprep.subr.mxu0 0.0
    %4210 = vmatpush1.msra.mxu0 %v4150
    %4211 = vmatprep.subr.mxu0 0.0
    %4212 = vmatpush1.msra.mxu0 %v4151
    %4213 = vmatprep.subr.mxu0 0.0
    %4214 = vmatpush1.msra.mxu0 %v4152
    %4215 = vmatprep.subr.mxu0 0.0
    %4216 = vmatpush1.msra.mxu0 %v4153
    %4217 = vmatprep.subr.mxu0 0.0
    %4218 = vmatpush1.msra.mxu0 %v4154
    %4219 = vmatprep.mubr.f32.mxu0 %v4122
    %4220 = vmatmul.mubr.f32.gmra.mrb[0].mxu0 %v4120
    %v4221 = vpop.f32.mrb[0].mxu0
    %v4222 = vadd.f32 0.0, %v4221
    %v4223 = vpop.f32.mrb[0].mxu0
    %4224 = vdwg.mxu0
    %v4225 = vld [vmem:[#allocation9] sm:$0xff]
    %v4226 = vld [vmem:[#allocation9 + $0x8] sm:$0xff]
    %v4227 = vld [vmem:[#allocation9 + $0x10] sm:$0xff]
    %v4228 = vld [vmem:[#allocation9 + $0x18] sm:$0xff]
    %v4229 = vld [vmem:[#allocation9 + $0x20] sm:$0xff]
    %v4230 = vld [vmem:[#allocation9 + $0x28] sm:$0xff]
    %v4231 = vld [vmem:[#allocation9 + $0x30] sm:$0xff]
    %v4232 = vld [vmem:[#allocation9 + $0x38] sm:$0xff]
    %v4234 = vsel %vm182, %v4222, 0
    %4236 = vmatprep.subr.mxu0 %v4226
    %4237 = vmatpush1.msra.mxu0 %v4225
    %4238 = vmatprep.subr.mxu0 %v4228
    %4239 = vmatpush1.msra.mxu0 %v4227
    %4240 = vmatprep.subr.mxu0 %v4230
    %4241 = vmatpush1.msra.mxu0 %v4229
    %4242 = vmatprep.subr.mxu0 %v4232
    %4243 = vmatpush1.msra.mxu0 %v4231
    %4244 = vmatprep.subr.mxu0 0.0
    %4245 = vmatpush1.msra.mxu0 0.0
    %4246 = vmatprep.subr.mxu0 0.0
    %4247 = vmatpush1.msra.mxu0 0.0
    %4248 = vmatprep.subr.mxu0 0.0
    %4249 = vmatpush1.msra.mxu0 0.0
    %4250 = vmatprep.subr.mxu0 0.0
    %4251 = vmatpush1.msra.mxu0 0.0
    %4252 = vmatprep.subr.mxu0 0.0
    %4253 = vmatpush1.msra.mxu0 0.0
    %4254 = vmatprep.subr.mxu0 0.0
    %4255 = vmatpush1.msra.mxu0 0.0
    %4256 = vmatprep.subr.mxu0 0.0
    %4257 = vmatpush1.msra.mxu0 0.0
    %4258 = vmatprep.subr.mxu0 0.0
    %4259 = vmatpush1.msra.mxu0 0.0
    %4260 = vmatprep.subr.mxu0 0.0
    %4261 = vmatpush1.msra.mxu0 0.0
    %4262 = vmatprep.subr.mxu0 0.0
    %4263 = vmatpush1.msra.mxu0 0.0
    %4264 = vmatprep.subr.mxu0 0.0
    %4265 = vmatpush1.msra.mxu0 0.0
    %4266 = vmatprep.subr.mxu0 0.0
    %4267 = vmatpush1.msra.mxu0 0.0
    %4268 = vmatprep.subr.mxu0 0.0
    %4269 = vmatpush1.msra.mxu0 0.0
    %4270 = vmatprep.subr.mxu0 0.0
    %4271 = vmatpush1.msra.mxu0 0.0
    %4272 = vmatprep.subr.mxu0 0.0
    %4273 = vmatpush1.msra.mxu0 0.0
    %4274 = vmatprep.subr.mxu0 0.0
    %4275 = vmatpush1.msra.mxu0 0.0
    %4276 = vmatprep.subr.mxu0 0.0
    %4277 = vmatpush1.msra.mxu0 0.0
    %4278 = vmatprep.subr.mxu0 0.0
    %4279 = vmatpush1.msra.mxu0 0.0
    %4280 = vmatprep.subr.mxu0 0.0
    %4281 = vmatpush1.msra.mxu0 0.0
    %4282 = vmatprep.subr.mxu0 0.0
    %4283 = vmatpush1.msra.mxu0 0.0
    %4284 = vmatprep.subr.mxu0 0.0
    %4285 = vmatpush1.msra.mxu0 0.0
    %4286 = vmatprep.subr.mxu0 0.0
    %4287 = vmatpush1.msra.mxu0 0.0
    %4288 = vmatprep.subr.mxu0 0.0
    %4289 = vmatpush1.msra.mxu0 0.0
    %4290 = vmatprep.subr.mxu0 0.0
    %4291 = vmatpush1.msra.mxu0 0.0
    %4292 = vmatprep.subr.mxu0 0.0
    %4293 = vmatpush1.msra.mxu0 0.0
    %4294 = vmatprep.subr.mxu0 0.0
    %4295 = vmatpush1.msra.mxu0 0.0
    %4296 = vmatprep.subr.mxu0 0.0
    %4297 = vmatpush1.msra.mxu0 0.0
    %4298 = vmatprep.subr.mxu0 0.0
    %4299 = vmatpush1.msra.mxu0 0.0
    %4300 = vmatprep.mubr.f32.mxu0 0.0
    %4301 = vmatmul.mubr.f32.gmra.mrb[0].mxu0 %v4234
    %v4302 = vpop.f32.mrb[0].mxu0
    %v4303 = vadd.f32 0.0, %v4302
    %v4304 = vpop.f32.mrb[0].mxu0
    %v4305 = vadd.f32 0.0, %v4304
    %4306 = vdwg.mxu0
    %v4307 = vmax.f32 %v4303, 1.0
    %v4308 = vmax.f32 %v4305, 1.0
    %v4309 = vrcp.pop %v4307
    %v4310 = vrcp.pop %v4308
    %v4311 = vmul.f32 %v4120, %v4309
    %v4312 = vmul.f32 %v4122, %v4310
    %v4315 = vcombine.low %v4311, %v4312
    %v4317 = vunpack.c.l.s4 1966171168
    %v4318 = vunpack.c.0.s8 %v4317
    %v4319 = vlaneseq
    %v4320 = vshrl.u32 %v4319, 7
    %v4321 = vsub.s32 %v4318, %v4320
    %v4322 = vrot.slane %v4315, %v4321
    %v4324 = vunpack.c.l.s4 1966171168
    %v4325 = vunpack.c.0.s8 %v4324
    %v4326 = vlaneseq
    %v4327 = vshrl.u32 %v4326, 7
    %v4328 = vsub.s32 %v4325, %v4327
    %v4329 = vrot.slane %v4322, %v4328
    %v4331 = vlaneseq
    %vm4332 = vcmp.ge.s32.totalorder %v4331, 0
    %vm4333 = vcmp.lt.s32.totalorder %v4331, 256
    %vm4334 = vmand %vm4332, %vm4333
    %4335 = vst.msk [vmem:[#allocation12] sm:$0x3] %vm4334, %v4329
    %v4336 = vld [vmem:[#allocation9] sm:$0xff]
    %v4337 = vld [vmem:[#allocation9 + $0x8] sm:$0xff]
    %v4338 = vld [vmem:[#allocation9 + $0x10] sm:$0xff]
    %v4339 = vld [vmem:[#allocation9 + $0x18] sm:$0xff]
    %v4340 = vld [vmem:[#allocation9 + $0x20] sm:$0xff]
    %v4341 = vld [vmem:[#allocation9 + $0x28] sm:$0xff]
    %v4342 = vld [vmem:[#allocation9 + $0x30] sm:$0xff]
    %v4343 = vld [vmem:[#allocation9 + $0x38] sm:$0xff]
    %v4344 = vlaneseq
    %v4345 = vshrl.u32 %v4344, 7
    %v4346 = vsub.s32 0, %v4345
    %v4347 = vrot.slane %v4311, %v4346
    %v4348 = vlaneseq
    %v4349 = vshrl.u32 %v4348, 7
    %v4350 = vsub.s32 0, %v4349
    %v4351 = vrot.slane %v4312, %v4350
    %v4352 = vmul.f32 %v4336, %v4347
    %v4353 = vmul.f32 %v4337, %v4351
    %v4354 = vmul.f32 %v4338, %v4347
    %v4355 = vmul.f32 %v4339, %v4351
    %v4356 = vmul.f32 %v4340, %v4347
    %v4357 = vmul.f32 %v4341, %v4351
    %v4358 = vmul.f32 %v4342, %v4347
    %v4359 = vmul.f32 %v4343, %v4351
    %4360 = vmatprep.subr.mxu0 0.0
    %4361 = vmatpush1.msra.mxu0 %v111
    %4362 = vmatprep.subr.mxu0 0.0
    %4363 = vmatpush1.msra.mxu0 %v112
    %4364 = vmatprep.subr.mxu0 0.0
    %4365 = vmatpush1.msra.mxu0 %v113
    %4366 = vmatprep.subr.mxu0 0.0
    %4367 = vmatpush1.msra.mxu0 %v114
    %4368 = vmatprep.subr.mxu0 0.0
    %4369 = vmatpush1.msra.mxu0 %v115
    %4370 = vmatprep.subr.mxu0 0.0
    %4371 = vmatpush1.msra.mxu0 %v116
    %4372 = vmatprep.subr.mxu0 0.0
    %4373 = vmatpush1.msra.mxu0 %v117
    %4374 = vmatprep.subr.mxu0 0.0
    %4375 = vmatpush1.msra.mxu0 %v118
    %4376 = vmatprep.subr.mxu0 0.0
    %4377 = vmatpush1.msra.mxu0 %v119
    %4378 = vmatprep.subr.mxu0 0.0
    %4379 = vmatpush1.msra.mxu0 %v120
    %4380 = vmatprep.subr.mxu0 0.0
    %4381 = vmatpush1.msra.mxu0 %v121
    %4382 = vmatprep.subr.mxu0 0.0
    %4383 = vmatpush1.msra.mxu0 %v122
    %4384 = vmatprep.subr.mxu0 0.0
    %4385 = vmatpush1.msra.mxu0 %v123
    %4386 = vmatprep.subr.mxu0 0.0
    %4387 = vmatpush1.msra.mxu0 %v124
    %4388 = vmatprep.subr.mxu0 0.0
    %4389 = vmatpush1.msra.mxu0 %v125
    %4390 = vmatprep.subr.mxu0 0.0
    %4391 = vmatpush1.msra.mxu0 %v126
    %4392 = vmatprep.subr.mxu0 0.0
    %4393 = vmatpush1.msra.mxu0 %v127
    %4394 = vmatprep.subr.mxu0 0.0
    %4395 = vmatpush1.msra.mxu0 %v128
    %4396 = vmatprep.subr.mxu0 0.0
    %4397 = vmatpush1.msra.mxu0 %v129
    %4398 = vmatprep.subr.mxu0 0.0
    %4399 = vmatpush1.msra.mxu0 %v130
    %4400 = vmatprep.subr.mxu0 0.0
    %4401 = vmatpush1.msra.mxu0 %v131
    %4402 = vmatprep.subr.mxu0 0.0
    %4403 = vmatpush1.msra.mxu0 %v132
    %4404 = vmatprep.subr.mxu0 0.0
    %4405 = vmatpush1.msra.mxu0 %v133
    %4406 = vmatprep.subr.mxu0 0.0
    %4407 = vmatpush1.msra.mxu0 %v134
    %4408 = vmatprep.subr.mxu0 0.0
    %4409 = vmatpush1.msra.mxu0 %v135
    %4410 = vmatprep.subr.mxu0 0.0
    %4411 = vmatpush1.msra.mxu0 %v136
    %4412 = vmatprep.subr.mxu0 0.0
    %4413 = vmatpush1.msra.mxu0 %v137
    %4414 = vmatprep.subr.mxu0 0.0
    %4415 = vmatpush1.msra.mxu0 %v138
    %4416 = vmatprep.subr.mxu0 0.0
    %4417 = vmatpush1.msra.mxu0 %v139
    %4418 = vmatprep.subr.mxu0 0.0
    %4419 = vmatpush1.msra.mxu0 %v140
    %4420 = vmatprep.subr.mxu0 0.0
    %4421 = vmatpush1.msra.mxu0 %v141
    %4422 = vmatprep.subr.mxu0 0.0
    %4423 = vmatpush1.msra.mxu0 %v142
    %4424 = vmatprep.mubr.f32.mxu0 %v4353
    %4425 = vmatmul.mubr.f32.gmra.mrb[0].mxu0 %v4352
    %v4426 = vpop.f32.mrb[0].mxu0
    %v4427 = vadd.f32 0.0, %v4426
    %v4428 = vpop.f32.mrb[0].mxu0
    %4429 = vmatprep.mubr.f32.mxu0 %v4355
    %4430 = vmatmul.mubr.f32.gmra.mrb[0].mxu0 %v4354
    %v4431 = vpop.f32.mrb[0].mxu0
    %v4432 = vadd.f32 0.0, %v4431
    %v4433 = vpop.f32.mrb[0].mxu0
    %4434 = vmatprep.mubr.f32.mxu0 %v4357
    %4435 = vmatmul.mubr.f32.gmra.mrb[0].mxu0 %v4356
    %v4436 = vpop.f32.mrb[0].mxu0
    %v4437 = vadd.f32 0.0, %v4436
    %v4438 = vpop.f32.mrb[0].mxu0
    %4439 = vmatprep.mubr.f32.mxu0 %v4359
    %4440 = vmatmul.mubr.f32.gmra.mrb[0].mxu0 %v4358
    %v4441 = vpop.f32.mrb[0].mxu0
    %v4442 = vadd.f32 0.0, %v4441
    %v4443 = vpop.f32.mrb[0].mxu0
    %4444 = vdwg.mxu0
    %4445 = vst.msk [vmem:[#allocation11] sm:$0xff] %vm182, %v4427
    %4446 = vst.msk [vmem:[#allocation11 + $0x8] sm:$0xff] %vm182, %v4432
    %4447 = vst.msk [vmem:[#allocation11 + $0x10] sm:$0xff] %vm182, %v4437
    %4448 = vst.msk [vmem:[#allocation11 + $0x18] sm:$0xff] %vm182, %v4442
    // Predicated region
    $region78: #{tpu_custom_call.1} parent=1 // pred_check
      _
    $region79: #{tpu_custom_call.1} parent=1 // pred_check_branch
      %4450 = sbr.rel (0) target = $region81
    $region80: #{tpu_custom_call.1} parent=1 // pred_region
      %s4452 = ssub.s32 512, 512
      %4453 = vsyncadd [#allocation5], %s4452
      %s4454 = sshll.u32 [#allocation11], 4
      %s4455 = int_to_ptr.vmem [resolvable:$true] %s4454
      %4460 = dma.vmem_to_hbm [thread:$0]  %s4455, 512, %s15, [#allocation5], 128, 128, 8
    $region81: #{tpu_custom_call.1} parent=1 // pred_fallthru
      _
    // Predicated region
    $region82: #{tpu_custom_call.1} parent=1 // pred_check
      _
    $region83: #{tpu_custom_call.1} parent=1 // pred_check_branch
      %4462 = sbr.rel (0) target = $region85
    $region84: #{tpu_custom_call.1} parent=1 // pred_region
      %s4464 = ssub.s32 32, 32
      %4465 = vsyncadd [#allocation13], %s4464
      %s4467 = sshll.u32 [#allocation12], 4
      %s4468 = int_to_ptr.vmem [resolvable:$true] %s4467
      %4470 = dma.vmem_to_hbm [thread:$0]  %s4468, 32, %s16, [#allocation13]
    $region85: #{tpu_custom_call.1} parent=1 // pred_fallthru
      _
    // Predicated region
    $region86: #{tpu_custom_call.1} parent=1 // pred_check
      _
    $region87: #{tpu_custom_call.1} parent=1 // pred_check_branch
      %4472 = sbr.rel (0) target = $region89
    $region88: #{tpu_custom_call.1} parent=1 // pred_region
      %4473 = dma.done [#allocation5], 512
    $region89: #{tpu_custom_call.1} parent=1 // pred_fallthru
      _
    // Predicated region
    $region90: #{tpu_custom_call.1} parent=1 // pred_check
      _
    $region91: #{tpu_custom_call.1} parent=1 // pred_check_branch
      %4475 = sbr.rel (0) target = $region93
    $region92: #{tpu_custom_call.1} parent=1 // pred_region
      %4476 = dma.done [#allocation13], 32
    $region93: #{tpu_custom_call.1} parent=1 // pred_fallthru
      _
    %4477 = vsyncpa [#allocation4], 1
    %4478 = vsyncpa [#allocation7], 1
    %4479 = vsyncpa [#allocation10], 1
    %4480 = vsyncpa [#allocation5], 1
    %4481 = vsyncpa [#allocation13], 1

</llo_original>
